<compile_context>
chip_gen: v6e
topology: v6e:2x2x1
jax: 0.10.0
libtpu: 0.0.40
codegen_flags: <defaults>
</compile_context>

<pallas_src>
import functools

import jax
import jax.numpy as jnp
import numpy as np
from jax import lax
from jax.experimental import pallas as pl
from jax.experimental.pallas import tpu as pltpu

_K = 7  # SpatialAttention kernel size
_P = 3  # padding for kernel_size == 7


def ram_kernel(x_ref, w1t_ref, w2_ref, cmask_ref, wsa_ref, sc_ref,
               o_ref, pad_ref, ca_ref, sa_ref, *, C, CT, H, W):
    HW = H * W
    L = pad_ref.shape[1]
    FPAD = (L - HW) // 2                          # flat zero-pad on each side
    Cr = w1t_ref.shape[1]                         # C // 16

    t = pl.program_id(1)

    alpha_ca = sc_ref[0]                          # PReLU slope (channel attn)
    alpha_sa = sc_ref[1]                          # PReLU slope (spatial attn)
    bn_scale = sc_ref[2]                          # gamma / sqrt(var + eps)
    bn_shift = sc_ref[3]                          # beta - mean * bn_scale

    # ------------- attention maps: once per batch (t == 0), kept in scratch --
    @pl.when(t == 0)
    def _attention():
        x = x_ref[0]                              # (C, HW), lane-dense

        # ----- channel attention: global avg/max pool + tiny MLP (VPU only) --
        avg_c = jnp.sum(x, axis=1, keepdims=True) * (1.0 / HW)    # (C, 1)
        max_c = jnp.max(x, axis=1, keepdims=True)                 # (C, 1)
        lane2 = lax.broadcasted_iota(jnp.int32, (C, 2), 1)
        stats = jnp.where(lane2 == 0, avg_c, max_c)               # (C, 2) fused

        w1t = w1t_ref[...]                        # (C, Cr) == fc1.weight.T
        w2 = w2_ref[...]                          # (C, Cr) == fc2.weight
        logit = jnp.zeros((C, 1), jnp.float32)
        for j in range(Cr):                       # tiny static unroll
            zj = jnp.sum(w1t[:, j:j + 1] * stats, axis=0, keepdims=True)  # (1,2)
            zj = jnp.where(zj >= 0, zj, alpha_ca * zj)            # PReLU
            logit = logit + w2[:, j:j + 1] * (zj[0:1, 0:1] + zj[0:1, 1:2])
        ca = jax.nn.sigmoid(logit)                # (C, 1)
        ca_ref[...] = ca

        # ----- spatial-attention input maps: channel mean / max of ca*x ------
        xca = x * ca                              # consumed immediately below
        avg_sp = jnp.sum(xca, axis=0, keepdims=True) * (1.0 / C)  # (1, HW)
        max_sp = jnp.max(xca, axis=0, keepdims=True)              # (1, HW)

        # Zero only the two lane-aligned margins (interior is fully rewritten).
        nrows = pad_ref.shape[0]
        pad_ref[:, 0:FPAD] = jnp.zeros((nrows, FPAD), jnp.float32)
        pad_ref[:, FPAD + HW:FPAD + HW + FPAD] = jnp.zeros((nrows, FPAD),
                                                           jnp.float32)
        # One fused 2-sublane, lane-aligned interior store of both maps.
        row2 = lax.broadcasted_iota(jnp.int32, (2, HW), 0)
        pad_ref[0:2, FPAD:FPAD + HW] = jnp.where(row2 == 0, avg_sp, max_sp)

        # ----- 7x7 conv (2 in-ch -> 1 out-ch, zero pad 3), kw shift hoisted --
        # 1) 7 fused (2, HW) vertical-window loads; per tap 2 mul + 2 add into
        #    7 register-resident per-kw partial sums.
        t_kw = [jnp.zeros((1, HW), jnp.float32) for _ in range(_K)]
        for kh in range(_K):
            start = FPAD + (kh - _P) * W
            win = pad_ref[0:2, start:start + HW]                  # (2, HW)
            a_kh = win[0:1, :]
            m_kh = win[1:2, :]
            for kw in range(_K):
                w_a = wsa_ref[kh * _K + kw]                       # avg-ch tap
                w_m = wsa_ref[_K * _K + kh * _K + kw]             # max-ch tap
                t_kw[kw] = t_kw[kw] + w_a * a_kh + w_m * m_kh
        # 2) per kw (center excluded): aligned store, +/-3 shifted read from
        #    the zeroed-margin scratch, one column-mask multiply.
        for kw in range(_K):
            if kw == _P:
                continue
            pad_ref[2 + kw:3 + kw, FPAD:FPAD + HW] = t_kw[kw]
        acc = t_kw[_P]                                            # centre tap
        for kw in range(_K):
            if kw == _P:
                continue
            s = FPAD + (kw - _P)
            shifted = pad_ref[2 + kw:3 + kw, s:s + HW]            # (1, HW)
            acc = acc + cmask_ref[kw:kw + 1, :] * shifted

        y = acc * bn_scale + bn_shift             # eval-mode BatchNorm2d(1)
        y = jnp.where(y >= 0, y, alpha_sa * y)    # PReLU
        sa_ref[...] = jax.nn.sigmoid(y)           # (1, HW)

    # ------------- fused scale pass: out = x * ca * sa (per channel tile) ----
    c0 = pl.multiple_of(t * CT, CT)
    x_t = x_ref[0, pl.ds(c0, CT), :]              # (CT, HW) from resident block
    ca_t = ca_ref[pl.ds(c0, CT), :]               # (CT, 1)
    o_ref[0] = (x_t * ca_t * sa_ref[...]).astype(o_ref.dtype)


def ram_forward(x, w1, w2, w_sa4, scalars):
    """x: (B, C, H, W) f32 -> (B, C, H, W) f32 (RAM forward, eval mode)."""
    B, C, H, W = x.shape
    HW = H * W
    # Flat zero pad: must cover the +/-3-row vertical tap shifts (3*W) and the
    # +/-3 horizontal shift; rounded to a lane tile so interior stores align.
    FPAD = max(128, -(-(_P * W) // 128) * 128)

    # Channel tile for the scale pass: >= 2 grid steps per batch.
    CT = C // 2 if (C % 16 == 0) else C
    NT = C // CT

    x_flat = x.reshape(B, C, HW)                  # lane-dense layout
    w1t = jnp.transpose(w1)                       # (C, C//16)
    wsa_flat = w_sa4.reshape(-1)                  # (2*7*7,) -> SMEM scalars

    # Static column masks: zero contributions whose source column leaves [0,W).
    col = np.arange(HW, dtype=np.int64) % W
    cmasks = np.stack(
        [((col + (kw - _P) >= 0) & (col + (kw - _P) < W)).astype(np.float32)
         for kw in range(_K)], axis=0)            # (7, HW)
    cmasks = jnp.asarray(cmasks)

    # VMEM budget from the actual block / scratch bytes (+ pipeline buffers).
    scratch_f32 = 9 * (HW + 2 * FPAD) + C + HW
    block_f32 = 2 * C * HW + 2 * CT * HW + _K * HW + 4 * C * max(1, C // 16)
    vmem_limit = int(min(100 * 1024 * 1024,
                         max(4 * 1024 * 1024, 4 * 2 * (block_f32 + scratch_f32))))

    kernel = functools.partial(ram_kernel, C=C, CT=CT, H=H, W=W)
    out_flat = pl.pallas_call(
        kernel,
        out_shape=jax.ShapeDtypeStruct((B, C, HW), jnp.float32),
        grid=(B, NT),
        in_specs=[
            pl.BlockSpec((1, C, HW), lambda b, t: (b, 0, 0)),     # x, resident over t
            pl.BlockSpec(memory_space=pltpu.MemorySpace.VMEM),    # fc1.weight.T
            pl.BlockSpec(memory_space=pltpu.MemorySpace.VMEM),    # fc2.weight
            pl.BlockSpec(memory_space=pltpu.MemorySpace.VMEM),    # column masks
            pl.BlockSpec(memory_space=pltpu.MemorySpace.SMEM),    # 7x7 taps (flat)
            pl.BlockSpec(memory_space=pltpu.MemorySpace.SMEM),    # scalar params
        ],
        out_specs=pl.BlockSpec((1, CT, HW), lambda b, t: (b, t, 0)),
        scratch_shapes=[
            pltpu.VMEM((2 + _K, HW + 2 * FPAD), jnp.float32),     # maps + kh-sums
            pltpu.VMEM((C, 1), jnp.float32),                      # ca
            pltpu.VMEM((1, HW), jnp.float32),                     # sa
        ],
        input_output_aliases={0: 0},              # out has same shape/dtype as x
        compiler_params=pltpu.CompilerParams(
            dimension_semantics=("parallel", "arbitrary"),
            vmem_limit_bytes=vmem_limit),
    )(x_flat, w1t, w2, cmasks, wsa_flat, scalars)
    return out_flat.reshape(B, C, H, W)


def ram_reference(x, w1, w2, w_sa4, alpha_ca, alpha_sa, bn_scale, bn_shift):
    """Pure-JAX reference of RAM.forward (eval mode)."""
    avg = jnp.mean(x, axis=(2, 3))                # (B, C)
    mx = jnp.max(x, axis=(2, 3))                  # (B, C)

    def mlp(p):
        z = p @ w1.T
        z = jnp.where(z >= 0, z, alpha_ca * z)
        return z @ w2.T

    ca = jax.nn.sigmoid(mlp(avg) + mlp(mx))[:, :, None, None]
    x1 = ca * x
    s_in = jnp.concatenate(
        [jnp.mean(x1, axis=1, keepdims=True), jnp.max(x1, axis=1, keepdims=True)],
        axis=1)                                   # (B, 2, H, W)
    conv = lax.conv_general_dilated(
        s_in, w_sa4, window_strides=(1, 1), padding=((_P, _P), (_P, _P)),
        dimension_numbers=("NCHW", "OIHW", "NCHW"))
    y = conv * bn_scale + bn_shift
    y = jnp.where(y >= 0, y, alpha_sa * y)
    return jax.nn.sigmoid(y) * x1


if __name__ == "__main__":
    B, C, H, W = 2, 32, 16, 16                    # in_channal = 32 (C // 16 = 2)
    key = jax.random.PRNGKey(0)
    kx, k1, k2, k3 = jax.random.split(key, 4)

    x = jax.random.normal(kx, (B, C, H, W), jnp.float32)

    # ChannelAttention params (1x1 convs, bias-free)
    w1 = jax.random.normal(k1, (C // 16, C), jnp.float32) * 0.2
    w2 = jax.random.normal(k2, (C, C // 16), jnp.float32) * 0.2
    # TODO(synk): RefConv is not defined in the provided source; its inference-time
    # behaviour is approximated here by a plain bias-free 7x7 Conv2d(2, 1, pad=3).
    w_sa4 = jax.random.normal(k3, (1, 2, _K, _K), jnp.float32) * 0.2

    alpha_ca = 0.25                               # PReLU init
    alpha_sa = 0.25
    gamma, beta, r_mean, r_var, eps = 1.0, 0.0, 0.0, 1.0, 1e-5  # fresh BN(1), eval
    bn_scale = float(gamma / np.sqrt(r_var + eps))
    bn_shift = float(beta - r_mean * bn_scale)
    scalars = jnp.array([alpha_ca, alpha_sa, bn_scale, bn_shift], jnp.float32)

    out = ram_forward(x, w1, w2, w_sa4, scalars)
    out = jax.block_until_ready(out)

    ref = ram_reference(x, w1, w2, w_sa4, alpha_ca, alpha_sa, bn_scale, bn_shift)
    np.testing.assert_allclose(np.asarray(out), np.asarray(ref), rtol=2e-3, atol=2e-3)

    print("KERNEL_OK")
</pallas_src>

<mosaic_0001>
module attributes {stable_mosaic.version = 11 : i64} {
  func.func @ram_kernel(%arg0: i32, %arg1: i32, %arg2: memref<1x32x256xf32, #tpu.memory_space<vmem>>, %arg3: memref<32x2xf32, #tpu.memory_space<vmem>>, %arg4: memref<32x2xf32, #tpu.memory_space<vmem>>, %arg5: memref<7x256xf32, #tpu.memory_space<vmem>>, %arg6: memref<98xf32, #tpu.memory_space<smem>>, %arg7: memref<4xf32, #tpu.memory_space<smem>>, %arg8: memref<1x16x256xf32, #tpu.memory_space<vmem>>, %arg9: memref<9x512xf32, #tpu.memory_space<vmem>>, %arg10: memref<32x1xf32, #tpu.memory_space<vmem>>, %arg11: memref<1x256xf32, #tpu.memory_space<vmem>>) attributes {dimension_semantics = [#tpu.dimension_semantics<parallel>, #tpu.dimension_semantics<arbitrary>], iteration_bounds = array<i64: 2, 2>, scalar_prefetch = 0 : i64, scratch_operands = 3 : i64, tpu.core_type = #tpu.core_type<tc>, window_params = [{transform_indices = @transform_0, window_bounds = array<i64: 1, 32, 256>}, {pipeline_mode = #tpu.pipeline_mode<synchronous>, transform_indices = @transform_1, window_bounds = array<i64: 32, 2>}, {pipeline_mode = #tpu.pipeline_mode<synchronous>, transform_indices = @transform_2, window_bounds = array<i64: 32, 2>}, {pipeline_mode = #tpu.pipeline_mode<synchronous>, transform_indices = @transform_3, window_bounds = array<i64: 7, 256>}, {transform_indices = @transform_4, window_bounds = array<i64: 98>}, {transform_indices = @transform_5, window_bounds = array<i64: 4>}, {transform_indices = @transform_6, window_bounds = array<i64: 1, 16, 256>}]} {
    %c0 = arith.constant 0 : index
    %0 = memref.load %arg7[%c0] : memref<4xf32, #tpu.memory_space<smem>>
    %c1 = arith.constant 1 : index
    %1 = memref.load %arg7[%c1] : memref<4xf32, #tpu.memory_space<smem>>
    %c2 = arith.constant 2 : index
    %2 = memref.load %arg7[%c2] : memref<4xf32, #tpu.memory_space<smem>>
    %c3 = arith.constant 3 : index
    %3 = memref.load %arg7[%c3] : memref<4xf32, #tpu.memory_space<smem>>
    %c0_i32 = arith.constant 0 : i32
    %4 = arith.cmpi eq, %arg1, %c0_i32 : i32
    %5 = arith.extui %4 : i1 to i32
    %c0_i32_0 = arith.constant 0 : i32
    %6 = arith.cmpi ne, %5, %c0_i32_0 : i32
    scf.if %6 {
      %c0_9 = arith.constant 0 : index
      %c0_10 = arith.constant 0 : index
      %c0_11 = arith.constant 0 : index
      %22 = vector.load %arg2[%c0_9, %c0_10, %c0_11] : memref<1x32x256xf32, #tpu.memory_space<vmem>>, vector<1x32x256xf32>
      %23 = vector.shape_cast %22 : vector<1x32x256xf32> to vector<32x256xf32>
      %cst = arith.constant dense<0.000000e+00> : vector<32xf32>
      %24 = vector.multi_reduction <add>, %23, %cst [1] : vector<32x256xf32> to vector<32xf32>
      %25 = vector.shape_cast %24 : vector<32xf32> to vector<32x1xf32>
      %cst_12 = arith.constant 3.906250e-03 : f32
      %26 = vector.broadcast %cst_12 : f32 to vector<32x1xf32>
      %27 = arith.mulf %25, %26 : vector<32x1xf32>
      %cst_13 = arith.constant dense<0xFF800000> : vector<32xf32>
      %28 = vector.multi_reduction <maximumf>, %23, %cst_13 [1] : vector<32x256xf32> to vector<32xf32>
      %29 = vector.shape_cast %28 : vector<32xf32> to vector<32x1xf32>
      %30 = tpu.iota {dimensions = array<i32: 1>} : vector<32x2xi32>
      %c0_i32_14 = arith.constant 0 : i32
      %31 = vector.broadcast %c0_i32_14 : i32 to vector<32x2xi32>
      %32 = arith.cmpi eq, %30, %31 : vector<32x2xi32>
      %33 = vector.shape_cast %27 : vector<32x1xf32> to vector<32x1xf32>
      %34 = vector.broadcast %33 : vector<32x1xf32> to vector<32x2xf32>
      %35 = vector.shape_cast %29 : vector<32x1xf32> to vector<32x1xf32>
      %36 = vector.broadcast %35 : vector<32x1xf32> to vector<32x2xf32>
      %37 = arith.select %32, %34, %36 : vector<32x2xi1>, vector<32x2xf32>
      %c0_15 = arith.constant 0 : index
      %c0_16 = arith.constant 0 : index
      %38 = vector.load %arg3[%c0_15, %c0_16] : memref<32x2xf32, #tpu.memory_space<vmem>>, vector<32x2xf32>
      %c0_17 = arith.constant 0 : index
      %c0_18 = arith.constant 0 : index
      %39 = vector.load %arg4[%c0_17, %c0_18] : memref<32x2xf32, #tpu.memory_space<vmem>>, vector<32x2xf32>
      %cst_19 = arith.constant 0.000000e+00 : f32
      %40 = vector.broadcast %cst_19 : f32 to vector<32x1xf32>
      %41 = vector.extract_strided_slice %38 {offsets = [0, 0], sizes = [32, 1], strides = [1, 1]} : vector<32x2xf32> to vector<32x1xf32>
      %42 = vector.broadcast %41 : vector<32x1xf32> to vector<32x2xf32>
      %43 = arith.mulf %42, %37 : vector<32x2xf32>
      %cst_20 = arith.constant dense<0.000000e+00> : vector<2xf32>
      %44 = vector.multi_reduction <add>, %43, %cst_20 [0] : vector<32x2xf32> to vector<2xf32>
      %45 = vector.shape_cast %44 : vector<2xf32> to vector<1x2xf32>
      %cst_21 = arith.constant 0.000000e+00 : f32
      %46 = vector.broadcast %cst_21 : f32 to vector<1x2xf32>
      %47 = arith.cmpf oge, %45, %46 : vector<1x2xf32>
      %48 = vector.broadcast %0 : f32 to vector<1x2xf32>
      %49 = arith.mulf %48, %45 : vector<1x2xf32>
      %50 = arith.select %47, %45, %49 : vector<1x2xi1>, vector<1x2xf32>
      %51 = vector.extract_strided_slice %39 {offsets = [0, 0], sizes = [32, 1], strides = [1, 1]} : vector<32x2xf32> to vector<32x1xf32>
      %52 = vector.extract_strided_slice %50 {offsets = [0, 0], sizes = [1, 1], strides = [1, 1]} : vector<1x2xf32> to vector<1x1xf32>
      %53 = vector.extract_strided_slice %50 {offsets = [0, 1], sizes = [1, 1], strides = [1, 1]} : vector<1x2xf32> to vector<1x1xf32>
      %54 = arith.addf %52, %53 : vector<1x1xf32>
      %55 = vector.broadcast %54 : vector<1x1xf32> to vector<32x1xf32>
      %56 = arith.mulf %51, %55 : vector<32x1xf32>
      %57 = arith.addf %40, %56 : vector<32x1xf32>
      %58 = vector.extract_strided_slice %38 {offsets = [0, 1], sizes = [32, 1], strides = [1, 1]} : vector<32x2xf32> to vector<32x1xf32>
      %59 = vector.broadcast %58 : vector<32x1xf32> to vector<32x2xf32>
      %60 = arith.mulf %59, %37 : vector<32x2xf32>
      %cst_22 = arith.constant dense<0.000000e+00> : vector<2xf32>
      %61 = vector.multi_reduction <add>, %60, %cst_22 [0] : vector<32x2xf32> to vector<2xf32>
      %62 = vector.shape_cast %61 : vector<2xf32> to vector<1x2xf32>
      %cst_23 = arith.constant 0.000000e+00 : f32
      %63 = vector.broadcast %cst_23 : f32 to vector<1x2xf32>
      %64 = arith.cmpf oge, %62, %63 : vector<1x2xf32>
      %65 = vector.broadcast %0 : f32 to vector<1x2xf32>
      %66 = arith.mulf %65, %62 : vector<1x2xf32>
      %67 = arith.select %64, %62, %66 : vector<1x2xi1>, vector<1x2xf32>
      %68 = vector.extract_strided_slice %39 {offsets = [0, 1], sizes = [32, 1], strides = [1, 1]} : vector<32x2xf32> to vector<32x1xf32>
      %69 = vector.extract_strided_slice %67 {offsets = [0, 0], sizes = [1, 1], strides = [1, 1]} : vector<1x2xf32> to vector<1x1xf32>
      %70 = vector.extract_strided_slice %67 {offsets = [0, 1], sizes = [1, 1], strides = [1, 1]} : vector<1x2xf32> to vector<1x1xf32>
      %71 = arith.addf %69, %70 : vector<1x1xf32>
      %72 = vector.broadcast %71 : vector<1x1xf32> to vector<32x1xf32>
      %73 = arith.mulf %68, %72 : vector<32x1xf32>
      %74 = arith.addf %57, %73 : vector<32x1xf32>
      %75 = arith.negf %74 : vector<32x1xf32>
      %76 = math.exp %75 : vector<32x1xf32>
      %cst_24 = arith.constant 1.000000e+00 : f32
      %77 = vector.broadcast %cst_24 : f32 to vector<32x1xf32>
      %78 = arith.addf %77, %76 : vector<32x1xf32>
      %79 = arith.divf %77, %78 : vector<32x1xf32>
      %c0_25 = arith.constant 0 : index
      %c0_26 = arith.constant 0 : index
      %80 = vector.load %arg10[%c0_25, %c0_26] : memref<32x1xf32, #tpu.memory_space<vmem>>, vector<32x1xf32>
      tpu.vector_store %arg10[%c0_25, %c0_26], %79 {strides = array<i32>} : memref<32x1xf32, #tpu.memory_space<vmem>>, vector<32x1xf32>,
      %81 = vector.broadcast %79 : vector<32x1xf32> to vector<32x256xf32>
      %82 = arith.mulf %23, %81 : vector<32x256xf32>
      %cst_27 = arith.constant dense<0.000000e+00> : vector<256xf32>
      %83 = vector.multi_reduction <add>, %82, %cst_27 [0] : vector<32x256xf32> to vector<256xf32>
      %84 = vector.shape_cast %83 : vector<256xf32> to vector<1x256xf32>
      %cst_28 = arith.constant 3.125000e-02 : f32
      %85 = vector.broadcast %cst_28 : f32 to vector<1x256xf32>
      %86 = arith.mulf %84, %85 : vector<1x256xf32>
      %cst_29 = arith.constant dense<0xFF800000> : vector<256xf32>
      %87 = vector.multi_reduction <maximumf>, %82, %cst_29 [0] : vector<32x256xf32> to vector<256xf32>
      %88 = vector.shape_cast %87 : vector<256xf32> to vector<1x256xf32>
      %cst_30 = arith.constant 0.000000e+00 : f32
      %89 = vector.broadcast %cst_30 : f32 to vector<9x128xf32>
      %c0_31 = arith.constant 0 : index
      %c0_32 = arith.constant 0 : index
      %90 = vector.load %arg9[%c0_31, %c0_32] : memref<9x512xf32, #tpu.memory_space<vmem>>, vector<9x128xf32>
      tpu.vector_store %arg9[%c0_31, %c0_32], %89 {strides = array<i32>} : memref<9x512xf32, #tpu.memory_space<vmem>>, vector<9x128xf32>,
      %cst_33 = arith.constant 0.000000e+00 : f32
      %91 = vector.broadcast %cst_33 : f32 to vector<9x128xf32>
      %c0_34 = arith.constant 0 : index
      %c384 = arith.constant 384 : index
      %92 = vector.load %arg9[%c0_34, %c384] : memref<9x512xf32, #tpu.memory_space<vmem>>, vector<9x128xf32>
      tpu.vector_store %arg9[%c0_34, %c384], %91 {strides = array<i32>} : memref<9x512xf32, #tpu.memory_space<vmem>>, vector<9x128xf32>,
      %93 = tpu.iota {dimensions = array<i32: 0>} : vector<2x256xi32>
      %c0_i32_35 = arith.constant 0 : i32
      %94 = vector.broadcast %c0_i32_35 : i32 to vector<2x256xi32>
      %95 = arith.cmpi eq, %93, %94 : vector<2x256xi32>
      %96 = vector.shape_cast %86 : vector<1x256xf32> to vector<1x256xf32>
      %97 = vector.broadcast %96 : vector<1x256xf32> to vector<2x256xf32>
      %98 = vector.shape_cast %88 : vector<1x256xf32> to vector<1x256xf32>
      %99 = vector.broadcast %98 : vector<1x256xf32> to vector<2x256xf32>
      %100 = arith.select %95, %97, %99 : vector<2x256xi1>, vector<2x256xf32>
      %c0_36 = arith.constant 0 : index
      %c128 = arith.constant 128 : index
      %101 = vector.load %arg9[%c0_36, %c128] : memref<9x512xf32, #tpu.memory_space<vmem>>, vector<2x256xf32>
      tpu.vector_store %arg9[%c0_36, %c128], %100 {strides = array<i32>} : memref<9x512xf32, #tpu.memory_space<vmem>>, vector<2x256xf32>,
      %cst_37 = arith.constant 0.000000e+00 : f32
      %102 = vector.broadcast %cst_37 : f32 to vector<1x256xf32>
      %cst_38 = arith.constant 0.000000e+00 : f32
      %103 = vector.broadcast %cst_38 : f32 to vector<1x256xf32>
      %cst_39 = arith.constant 0.000000e+00 : f32
      %104 = vector.broadcast %cst_39 : f32 to vector<1x256xf32>
      %cst_40 = arith.constant 0.000000e+00 : f32
      %105 = vector.broadcast %cst_40 : f32 to vector<1x256xf32>
      %cst_41 = arith.constant 0.000000e+00 : f32
      %106 = vector.broadcast %cst_41 : f32 to vector<1x256xf32>
      %cst_42 = arith.constant 0.000000e+00 : f32
      %107 = vector.broadcast %cst_42 : f32 to vector<1x256xf32>
      %cst_43 = arith.constant 0.000000e+00 : f32
      %108 = vector.broadcast %cst_43 : f32 to vector<1x256xf32>
      %c0_44 = arith.constant 0 : index
      %c80 = arith.constant 80 : index
      %109 = vector.load %arg9[%c0_44, %c80] : memref<9x512xf32, #tpu.memory_space<vmem>>, vector<2x256xf32>
      %110 = vector.extract_strided_slice %109 {offsets = [0, 0], sizes = [1, 256], strides = [1, 1]} : vector<2x256xf32> to vector<1x256xf32>
      %111 = vector.extract_strided_slice %109 {offsets = [1, 0], sizes = [1, 256], strides = [1, 1]} : vector<2x256xf32> to vector<1x256xf32>
      %c0_45 = arith.constant 0 : index
      %112 = memref.load %arg6[%c0_45] : memref<98xf32, #tpu.memory_space<smem>>
      %c49 = arith.constant 49 : index
      %113 = memref.load %arg6[%c49] : memref<98xf32, #tpu.memory_space<smem>>
      %114 = vector.broadcast %112 : f32 to vector<1x256xf32>
      %115 = arith.mulf %114, %110 : vector<1x256xf32>
      %116 = arith.addf %102, %115 : vector<1x256xf32>
      %117 = vector.broadcast %113 : f32 to vector<1x256xf32>
      %118 = arith.mulf %117, %111 : vector<1x256xf32>
      %119 = arith.addf %116, %118 : vector<1x256xf32>
      %c1_46 = arith.constant 1 : index
      %120 = memref.load %arg6[%c1_46] : memref<98xf32, #tpu.memory_space<smem>>
      %c50 = arith.constant 50 : index
      %121 = memref.load %arg6[%c50] : memref<98xf32, #tpu.memory_space<smem>>
      %122 = vector.broadcast %120 : f32 to vector<1x256xf32>
      %123 = arith.mulf %122, %110 : vector<1x256xf32>
      %124 = arith.addf %103, %123 : vector<1x256xf32>
      %125 = vector.broadcast %121 : f32 to vector<1x256xf32>
      %126 = arith.mulf %125, %111 : vector<1x256xf32>
      %127 = arith.addf %124, %126 : vector<1x256xf32>
      %c2_47 = arith.constant 2 : index
      %128 = memref.load %arg6[%c2_47] : memref<98xf32, #tpu.memory_space<smem>>
      %c51 = arith.constant 51 : index
      %129 = memref.load %arg6[%c51] : memref<98xf32, #tpu.memory_space<smem>>
      %130 = vector.broadcast %128 : f32 to vector<1x256xf32>
      %131 = arith.mulf %130, %110 : vector<1x256xf32>
      %132 = arith.addf %104, %131 : vector<1x256xf32>
      %133 = vector.broadcast %129 : f32 to vector<1x256xf32>
      %134 = arith.mulf %133, %111 : vector<1x256xf32>
      %135 = arith.addf %132, %134 : vector<1x256xf32>
      %c3_48 = arith.constant 3 : index
      %136 = memref.load %arg6[%c3_48] : memref<98xf32, #tpu.memory_space<smem>>
      %c52 = arith.constant 52 : index
      %137 = memref.load %arg6[%c52] : memref<98xf32, #tpu.memory_space<smem>>
      %138 = vector.broadcast %136 : f32 to vector<1x256xf32>
      %139 = arith.mulf %138, %110 : vector<1x256xf32>
      %140 = arith.addf %105, %139 : vector<1x256xf32>
      %141 = vector.broadcast %137 : f32 to vector<1x256xf32>
      %142 = arith.mulf %141, %111 : vector<1x256xf32>
      %143 = arith.addf %140, %142 : vector<1x256xf32>
      %c4 = arith.constant 4 : index
      %144 = memref.load %arg6[%c4] : memref<98xf32, #tpu.memory_space<smem>>
      %c53 = arith.constant 53 : index
      %145 = memref.load %arg6[%c53] : memref<98xf32, #tpu.memory_space<smem>>
      %146 = vector.broadcast %144 : f32 to vector<1x256xf32>
      %147 = arith.mulf %146, %110 : vector<1x256xf32>
      %148 = arith.addf %106, %147 : vector<1x256xf32>
      %149 = vector.broadcast %145 : f32 to vector<1x256xf32>
      %150 = arith.mulf %149, %111 : vector<1x256xf32>
      %151 = arith.addf %148, %150 : vector<1x256xf32>
      %c5 = arith.constant 5 : index
      %152 = memref.load %arg6[%c5] : memref<98xf32, #tpu.memory_space<smem>>
      %c54 = arith.constant 54 : index
      %153 = memref.load %arg6[%c54] : memref<98xf32, #tpu.memory_space<smem>>
      %154 = vector.broadcast %152 : f32 to vector<1x256xf32>
      %155 = arith.mulf %154, %110 : vector<1x256xf32>
      %156 = arith.addf %107, %155 : vector<1x256xf32>
      %157 = vector.broadcast %153 : f32 to vector<1x256xf32>
      %158 = arith.mulf %157, %111 : vector<1x256xf32>
      %159 = arith.addf %156, %158 : vector<1x256xf32>
      %c6 = arith.constant 6 : index
      %160 = memref.load %arg6[%c6] : memref<98xf32, #tpu.memory_space<smem>>
      %c55 = arith.constant 55 : index
      %161 = memref.load %arg6[%c55] : memref<98xf32, #tpu.memory_space<smem>>
      %162 = vector.broadcast %160 : f32 to vector<1x256xf32>
      %163 = arith.mulf %162, %110 : vector<1x256xf32>
      %164 = arith.addf %108, %163 : vector<1x256xf32>
      %165 = vector.broadcast %161 : f32 to vector<1x256xf32>
      %166 = arith.mulf %165, %111 : vector<1x256xf32>
      %167 = arith.addf %164, %166 : vector<1x256xf32>
      %c0_49 = arith.constant 0 : index
      %c96 = arith.constant 96 : index
      %168 = vector.load %arg9[%c0_49, %c96] : memref<9x512xf32, #tpu.memory_space<vmem>>, vector<2x256xf32>
      %169 = vector.extract_strided_slice %168 {offsets = [0, 0], sizes = [1, 256], strides = [1, 1]} : vector<2x256xf32> to vector<1x256xf32>
      %170 = vector.extract_strided_slice %168 {offsets = [1, 0], sizes = [1, 256], strides = [1, 1]} : vector<2x256xf32> to vector<1x256xf32>
      %c7 = arith.constant 7 : index
      %171 = memref.load %arg6[%c7] : memref<98xf32, #tpu.memory_space<smem>>
      %c56 = arith.constant 56 : index
      %172 = memref.load %arg6[%c56] : memref<98xf32, #tpu.memory_space<smem>>
      %173 = vector.broadcast %171 : f32 to vector<1x256xf32>
      %174 = arith.mulf %173, %169 : vector<1x256xf32>
      %175 = arith.addf %119, %174 : vector<1x256xf32>
      %176 = vector.broadcast %172 : f32 to vector<1x256xf32>
      %177 = arith.mulf %176, %170 : vector<1x256xf32>
      %178 = arith.addf %175, %177 : vector<1x256xf32>
      %c8 = arith.constant 8 : index
      %179 = memref.load %arg6[%c8] : memref<98xf32, #tpu.memory_space<smem>>
      %c57 = arith.constant 57 : index
      %180 = memref.load %arg6[%c57] : memref<98xf32, #tpu.memory_space<smem>>
      %181 = vector.broadcast %179 : f32 to vector<1x256xf32>
      %182 = arith.mulf %181, %169 : vector<1x256xf32>
      %183 = arith.addf %127, %182 : vector<1x256xf32>
      %184 = vector.broadcast %180 : f32 to vector<1x256xf32>
      %185 = arith.mulf %184, %170 : vector<1x256xf32>
      %186 = arith.addf %183, %185 : vector<1x256xf32>
      %c9 = arith.constant 9 : index
      %187 = memref.load %arg6[%c9] : memref<98xf32, #tpu.memory_space<smem>>
      %c58 = arith.constant 58 : index
      %188 = memref.load %arg6[%c58] : memref<98xf32, #tpu.memory_space<smem>>
      %189 = vector.broadcast %187 : f32 to vector<1x256xf32>
      %190 = arith.mulf %189, %169 : vector<1x256xf32>
      %191 = arith.addf %135, %190 : vector<1x256xf32>
      %192 = vector.broadcast %188 : f32 to vector<1x256xf32>
      %193 = arith.mulf %192, %170 : vector<1x256xf32>
      %194 = arith.addf %191, %193 : vector<1x256xf32>
      %c10 = arith.constant 10 : index
      %195 = memref.load %arg6[%c10] : memref<98xf32, #tpu.memory_space<smem>>
      %c59 = arith.constant 59 : index
      %196 = memref.load %arg6[%c59] : memref<98xf32, #tpu.memory_space<smem>>
      %197 = vector.broadcast %195 : f32 to vector<1x256xf32>
      %198 = arith.mulf %197, %169 : vector<1x256xf32>
      %199 = arith.addf %143, %198 : vector<1x256xf32>
      %200 = vector.broadcast %196 : f32 to vector<1x256xf32>
      %201 = arith.mulf %200, %170 : vector<1x256xf32>
      %202 = arith.addf %199, %201 : vector<1x256xf32>
      %c11 = arith.constant 11 : index
      %203 = memref.load %arg6[%c11] : memref<98xf32, #tpu.memory_space<smem>>
      %c60 = arith.constant 60 : index
      %204 = memref.load %arg6[%c60] : memref<98xf32, #tpu.memory_space<smem>>
      %205 = vector.broadcast %203 : f32 to vector<1x256xf32>
      %206 = arith.mulf %205, %169 : vector<1x256xf32>
      %207 = arith.addf %151, %206 : vector<1x256xf32>
      %208 = vector.broadcast %204 : f32 to vector<1x256xf32>
      %209 = arith.mulf %208, %170 : vector<1x256xf32>
      %210 = arith.addf %207, %209 : vector<1x256xf32>
      %c12 = arith.constant 12 : index
      %211 = memref.load %arg6[%c12] : memref<98xf32, #tpu.memory_space<smem>>
      %c61 = arith.constant 61 : index
      %212 = memref.load %arg6[%c61] : memref<98xf32, #tpu.memory_space<smem>>
      %213 = vector.broadcast %211 : f32 to vector<1x256xf32>
      %214 = arith.mulf %213, %169 : vector<1x256xf32>
      %215 = arith.addf %159, %214 : vector<1x256xf32>
      %216 = vector.broadcast %212 : f32 to vector<1x256xf32>
      %217 = arith.mulf %216, %170 : vector<1x256xf32>
      %218 = arith.addf %215, %217 : vector<1x256xf32>
      %c13 = arith.constant 13 : index
      %219 = memref.load %arg6[%c13] : memref<98xf32, #tpu.memory_space<smem>>
      %c62 = arith.constant 62 : index
      %220 = memref.load %arg6[%c62] : memref<98xf32, #tpu.memory_space<smem>>
      %221 = vector.broadcast %219 : f32 to vector<1x256xf32>
      %222 = arith.mulf %221, %169 : vector<1x256xf32>
      %223 = arith.addf %167, %222 : vector<1x256xf32>
      %224 = vector.broadcast %220 : f32 to vector<1x256xf32>
      %225 = arith.mulf %224, %170 : vector<1x256xf32>
      %226 = arith.addf %223, %225 : vector<1x256xf32>
      %c0_50 = arith.constant 0 : index
      %c112 = arith.constant 112 : index
      %227 = vector.load %arg9[%c0_50, %c112] : memref<9x512xf32, #tpu.memory_space<vmem>>, vector<2x256xf32>
      %228 = vector.extract_strided_slice %227 {offsets = [0, 0], sizes = [1, 256], strides = [1, 1]} : vector<2x256xf32> to vector<1x256xf32>
      %229 = vector.extract_strided_slice %227 {offsets = [1, 0], sizes = [1, 256], strides = [1, 1]} : vector<2x256xf32> to vector<1x256xf32>
      %c14 = arith.constant 14 : index
      %230 = memref.load %arg6[%c14] : memref<98xf32, #tpu.memory_space<smem>>
      %c63 = arith.constant 63 : index
      %231 = memref.load %arg6[%c63] : memref<98xf32, #tpu.memory_space<smem>>
      %232 = vector.broadcast %230 : f32 to vector<1x256xf32>
      %233 = arith.mulf %232, %228 : vector<1x256xf32>
      %234 = arith.addf %178, %233 : vector<1x256xf32>
      %235 = vector.broadcast %231 : f32 to vector<1x256xf32>
      %236 = arith.mulf %235, %229 : vector<1x256xf32>
      %237 = arith.addf %234, %236 : vector<1x256xf32>
      %c15 = arith.constant 15 : index
      %238 = memref.load %arg6[%c15] : memref<98xf32, #tpu.memory_space<smem>>
      %c64 = arith.constant 64 : index
      %239 = memref.load %arg6[%c64] : memref<98xf32, #tpu.memory_space<smem>>
      %240 = vector.broadcast %238 : f32 to vector<1x256xf32>
      %241 = arith.mulf %240, %228 : vector<1x256xf32>
      %242 = arith.addf %186, %241 : vector<1x256xf32>
      %243 = vector.broadcast %239 : f32 to vector<1x256xf32>
      %244 = arith.mulf %243, %229 : vector<1x256xf32>
      %245 = arith.addf %242, %244 : vector<1x256xf32>
      %c16 = arith.constant 16 : index
      %246 = memref.load %arg6[%c16] : memref<98xf32, #tpu.memory_space<smem>>
      %c65 = arith.constant 65 : index
      %247 = memref.load %arg6[%c65] : memref<98xf32, #tpu.memory_space<smem>>
      %248 = vector.broadcast %246 : f32 to vector<1x256xf32>
      %249 = arith.mulf %248, %228 : vector<1x256xf32>
      %250 = arith.addf %194, %249 : vector<1x256xf32>
      %251 = vector.broadcast %247 : f32 to vector<1x256xf32>
      %252 = arith.mulf %251, %229 : vector<1x256xf32>
      %253 = arith.addf %250, %252 : vector<1x256xf32>
      %c17 = arith.constant 17 : index
      %254 = memref.load %arg6[%c17] : memref<98xf32, #tpu.memory_space<smem>>
      %c66 = arith.constant 66 : index
      %255 = memref.load %arg6[%c66] : memref<98xf32, #tpu.memory_space<smem>>
      %256 = vector.broadcast %254 : f32 to vector<1x256xf32>
      %257 = arith.mulf %256, %228 : vector<1x256xf32>
      %258 = arith.addf %202, %257 : vector<1x256xf32>
      %259 = vector.broadcast %255 : f32 to vector<1x256xf32>
      %260 = arith.mulf %259, %229 : vector<1x256xf32>
      %261 = arith.addf %258, %260 : vector<1x256xf32>
      %c18 = arith.constant 18 : index
      %262 = memref.load %arg6[%c18] : memref<98xf32, #tpu.memory_space<smem>>
      %c67 = arith.constant 67 : index
      %263 = memref.load %arg6[%c67] : memref<98xf32, #tpu.memory_space<smem>>
      %264 = vector.broadcast %262 : f32 to vector<1x256xf32>
      %265 = arith.mulf %264, %228 : vector<1x256xf32>
      %266 = arith.addf %210, %265 : vector<1x256xf32>
      %267 = vector.broadcast %263 : f32 to vector<1x256xf32>
      %268 = arith.mulf %267, %229 : vector<1x256xf32>
      %269 = arith.addf %266, %268 : vector<1x256xf32>
      %c19 = arith.constant 19 : index
      %270 = memref.load %arg6[%c19] : memref<98xf32, #tpu.memory_space<smem>>
      %c68 = arith.constant 68 : index
      %271 = memref.load %arg6[%c68] : memref<98xf32, #tpu.memory_space<smem>>
      %272 = vector.broadcast %270 : f32 to vector<1x256xf32>
      %273 = arith.mulf %272, %228 : vector<1x256xf32>
      %274 = arith.addf %218, %273 : vector<1x256xf32>
      %275 = vector.broadcast %271 : f32 to vector<1x256xf32>
      %276 = arith.mulf %275, %229 : vector<1x256xf32>
      %277 = arith.addf %274, %276 : vector<1x256xf32>
      %c20 = arith.constant 20 : index
      %278 = memref.load %arg6[%c20] : memref<98xf32, #tpu.memory_space<smem>>
      %c69 = arith.constant 69 : index
      %279 = memref.load %arg6[%c69] : memref<98xf32, #tpu.memory_space<smem>>
      %280 = vector.broadcast %278 : f32 to vector<1x256xf32>
      %281 = arith.mulf %280, %228 : vector<1x256xf32>
      %282 = arith.addf %226, %281 : vector<1x256xf32>
      %283 = vector.broadcast %279 : f32 to vector<1x256xf32>
      %284 = arith.mulf %283, %229 : vector<1x256xf32>
      %285 = arith.addf %282, %284 : vector<1x256xf32>
      %c0_51 = arith.constant 0 : index
      %c128_52 = arith.constant 128 : index
      %286 = vector.load %arg9[%c0_51, %c128_52] : memref<9x512xf32, #tpu.memory_space<vmem>>, vector<2x256xf32>
      %287 = vector.extract_strided_slice %286 {offsets = [0, 0], sizes = [1, 256], strides = [1, 1]} : vector<2x256xf32> to vector<1x256xf32>
      %288 = vector.extract_strided_slice %286 {offsets = [1, 0], sizes = [1, 256], strides = [1, 1]} : vector<2x256xf32> to vector<1x256xf32>
      %c21 = arith.constant 21 : index
      %289 = memref.load %arg6[%c21] : memref<98xf32, #tpu.memory_space<smem>>
      %c70 = arith.constant 70 : index
      %290 = memref.load %arg6[%c70] : memref<98xf32, #tpu.memory_space<smem>>
      %291 = vector.broadcast %289 : f32 to vector<1x256xf32>
      %292 = arith.mulf %291, %287 : vector<1x256xf32>
      %293 = arith.addf %237, %292 : vector<1x256xf32>
      %294 = vector.broadcast %290 : f32 to vector<1x256xf32>
      %295 = arith.mulf %294, %288 : vector<1x256xf32>
      %296 = arith.addf %293, %295 : vector<1x256xf32>
      %c22 = arith.constant 22 : index
      %297 = memref.load %arg6[%c22] : memref<98xf32, #tpu.memory_space<smem>>
      %c71 = arith.constant 71 : index
      %298 = memref.load %arg6[%c71] : memref<98xf32, #tpu.memory_space<smem>>
      %299 = vector.broadcast %297 : f32 to vector<1x256xf32>
      %300 = arith.mulf %299, %287 : vector<1x256xf32>
      %301 = arith.addf %245, %300 : vector<1x256xf32>
      %302 = vector.broadcast %298 : f32 to vector<1x256xf32>
      %303 = arith.mulf %302, %288 : vector<1x256xf32>
      %304 = arith.addf %301, %303 : vector<1x256xf32>
      %c23 = arith.constant 23 : index
      %305 = memref.load %arg6[%c23] : memref<98xf32, #tpu.memory_space<smem>>
      %c72 = arith.constant 72 : index
      %306 = memref.load %arg6[%c72] : memref<98xf32, #tpu.memory_space<smem>>
      %307 = vector.broadcast %305 : f32 to vector<1x256xf32>
      %308 = arith.mulf %307, %287 : vector<1x256xf32>
      %309 = arith.addf %253, %308 : vector<1x256xf32>
      %310 = vector.broadcast %306 : f32 to vector<1x256xf32>
      %311 = arith.mulf %310, %288 : vector<1x256xf32>
      %312 = arith.addf %309, %311 : vector<1x256xf32>
      %c24 = arith.constant 24 : index
      %313 = memref.load %arg6[%c24] : memref<98xf32, #tpu.memory_space<smem>>
      %c73 = arith.constant 73 : index
      %314 = memref.load %arg6[%c73] : memref<98xf32, #tpu.memory_space<smem>>
      %315 = vector.broadcast %313 : f32 to vector<1x256xf32>
      %316 = arith.mulf %315, %287 : vector<1x256xf32>
      %317 = arith.addf %261, %316 : vector<1x256xf32>
      %318 = vector.broadcast %314 : f32 to vector<1x256xf32>
      %319 = arith.mulf %318, %288 : vector<1x256xf32>
      %320 = arith.addf %317, %319 : vector<1x256xf32>
      %c25 = arith.constant 25 : index
      %321 = memref.load %arg6[%c25] : memref<98xf32, #tpu.memory_space<smem>>
      %c74 = arith.constant 74 : index
      %322 = memref.load %arg6[%c74] : memref<98xf32, #tpu.memory_space<smem>>
      %323 = vector.broadcast %321 : f32 to vector<1x256xf32>
      %324 = arith.mulf %323, %287 : vector<1x256xf32>
      %325 = arith.addf %269, %324 : vector<1x256xf32>
      %326 = vector.broadcast %322 : f32 to vector<1x256xf32>
      %327 = arith.mulf %326, %288 : vector<1x256xf32>
      %328 = arith.addf %325, %327 : vector<1x256xf32>
      %c26 = arith.constant 26 : index
      %329 = memref.load %arg6[%c26] : memref<98xf32, #tpu.memory_space<smem>>
      %c75 = arith.constant 75 : index
      %330 = memref.load %arg6[%c75] : memref<98xf32, #tpu.memory_space<smem>>
      %331 = vector.broadcast %329 : f32 to vector<1x256xf32>
      %332 = arith.mulf %331, %287 : vector<1x256xf32>
      %333 = arith.addf %277, %332 : vector<1x256xf32>
      %334 = vector.broadcast %330 : f32 to vector<1x256xf32>
      %335 = arith.mulf %334, %288 : vector<1x256xf32>
      %336 = arith.addf %333, %335 : vector<1x256xf32>
      %c27 = arith.constant 27 : index
      %337 = memref.load %arg6[%c27] : memref<98xf32, #tpu.memory_space<smem>>
      %c76 = arith.constant 76 : index
      %338 = memref.load %arg6[%c76] : memref<98xf32, #tpu.memory_space<smem>>
      %339 = vector.broadcast %337 : f32 to vector<1x256xf32>
      %340 = arith.mulf %339, %287 : vector<1x256xf32>
      %341 = arith.addf %285, %340 : vector<1x256xf32>
      %342 = vector.broadcast %338 : f32 to vector<1x256xf32>
      %343 = arith.mulf %342, %288 : vector<1x256xf32>
      %344 = arith.addf %341, %343 : vector<1x256xf32>
      %c0_53 = arith.constant 0 : index
      %c144 = arith.constant 144 : index
      %345 = vector.load %arg9[%c0_53, %c144] : memref<9x512xf32, #tpu.memory_space<vmem>>, vector<2x256xf32>
      %346 = vector.extract_strided_slice %345 {offsets = [0, 0], sizes = [1, 256], strides = [1, 1]} : vector<2x256xf32> to vector<1x256xf32>
      %347 = vector.extract_strided_slice %345 {offsets = [1, 0], sizes = [1, 256], strides = [1, 1]} : vector<2x256xf32> to vector<1x256xf32>
      %c28 = arith.constant 28 : index
      %348 = memref.load %arg6[%c28] : memref<98xf32, #tpu.memory_space<smem>>
      %c77 = arith.constant 77 : index
      %349 = memref.load %arg6[%c77] : memref<98xf32, #tpu.memory_space<smem>>
      %350 = vector.broadcast %348 : f32 to vector<1x256xf32>
      %351 = arith.mulf %350, %346 : vector<1x256xf32>
      %352 = arith.addf %296, %351 : vector<1x256xf32>
      %353 = vector.broadcast %349 : f32 to vector<1x256xf32>
      %354 = arith.mulf %353, %347 : vector<1x256xf32>
      %355 = arith.addf %352, %354 : vector<1x256xf32>
      %c29 = arith.constant 29 : index
      %356 = memref.load %arg6[%c29] : memref<98xf32, #tpu.memory_space<smem>>
      %c78 = arith.constant 78 : index
      %357 = memref.load %arg6[%c78] : memref<98xf32, #tpu.memory_space<smem>>
      %358 = vector.broadcast %356 : f32 to vector<1x256xf32>
      %359 = arith.mulf %358, %346 : vector<1x256xf32>
      %360 = arith.addf %304, %359 : vector<1x256xf32>
      %361 = vector.broadcast %357 : f32 to vector<1x256xf32>
      %362 = arith.mulf %361, %347 : vector<1x256xf32>
      %363 = arith.addf %360, %362 : vector<1x256xf32>
      %c30 = arith.constant 30 : index
      %364 = memref.load %arg6[%c30] : memref<98xf32, #tpu.memory_space<smem>>
      %c79 = arith.constant 79 : index
      %365 = memref.load %arg6[%c79] : memref<98xf32, #tpu.memory_space<smem>>
      %366 = vector.broadcast %364 : f32 to vector<1x256xf32>
      %367 = arith.mulf %366, %346 : vector<1x256xf32>
      %368 = arith.addf %312, %367 : vector<1x256xf32>
      %369 = vector.broadcast %365 : f32 to vector<1x256xf32>
      %370 = arith.mulf %369, %347 : vector<1x256xf32>
      %371 = arith.addf %368, %370 : vector<1x256xf32>
      %c31 = arith.constant 31 : index
      %372 = memref.load %arg6[%c31] : memref<98xf32, #tpu.memory_space<smem>>
      %c80_54 = arith.constant 80 : index
      %373 = memref.load %arg6[%c80_54] : memref<98xf32, #tpu.memory_space<smem>>
      %374 = vector.broadcast %372 : f32 to vector<1x256xf32>
      %375 = arith.mulf %374, %346 : vector<1x256xf32>
      %376 = arith.addf %320, %375 : vector<1x256xf32>
      %377 = vector.broadcast %373 : f32 to vector<1x256xf32>
      %378 = arith.mulf %377, %347 : vector<1x256xf32>
      %379 = arith.addf %376, %378 : vector<1x256xf32>
      %c32 = arith.constant 32 : index
      %380 = memref.load %arg6[%c32] : memref<98xf32, #tpu.memory_space<smem>>
      %c81 = arith.constant 81 : index
      %381 = memref.load %arg6[%c81] : memref<98xf32, #tpu.memory_space<smem>>
      %382 = vector.broadcast %380 : f32 to vector<1x256xf32>
      %383 = arith.mulf %382, %346 : vector<1x256xf32>
      %384 = arith.addf %328, %383 : vector<1x256xf32>
      %385 = vector.broadcast %381 : f32 to vector<1x256xf32>
      %386 = arith.mulf %385, %347 : vector<1x256xf32>
      %387 = arith.addf %384, %386 : vector<1x256xf32>
      %c33 = arith.constant 33 : index
      %388 = memref.load %arg6[%c33] : memref<98xf32, #tpu.memory_space<smem>>
      %c82 = arith.constant 82 : index
      %389 = memref.load %arg6[%c82] : memref<98xf32, #tpu.memory_space<smem>>
      %390 = vector.broadcast %388 : f32 to vector<1x256xf32>
      %391 = arith.mulf %390, %346 : vector<1x256xf32>
      %392 = arith.addf %336, %391 : vector<1x256xf32>
      %393 = vector.broadcast %389 : f32 to vector<1x256xf32>
      %394 = arith.mulf %393, %347 : vector<1x256xf32>
      %395 = arith.addf %392, %394 : vector<1x256xf32>
      %c34 = arith.constant 34 : index
      %396 = memref.load %arg6[%c34] : memref<98xf32, #tpu.memory_space<smem>>
      %c83 = arith.constant 83 : index
      %397 = memref.load %arg6[%c83] : memref<98xf32, #tpu.memory_space<smem>>
      %398 = vector.broadcast %396 : f32 to vector<1x256xf32>
      %399 = arith.mulf %398, %346 : vector<1x256xf32>
      %400 = arith.addf %344, %399 : vector<1x256xf32>
      %401 = vector.broadcast %397 : f32 to vector<1x256xf32>
      %402 = arith.mulf %401, %347 : vector<1x256xf32>
      %403 = arith.addf %400, %402 : vector<1x256xf32>
      %c0_55 = arith.constant 0 : index
      %c160 = arith.constant 160 : index
      %404 = vector.load %arg9[%c0_55, %c160] : memref<9x512xf32, #tpu.memory_space<vmem>>, vector<2x256xf32>
      %405 = vector.extract_strided_slice %404 {offsets = [0, 0], sizes = [1, 256], strides = [1, 1]} : vector<2x256xf32> to vector<1x256xf32>
      %406 = vector.extract_strided_slice %404 {offsets = [1, 0], sizes = [1, 256], strides = [1, 1]} : vector<2x256xf32> to vector<1x256xf32>
      %c35 = arith.constant 35 : index
      %407 = memref.load %arg6[%c35] : memref<98xf32, #tpu.memory_space<smem>>
      %c84 = arith.constant 84 : index
      %408 = memref.load %arg6[%c84] : memref<98xf32, #tpu.memory_space<smem>>
      %409 = vector.broadcast %407 : f32 to vector<1x256xf32>
      %410 = arith.mulf %409, %405 : vector<1x256xf32>
      %411 = arith.addf %355, %410 : vector<1x256xf32>
      %412 = vector.broadcast %408 : f32 to vector<1x256xf32>
      %413 = arith.mulf %412, %406 : vector<1x256xf32>
      %414 = arith.addf %411, %413 : vector<1x256xf32>
      %c36 = arith.constant 36 : index
      %415 = memref.load %arg6[%c36] : memref<98xf32, #tpu.memory_space<smem>>
      %c85 = arith.constant 85 : index
      %416 = memref.load %arg6[%c85] : memref<98xf32, #tpu.memory_space<smem>>
      %417 = vector.broadcast %415 : f32 to vector<1x256xf32>
      %418 = arith.mulf %417, %405 : vector<1x256xf32>
      %419 = arith.addf %363, %418 : vector<1x256xf32>
      %420 = vector.broadcast %416 : f32 to vector<1x256xf32>
      %421 = arith.mulf %420, %406 : vector<1x256xf32>
      %422 = arith.addf %419, %421 : vector<1x256xf32>
      %c37 = arith.constant 37 : index
      %423 = memref.load %arg6[%c37] : memref<98xf32, #tpu.memory_space<smem>>
      %c86 = arith.constant 86 : index
      %424 = memref.load %arg6[%c86] : memref<98xf32, #tpu.memory_space<smem>>
      %425 = vector.broadcast %423 : f32 to vector<1x256xf32>
      %426 = arith.mulf %425, %405 : vector<1x256xf32>
      %427 = arith.addf %371, %426 : vector<1x256xf32>
      %428 = vector.broadcast %424 : f32 to vector<1x256xf32>
      %429 = arith.mulf %428, %406 : vector<1x256xf32>
      %430 = arith.addf %427, %429 : vector<1x256xf32>
      %c38 = arith.constant 38 : index
      %431 = memref.load %arg6[%c38] : memref<98xf32, #tpu.memory_space<smem>>
      %c87 = arith.constant 87 : index
      %432 = memref.load %arg6[%c87] : memref<98xf32, #tpu.memory_space<smem>>
      %433 = vector.broadcast %431 : f32 to vector<1x256xf32>
      %434 = arith.mulf %433, %405 : vector<1x256xf32>
      %435 = arith.addf %379, %434 : vector<1x256xf32>
      %436 = vector.broadcast %432 : f32 to vector<1x256xf32>
      %437 = arith.mulf %436, %406 : vector<1x256xf32>
      %438 = arith.addf %435, %437 : vector<1x256xf32>
      %c39 = arith.constant 39 : index
      %439 = memref.load %arg6[%c39] : memref<98xf32, #tpu.memory_space<smem>>
      %c88 = arith.constant 88 : index
      %440 = memref.load %arg6[%c88] : memref<98xf32, #tpu.memory_space<smem>>
      %441 = vector.broadcast %439 : f32 to vector<1x256xf32>
      %442 = arith.mulf %441, %405 : vector<1x256xf32>
      %443 = arith.addf %387, %442 : vector<1x256xf32>
      %444 = vector.broadcast %440 : f32 to vector<1x256xf32>
      %445 = arith.mulf %444, %406 : vector<1x256xf32>
      %446 = arith.addf %443, %445 : vector<1x256xf32>
      %c40 = arith.constant 40 : index
      %447 = memref.load %arg6[%c40] : memref<98xf32, #tpu.memory_space<smem>>
      %c89 = arith.constant 89 : index
      %448 = memref.load %arg6[%c89] : memref<98xf32, #tpu.memory_space<smem>>
      %449 = vector.broadcast %447 : f32 to vector<1x256xf32>
      %450 = arith.mulf %449, %405 : vector<1x256xf32>
      %451 = arith.addf %395, %450 : vector<1x256xf32>
      %452 = vector.broadcast %448 : f32 to vector<1x256xf32>
      %453 = arith.mulf %452, %406 : vector<1x256xf32>
      %454 = arith.addf %451, %453 : vector<1x256xf32>
      %c41 = arith.constant 41 : index
      %455 = memref.load %arg6[%c41] : memref<98xf32, #tpu.memory_space<smem>>
      %c90 = arith.constant 90 : index
      %456 = memref.load %arg6[%c90] : memref<98xf32, #tpu.memory_space<smem>>
      %457 = vector.broadcast %455 : f32 to vector<1x256xf32>
      %458 = arith.mulf %457, %405 : vector<1x256xf32>
      %459 = arith.addf %403, %458 : vector<1x256xf32>
      %460 = vector.broadcast %456 : f32 to vector<1x256xf32>
      %461 = arith.mulf %460, %406 : vector<1x256xf32>
      %462 = arith.addf %459, %461 : vector<1x256xf32>
      %c0_56 = arith.constant 0 : index
      %c176 = arith.constant 176 : index
      %463 = vector.load %arg9[%c0_56, %c176] : memref<9x512xf32, #tpu.memory_space<vmem>>, vector<2x256xf32>
      %464 = vector.extract_strided_slice %463 {offsets = [0, 0], sizes = [1, 256], strides = [1, 1]} : vector<2x256xf32> to vector<1x256xf32>
      %465 = vector.extract_strided_slice %463 {offsets = [1, 0], sizes = [1, 256], strides = [1, 1]} : vector<2x256xf32> to vector<1x256xf32>
      %c42 = arith.constant 42 : index
      %466 = memref.load %arg6[%c42] : memref<98xf32, #tpu.memory_space<smem>>
      %c91 = arith.constant 91 : index
      %467 = memref.load %arg6[%c91] : memref<98xf32, #tpu.memory_space<smem>>
      %468 = vector.broadcast %466 : f32 to vector<1x256xf32>
      %469 = arith.mulf %468, %464 : vector<1x256xf32>
      %470 = arith.addf %414, %469 : vector<1x256xf32>
      %471 = vector.broadcast %467 : f32 to vector<1x256xf32>
      %472 = arith.mulf %471, %465 : vector<1x256xf32>
      %473 = arith.addf %470, %472 : vector<1x256xf32>
      %c43 = arith.constant 43 : index
      %474 = memref.load %arg6[%c43] : memref<98xf32, #tpu.memory_space<smem>>
      %c92 = arith.constant 92 : index
      %475 = memref.load %arg6[%c92] : memref<98xf32, #tpu.memory_space<smem>>
      %476 = vector.broadcast %474 : f32 to vector<1x256xf32>
      %477 = arith.mulf %476, %464 : vector<1x256xf32>
      %478 = arith.addf %422, %477 : vector<1x256xf32>
      %479 = vector.broadcast %475 : f32 to vector<1x256xf32>
      %480 = arith.mulf %479, %465 : vector<1x256xf32>
      %481 = arith.addf %478, %480 : vector<1x256xf32>
      %c44 = arith.constant 44 : index
      %482 = memref.load %arg6[%c44] : memref<98xf32, #tpu.memory_space<smem>>
      %c93 = arith.constant 93 : index
      %483 = memref.load %arg6[%c93] : memref<98xf32, #tpu.memory_space<smem>>
      %484 = vector.broadcast %482 : f32 to vector<1x256xf32>
      %485 = arith.mulf %484, %464 : vector<1x256xf32>
      %486 = arith.addf %430, %485 : vector<1x256xf32>
      %487 = vector.broadcast %483 : f32 to vector<1x256xf32>
      %488 = arith.mulf %487, %465 : vector<1x256xf32>
      %489 = arith.addf %486, %488 : vector<1x256xf32>
      %c45 = arith.constant 45 : index
      %490 = memref.load %arg6[%c45] : memref<98xf32, #tpu.memory_space<smem>>
      %c94 = arith.constant 94 : index
      %491 = memref.load %arg6[%c94] : memref<98xf32, #tpu.memory_space<smem>>
      %492 = vector.broadcast %490 : f32 to vector<1x256xf32>
      %493 = arith.mulf %492, %464 : vector<1x256xf32>
      %494 = arith.addf %438, %493 : vector<1x256xf32>
      %495 = vector.broadcast %491 : f32 to vector<1x256xf32>
      %496 = arith.mulf %495, %465 : vector<1x256xf32>
      %497 = arith.addf %494, %496 : vector<1x256xf32>
      %c46 = arith.constant 46 : index
      %498 = memref.load %arg6[%c46] : memref<98xf32, #tpu.memory_space<smem>>
      %c95 = arith.constant 95 : index
      %499 = memref.load %arg6[%c95] : memref<98xf32, #tpu.memory_space<smem>>
      %500 = vector.broadcast %498 : f32 to vector<1x256xf32>
      %501 = arith.mulf %500, %464 : vector<1x256xf32>
      %502 = arith.addf %446, %501 : vector<1x256xf32>
      %503 = vector.broadcast %499 : f32 to vector<1x256xf32>
      %504 = arith.mulf %503, %465 : vector<1x256xf32>
      %505 = arith.addf %502, %504 : vector<1x256xf32>
      %c47 = arith.constant 47 : index
      %506 = memref.load %arg6[%c47] : memref<98xf32, #tpu.memory_space<smem>>
      %c96_57 = arith.constant 96 : index
      %507 = memref.load %arg6[%c96_57] : memref<98xf32, #tpu.memory_space<smem>>
      %508 = vector.broadcast %506 : f32 to vector<1x256xf32>
      %509 = arith.mulf %508, %464 : vector<1x256xf32>
      %510 = arith.addf %454, %509 : vector<1x256xf32>
      %511 = vector.broadcast %507 : f32 to vector<1x256xf32>
      %512 = arith.mulf %511, %465 : vector<1x256xf32>
      %513 = arith.addf %510, %512 : vector<1x256xf32>
      %c48 = arith.constant 48 : index
      %514 = memref.load %arg6[%c48] : memref<98xf32, #tpu.memory_space<smem>>
      %c97 = arith.constant 97 : index
      %515 = memref.load %arg6[%c97] : memref<98xf32, #tpu.memory_space<smem>>
      %516 = vector.broadcast %514 : f32 to vector<1x256xf32>
      %517 = arith.mulf %516, %464 : vector<1x256xf32>
      %518 = arith.addf %462, %517 : vector<1x256xf32>
      %519 = vector.broadcast %515 : f32 to vector<1x256xf32>
      %520 = arith.mulf %519, %465 : vector<1x256xf32>
      %521 = arith.addf %518, %520 : vector<1x256xf32>
      %c2_58 = arith.constant 2 : index
      %c128_59 = arith.constant 128 : index
      %522 = vector.load %arg9[%c2_58, %c128_59] : memref<9x512xf32, #tpu.memory_space<vmem>>, vector<1x256xf32>
      tpu.vector_store %arg9[%c2_58, %c128_59], %473 {strides = array<i32>} : memref<9x512xf32, #tpu.memory_space<vmem>>, vector<1x256xf32>,
      %c3_60 = arith.constant 3 : index
      %c128_61 = arith.constant 128 : index
      %523 = vector.load %arg9[%c3_60, %c128_61] : memref<9x512xf32, #tpu.memory_space<vmem>>, vector<1x256xf32>
      tpu.vector_store %arg9[%c3_60, %c128_61], %481 {strides = array<i32>} : memref<9x512xf32, #tpu.memory_space<vmem>>, vector<1x256xf32>,
      %c4_62 = arith.constant 4 : index
      %c128_63 = arith.constant 128 : index
      %524 = vector.load %arg9[%c4_62, %c128_63] : memref<9x512xf32, #tpu.memory_space<vmem>>, vector<1x256xf32>
      tpu.vector_store %arg9[%c4_62, %c128_63], %489 {strides = array<i32>} : memref<9x512xf32, #tpu.memory_space<vmem>>, vector<1x256xf32>,
      %c6_64 = arith.constant 6 : index
      %c128_65 = arith.constant 128 : index
      %525 = vector.load %arg9[%c6_64, %c128_65] : memref<9x512xf32, #tpu.memory_space<vmem>>, vector<1x256xf32>
      tpu.vector_store %arg9[%c6_64, %c128_65], %505 {strides = array<i32>} : memref<9x512xf32, #tpu.memory_space<vmem>>, vector<1x256xf32>,
      %c7_66 = arith.constant 7 : index
      %c128_67 = arith.constant 128 : index
      %526 = vector.load %arg9[%c7_66, %c128_67] : memref<9x512xf32, #tpu.memory_space<vmem>>, vector<1x256xf32>
      tpu.vector_store %arg9[%c7_66, %c128_67], %513 {strides = array<i32>} : memref<9x512xf32, #tpu.memory_space<vmem>>, vector<1x256xf32>,
      %c8_68 = arith.constant 8 : index
      %c128_69 = arith.constant 128 : index
      %527 = vector.load %arg9[%c8_68, %c128_69] : memref<9x512xf32, #tpu.memory_space<vmem>>, vector<1x256xf32>
      tpu.vector_store %arg9[%c8_68, %c128_69], %521 {strides = array<i32>} : memref<9x512xf32, #tpu.memory_space<vmem>>, vector<1x256xf32>,
      %c2_70 = arith.constant 2 : index
      %c125 = arith.constant 125 : index
      %528 = vector.load %arg9[%c2_70, %c125] : memref<9x512xf32, #tpu.memory_space<vmem>>, vector<1x256xf32>
      %c0_71 = arith.constant 0 : index
      %c0_72 = arith.constant 0 : index
      %529 = vector.load %arg5[%c0_71, %c0_72] : memref<7x256xf32, #tpu.memory_space<vmem>>, vector<1x256xf32>
      %530 = arith.mulf %529, %528 : vector<1x256xf32>
      %531 = arith.addf %497, %530 : vector<1x256xf32>
      %c3_73 = arith.constant 3 : index
      %c126 = arith.constant 126 : index
      %532 = vector.load %arg9[%c3_73, %c126] : memref<9x512xf32, #tpu.memory_space<vmem>>, vector<1x256xf32>
      %c1_74 = arith.constant 1 : index
      %c0_75 = arith.constant 0 : index
      %533 = vector.load %arg5[%c1_74, %c0_75] : memref<7x256xf32, #tpu.memory_space<vmem>>, vector<1x256xf32>
      %534 = arith.mulf %533, %532 : vector<1x256xf32>
      %535 = arith.addf %531, %534 : vector<1x256xf32>
      %c4_76 = arith.constant 4 : index
      %c127 = arith.constant 127 : index
      %536 = vector.load %arg9[%c4_76, %c127] : memref<9x512xf32, #tpu.memory_space<vmem>>, vector<1x256xf32>
      %c2_77 = arith.constant 2 : index
      %c0_78 = arith.constant 0 : index
      %537 = vector.load %arg5[%c2_77, %c0_78] : memref<7x256xf32, #tpu.memory_space<vmem>>, vector<1x256xf32>
      %538 = arith.mulf %537, %536 : vector<1x256xf32>
      %539 = arith.addf %535, %538 : vector<1x256xf32>
      %c6_79 = arith.constant 6 : index
      %c129 = arith.constant 129 : index
      %540 = vector.load %arg9[%c6_79, %c129] : memref<9x512xf32, #tpu.memory_space<vmem>>, vector<1x256xf32>
      %c4_80 = arith.constant 4 : index
      %c0_81 = arith.constant 0 : index
      %541 = vector.load %arg5[%c4_80, %c0_81] : memref<7x256xf32, #tpu.memory_space<vmem>>, vector<1x256xf32>
      %542 = arith.mulf %541, %540 : vector<1x256xf32>
      %543 = arith.addf %539, %542 : vector<1x256xf32>
      %c7_82 = arith.constant 7 : index
      %c130 = arith.constant 130 : index
      %544 = vector.load %arg9[%c7_82, %c130] : memref<9x512xf32, #tpu.memory_space<vmem>>, vector<1x256xf32>
      %c5_83 = arith.constant 5 : index
      %c0_84 = arith.constant 0 : index
      %545 = vector.load %arg5[%c5_83, %c0_84] : memref<7x256xf32, #tpu.memory_space<vmem>>, vector<1x256xf32>
      %546 = arith.mulf %545, %544 : vector<1x256xf32>
      %547 = arith.addf %543, %546 : vector<1x256xf32>
      %c8_85 = arith.constant 8 : index
      %c131 = arith.constant 131 : index
      %548 = vector.load %arg9[%c8_85, %c131] : memref<9x512xf32, #tpu.memory_space<vmem>>, vector<1x256xf32>
      %c6_86 = arith.constant 6 : index
      %c0_87 = arith.constant 0 : index
      %549 = vector.load %arg5[%c6_86, %c0_87] : memref<7x256xf32, #tpu.memory_space<vmem>>, vector<1x256xf32>
      %550 = arith.mulf %549, %548 : vector<1x256xf32>
      %551 = arith.addf %547, %550 : vector<1x256xf32>
      %552 = vector.broadcast %2 : f32 to vector<1x256xf32>
      %553 = arith.mulf %551, %552 : vector<1x256xf32>
      %554 = vector.broadcast %3 : f32 to vector<1x256xf32>
      %555 = arith.addf %553, %554 : vector<1x256xf32>
      %cst_88 = arith.constant 0.000000e+00 : f32
      %556 = vector.broadcast %cst_88 : f32 to vector<1x256xf32>
      %557 = arith.cmpf oge, %555, %556 : vector<1x256xf32>
      %558 = vector.broadcast %1 : f32 to vector<1x256xf32>
      %559 = arith.mulf %558, %555 : vector<1x256xf32>
      %560 = arith.select %557, %555, %559 : vector<1x256xi1>, vector<1x256xf32>
      %561 = arith.negf %560 : vector<1x256xf32>
      %562 = math.exp %561 : vector<1x256xf32>
      %cst_89 = arith.constant 1.000000e+00 : f32
      %563 = vector.broadcast %cst_89 : f32 to vector<1x256xf32>
      %564 = arith.addf %563, %562 : vector<1x256xf32>
      %565 = arith.divf %563, %564 : vector<1x256xf32>
      %c0_90 = arith.constant 0 : index
      %c0_91 = arith.constant 0 : index
      %566 = vector.load %arg11[%c0_90, %c0_91] : memref<1x256xf32, #tpu.memory_space<vmem>>, vector<1x256xf32>
      tpu.vector_store %arg11[%c0_90, %c0_91], %565 {strides = array<i32>} : memref<1x256xf32, #tpu.memory_space<vmem>>, vector<1x256xf32>,
    } else {
    }
    %c16_i32 = arith.constant 16 : i32
    %7 = arith.muli %arg1, %c16_i32 : i32
    %8 = tpu.assume_multiple %7, 16 : i32
    %c0_1 = arith.constant 0 : index
    %9 = arith.index_cast %8 : i32 to index
    %c0_2 = arith.constant 0 : index
    %10 = vector.load %arg2[%c0_1, %9, %c0_2] : memref<1x32x256xf32, #tpu.memory_space<vmem>>, vector<1x16x256xf32>
    %11 = vector.shape_cast %10 : vector<1x16x256xf32> to vector<16x256xf32>
    %12 = arith.index_cast %8 : i32 to index
    %c0_3 = arith.constant 0 : index
    %13 = vector.load %arg10[%12, %c0_3] : memref<32x1xf32, #tpu.memory_space<vmem>>, vector<16x1xf32>
    %14 = vector.broadcast %13 : vector<16x1xf32> to vector<16x256xf32>
    %15 = arith.mulf %11, %14 : vector<16x256xf32>
    %c0_4 = arith.constant 0 : index
    %c0_5 = arith.constant 0 : index
    %16 = vector.load %arg11[%c0_4, %c0_5] : memref<1x256xf32, #tpu.memory_space<vmem>>, vector<1x256xf32>
    %17 = vector.broadcast %16 : vector<1x256xf32> to vector<16x256xf32>
    %18 = arith.mulf %15, %17 : vector<16x256xf32>
    %c0_6 = arith.constant 0 : index
    %c0_7 = arith.constant 0 : index
    %c0_8 = arith.constant 0 : index
    %19 = vector.load %arg8[%c0_6, %c0_7, %c0_8] : memref<1x16x256xf32, #tpu.memory_space<vmem>>, vector<1x16x256xf32>
    %20 = vector.shape_cast %19 : vector<1x16x256xf32> to vector<16x256xf32>
    %21 = vector.shape_cast %18 : vector<16x256xf32> to vector<1x16x256xf32>
    tpu.vector_store %arg8[%c0_6, %c0_7, %c0_8], %21 {strides = array<i32>} : memref<1x16x256xf32, #tpu.memory_space<vmem>>, vector<1x16x256xf32>,
    return
  }
  func.func @transform_0(%arg0: i32, %arg1: i32) -> (i32, i32, i32) {
    %c0_i32 = arith.constant 0 : i32
    %c0_i32_0 = arith.constant 0 : i32
    %c0_i32_1 = arith.constant 0 : i32
    return %arg0, %c0_i32, %c0_i32_0 : i32, i32, i32
  }
  func.func @transform_1(%arg0: i32, %arg1: i32) -> (i32, i32) {
    %c0_i32 = arith.constant 0 : i32
    %c0_i32_0 = arith.constant 0 : i32
    %c0_i32_1 = arith.constant 0 : i32
    return %c0_i32, %c0_i32_0 : i32, i32
  }
  func.func @transform_2(%arg0: i32, %arg1: i32) -> (i32, i32) {
    %c0_i32 = arith.constant 0 : i32
    %c0_i32_0 = arith.constant 0 : i32
    %c0_i32_1 = arith.constant 0 : i32
    return %c0_i32, %c0_i32_0 : i32, i32
  }
  func.func @transform_3(%arg0: i32, %arg1: i32) -> (i32, i32) {
    %c0_i32 = arith.constant 0 : i32
    %c0_i32_0 = arith.constant 0 : i32
    %c0_i32_1 = arith.constant 0 : i32
    return %c0_i32, %c0_i32_0 : i32, i32
  }
  func.func @transform_4(%arg0: i32, %arg1: i32) -> i32 {
    %c0_i32 = arith.constant 0 : i32
    %c0_i32_0 = arith.constant 0 : i32
    return %c0_i32 : i32
  }
  func.func @transform_5(%arg0: i32, %arg1: i32) -> i32 {
    %c0_i32 = arith.constant 0 : i32
    %c0_i32_0 = arith.constant 0 : i32
    return %c0_i32 : i32
  }
  func.func @transform_6(%arg0: i32, %arg1: i32) -> (i32, i32, i32) {
    %c0_i32 = arith.constant 0 : i32
    %c0_i32_0 = arith.constant 0 : i32
    return %arg0, %arg1, %c0_i32 : i32, i32, i32
  }
}

</mosaic_0001>

<llo_original>
// kernel: tpu_custom_call.1
$region0: #{tpu_custom_call.1}
  #allocation0 [shape = 'u32[]', space=smem, size = 0x4, offset = 0x4, fixed_abs, tag = 'smem constant byte address 0x4 - core index']
  #allocation1 [shape = 'u32[144,128]{1,0:T(1,128)}', space=vmem, size = 0x12000, scoped, tag = 'internal scratch']
  #allocation2 [shape = 'f32[9,512]{1,0:T(8,128)}', space=vmem, size = 0x8000, scoped, tag = 'scratch operand']
  #allocation3 [shape = 'f32[32,1]{1,0:T(8,128)}', space=vmem, size = 0x4000, scoped, tag = 'scratch operand']
  #allocation4 [shape = 'f32[1,256]{1,0:T(1,128)}', space=vmem, size = 0x400, scoped, tag = 'scratch operand']
  %s0 = inlined_call_operand.hbm [shape: f32[2,32,256], index: 0, kind: input, shape index: {}, may-alias: {0,6}]
  %s1 = inlined_call_operand.vmem [shape: f32[32,2], index: 1, kind: input, shape index: {}]
  %s2 = inlined_call_operand.vmem [shape: f32[32,2], index: 2, kind: input, shape index: {}]
  %s3 = inlined_call_operand.vmem [shape: f32[7,256], index: 3, kind: input, shape index: {}]
  %s4 = inlined_call_operand.vmem [shape: f32[98], index: 4, kind: input, shape index: {}]
  %s5 = inlined_call_operand.vmem [shape: f32[4], index: 5, kind: input, shape index: {}]
  %s6 = inlined_call_operand.hbm [shape: f32[2,32,256], index: 6, kind: output, shape index: {}, may-alias: {0,6}]
  %s7 = sld [smem:[#allocation0]]
  $region73: #{tpu_custom_call.1} parent=0
    _
  %s9 = ssub.s32 1, %s7
  %s10 = scalar_select 0, %s9, %s7
  $region1: #{tpu_custom_call.1} parent=0
    #allocation5 [shape = 'u8[65536]{0}', space=vmem, size = 0x10000, scoped, tag = 'input window, operand 0']
    #allocation6 [shape = 's32[2]{0}', space=sflag, size = 0x8, scoped, tag = 'scoped memory for tpu_custom_call.1']
    #allocation7 [shape = 's32[2]{0}', space=sflag, size = 0x8, scoped, tag = 'scoped memory for tpu_custom_call.1']
    #allocation8 [shape = 's32[2]{0}', space=sflag, size = 0x8, scoped, tag = 'scoped memory for tpu_custom_call.1']
    #allocation9 [shape = 'u8[512]{0}', space=smem, size = 0x200, scoped, tag = 'input window, operand 4, single buffered']
    #allocation10 [shape = 'u8[512]{0}', space=smem, size = 0x200, scoped, tag = 'input window, operand 5, single buffered']
    #allocation11 [shape = 's32[1]{0}', space=sflag, size = 0x4, scoped, tag = 'scoped memory for tpu_custom_call.1']
    #allocation12 [shape = 'u8[32768]{0}', space=vmem, size = 0x8000, scoped, tag = 'output window, operand 0']
    %11 = vsyncpa [#allocation6], 0
    %s12 = scalar_lea.sflag [#allocation6], 1
    %13 = vsyncpa %s12, 0
    %14 = vsyncpa [#allocation8], 0
    %15 = vsyncpa [#allocation11], 0
    %16 = vsyncpa [#allocation7], 0
    %s17 = scalar_lea.sflag [#allocation7], 1
    %18 = vsyncpa %s17, 0
    loop: start=0, step=1, limit=6
    $region2: #{tpu_custom_call.1} parent=1 // loop_pre_header
      _
    $region3: #{tpu_custom_call.1} parent=1 // loop_header
      %s20 = sphi 0, %s24
      %p21 = scmp.ge.s32.totalorder %s20, 6
      %s27 = sphi 0, %s39
      %s28 = sphi 0, %s35
      %s29 = sphi 0, %s27
      %s30 = sphi 0, %s28
      %s31 = sphi 0, %s29
      %s32 = sphi 0, %s30
      %s42 = sphi 0, %s44
      %s45 = sphi 0, %s42
      %s46 = sphi 0, %s45
      %s62 = sphi 0, %s46
      %s66 = sphi 0, %s66
      %s68 = sphi 0, %s66
      %s69 = sphi 0, %s68
      %s83 = sphi 0, %s69
      %s87 = sphi 0, %s87
      %s89 = sphi 0, %s87
      %s90 = sphi 0, %s89
      %s104 = sphi 0, %s90
      %s108 = sphi 0, %s108
      %s110 = sphi 0, %s108
      %s111 = sphi 0, %s110
      %s125 = sphi 0, %s111
      %s129 = sphi 0, %s129
      %s131 = sphi 0, %s129
      %s132 = sphi 0, %s131
      %s146 = sphi 0, %s132
      %s150 = sphi 0, %s150
      %s152 = sphi 0, %s150
      %s153 = sphi 0, %s152
      %s167 = sphi 0, %s153
      %s175 = sphi 0, %s177
      %s178 = sphi 0, %s175
      %s179 = sphi 0, %s178
      %s195 = sphi 0, %s179
    $region4: #{tpu_custom_call.1} parent=1 // loop_header_branch
      %23 = sbr.rel (%p21) target = $region8
    $region5: #{tpu_custom_call.1} parent=1 // loop_body
      %s25 = ssub.s32 %s20, 1
      %s26 = ssub.s32 %s20, 2
      %s33 = sadd.s32 1, %s28
      %p34 = scmp.ge.s32.totalorder %s33, 2
      %s35 = scalar_select %p34, 0, %s33
      %s36 = sadd.s32 1, %s27
      %s37 = scalar_select %p34, %s36, %s27
      %p38 = scmp.ge.s32.totalorder %s37, 2
      %s39 = scalar_select %p38, 0, %s37
      %s40 = ssub.s32 %s27, %s39
      %p41 = scmp.eq.s32.totalorder %s40, 0
      %s43 = sadd.s32 %s42, 1
      %s44 = scalar_select %p41, %s42, %s43
      %p47 = pneg %p41
      %p48 = scmp.eq.s32.totalorder %s20, 3
      %p49 = por %p47, %p48
      %p50 = scmp.ne.s32.totalorder %s42, %s45
      %p51 = scmp.eq.s32.totalorder %s20, 0
      %p52 = por %p50, %p51
      %p53 = scmp.ne.s32.totalorder %s42, %s45
      %p54 = scmp.eq.s32.totalorder %s25, 3
      %p55 = por %p53, %p54
      %p56 = scmp.ne.s32.totalorder %s45, %s46
      %p57 = scmp.eq.s32.totalorder %s25, 0
      %p58 = por %p56, %p57
      %p59 = scmp.ne.s32.totalorder %s45, %s46
      %p60 = scmp.eq.s32.totalorder %s26, 3
      %p61 = por %p59, %p60
      %p63 = scmp.ne.s32.totalorder %s46, %s62
      %p64 = scmp.eq.s32.totalorder %s26, 0
      %p65 = por %p63, %p64
      %s67 = sadd.s32 %s66, 1
      %p70 = scmp.eq.s32.totalorder %s20, 3
      %p71 = scmp.ne.s32.totalorder %s66, %s68
      %p72 = scmp.eq.s32.totalorder %s20, 0
      %p73 = por %p71, %p72
      %p74 = scmp.ne.s32.totalorder %s66, %s68
      %p75 = scmp.eq.s32.totalorder %s25, 3
      %p76 = por %p74, %p75
      %p77 = scmp.ne.s32.totalorder %s68, %s69
      %p78 = scmp.eq.s32.totalorder %s25, 0
      %p79 = por %p77, %p78
      %p80 = scmp.ne.s32.totalorder %s68, %s69
      %p81 = scmp.eq.s32.totalorder %s26, 3
      %p82 = por %p80, %p81
      %p84 = scmp.ne.s32.totalorder %s69, %s83
      %p85 = scmp.eq.s32.totalorder %s26, 0
      %p86 = por %p84, %p85
      %s88 = sadd.s32 %s87, 1
      %p91 = scmp.eq.s32.totalorder %s20, 3
      %p92 = scmp.ne.s32.totalorder %s87, %s89
      %p93 = scmp.eq.s32.totalorder %s20, 0
      %p94 = por %p92, %p93
      %p95 = scmp.ne.s32.totalorder %s87, %s89
      %p96 = scmp.eq.s32.totalorder %s25, 3
      %p97 = por %p95, %p96
      %p98 = scmp.ne.s32.totalorder %s89, %s90
      %p99 = scmp.eq.s32.totalorder %s25, 0
      %p100 = por %p98, %p99
      %p101 = scmp.ne.s32.totalorder %s89, %s90
      %p102 = scmp.eq.s32.totalorder %s26, 3
      %p103 = por %p101, %p102
      %p105 = scmp.ne.s32.totalorder %s90, %s104
      %p106 = scmp.eq.s32.totalorder %s26, 0
      %p107 = por %p105, %p106
      %s109 = sadd.s32 %s108, 1
      %p112 = scmp.eq.s32.totalorder %s20, 3
      %p113 = scmp.ne.s32.totalorder %s108, %s110
      %p114 = scmp.eq.s32.totalorder %s20, 0
      %p115 = por %p113, %p114
      %p116 = scmp.ne.s32.totalorder %s108, %s110
      %p117 = scmp.eq.s32.totalorder %s25, 3
      %p118 = por %p116, %p117
      %p119 = scmp.ne.s32.totalorder %s110, %s111
      %p120 = scmp.eq.s32.totalorder %s25, 0
      %p121 = por %p119, %p120
      %p122 = scmp.ne.s32.totalorder %s110, %s111
      %p123 = scmp.eq.s32.totalorder %s26, 3
      %p124 = por %p122, %p123
      %p126 = scmp.ne.s32.totalorder %s111, %s125
      %p127 = scmp.eq.s32.totalorder %s26, 0
      %p128 = por %p126, %p127
      %s130 = sadd.s32 %s129, 1
      %p133 = scmp.eq.s32.totalorder %s20, 3
      %p134 = scmp.ne.s32.totalorder %s129, %s131
      %p135 = scmp.eq.s32.totalorder %s20, 0
      %p136 = por %p134, %p135
      %p137 = scmp.ne.s32.totalorder %s129, %s131
      %p138 = scmp.eq.s32.totalorder %s25, 3
      %p139 = por %p137, %p138
      %p140 = scmp.ne.s32.totalorder %s131, %s132
      %p141 = scmp.eq.s32.totalorder %s25, 0
      %p142 = por %p140, %p141
      %p143 = scmp.ne.s32.totalorder %s131, %s132
      %p144 = scmp.eq.s32.totalorder %s26, 3
      %p145 = por %p143, %p144
      %p147 = scmp.ne.s32.totalorder %s132, %s146
      %p148 = scmp.eq.s32.totalorder %s26, 0
      %p149 = por %p147, %p148
      %s151 = sadd.s32 %s150, 1
      %p154 = scmp.eq.s32.totalorder %s20, 3
      %p155 = scmp.ne.s32.totalorder %s150, %s152
      %p156 = scmp.eq.s32.totalorder %s20, 0
      %p157 = por %p155, %p156
      %p158 = scmp.ne.s32.totalorder %s150, %s152
      %p159 = scmp.eq.s32.totalorder %s25, 3
      %p160 = por %p158, %p159
      %p161 = scmp.ne.s32.totalorder %s152, %s153
      %p162 = scmp.eq.s32.totalorder %s25, 0
      %p163 = por %p161, %p162
      %p164 = scmp.ne.s32.totalorder %s152, %s153
      %p165 = scmp.eq.s32.totalorder %s26, 3
      %p166 = por %p164, %p165
      %p168 = scmp.ne.s32.totalorder %s153, %s167
      %p169 = scmp.eq.s32.totalorder %s26, 0
      %p170 = por %p168, %p169
      %s171 = ssub.s32 %s27, %s39
      %s172 = ssub.s32 %s28, %s35
      %s173 = sor.u32 %s171, %s172
      %p174 = scmp.eq.s32.totalorder %s173, 0
      %s176 = sadd.s32 %s175, 1
      %s177 = scalar_select %p174, %s175, %s176
      %p180 = pneg %p174
      %p181 = scmp.eq.s32.totalorder %s20, 3
      %p182 = por %p180, %p181
      %p183 = scmp.ne.s32.totalorder %s175, %s178
      %p184 = scmp.eq.s32.totalorder %s20, 0
      %p185 = por %p183, %p184
      %p186 = scmp.ne.s32.totalorder %s175, %s178
      %p187 = scmp.eq.s32.totalorder %s25, 3
      %p188 = por %p186, %p187
      %p189 = scmp.ne.s32.totalorder %s178, %s179
      %p190 = scmp.eq.s32.totalorder %s25, 0
      %p191 = por %p189, %p190
      %p192 = scmp.ne.s32.totalorder %s178, %s179
      %p193 = scmp.eq.s32.totalorder %s26, 3
      %p194 = por %p192, %p193
      %p196 = scmp.ne.s32.totalorder %s179, %s195
      %p197 = scmp.eq.s32.totalorder %s26, 0
      %p198 = por %p196, %p197
      %p199 = scmp.le.s32.totalorder 1, %s20
      %p200 = scmp.lt.s32.totalorder %s20, 5
      %p201 = pnand %p199, %p200
      %p202 = pneg %p201
      // Predicated region
      $region9: #{tpu_custom_call.1} parent=5 // pred_check
        _
      $region10: #{tpu_custom_call.1} parent=5 // pred_check_branch
        %204 = sbr.rel (%p201) target = $region12
      $region11: #{tpu_custom_call.1} parent=5 // pred_region
        %s205 = ssub.s32 %s20, 1
        // Predicated region
        $region13: #{tpu_custom_call.1} parent=11 // pred_check
          %p206 = pneg %p79
        $region14: #{tpu_custom_call.1} parent=11 // pred_check_branch
          %208 = sbr.rel (%p206) target = $region16
        $region15: #{tpu_custom_call.1} parent=11 // pred_region
          _
        $region16: #{tpu_custom_call.1} parent=11 // pred_fallthru
          _
        // Predicated region
        $region17: #{tpu_custom_call.1} parent=11 // pred_check
          %p209 = pneg %p100
        $region18: #{tpu_custom_call.1} parent=11 // pred_check_branch
          %211 = sbr.rel (%p209) target = $region20
        $region19: #{tpu_custom_call.1} parent=11 // pred_region
          _
        $region20: #{tpu_custom_call.1} parent=11 // pred_fallthru
          _
        // Predicated region
        $region21: #{tpu_custom_call.1} parent=11 // pred_check
          %p212 = pneg %p121
        $region22: #{tpu_custom_call.1} parent=11 // pred_check_branch
          %214 = sbr.rel (%p212) target = $region24
        $region23: #{tpu_custom_call.1} parent=11 // pred_region
          _
        $region24: #{tpu_custom_call.1} parent=11 // pred_fallthru
          _
        // Predicated region
        $region25: #{tpu_custom_call.1} parent=11 // pred_check
          %p215 = pneg %p142
        $region26: #{tpu_custom_call.1} parent=11 // pred_check_branch
          %217 = sbr.rel (%p215) target = $region28
        $region27: #{tpu_custom_call.1} parent=11 // pred_region
          %s219 = ssub.s32 16, 16
          %220 = vsyncadd [#allocation8], %s219
          %s222 = sshll.u32 %s4, 4
          %s223 = int_to_ptr.vmem [resolvable:$true] %s222
          %225 = dma.vmem_to_smem %s223, 16, [#allocation9], [#allocation8]
        $region28: #{tpu_custom_call.1} parent=11 // pred_fallthru
          _
        // Predicated region
        $region29: #{tpu_custom_call.1} parent=11 // pred_check
          %p226 = pneg %p163
        $region30: #{tpu_custom_call.1} parent=11 // pred_check_branch
          %228 = sbr.rel (%p226) target = $region32
        $region31: #{tpu_custom_call.1} parent=11 // pred_region
          %s230 = ssub.s32 16, 16
          %231 = vsyncadd [#allocation11], %s230
          %s233 = sshll.u32 %s5, 4
          %s234 = int_to_ptr.vmem [resolvable:$true] %s233
          %236 = dma.vmem_to_smem %s234, 16, [#allocation10], [#allocation11]
        $region32: #{tpu_custom_call.1} parent=11 // pred_fallthru
          _
      $region12: #{tpu_custom_call.1} parent=5 // pred_fallthru
        _
      %p237 = scmp.lt.s32.totalorder %s20, 4
      // Predicated region
      $region33: #{tpu_custom_call.1} parent=5 // pred_check
        %p238 = pneg %p237
      $region34: #{tpu_custom_call.1} parent=5 // pred_check_branch
        %240 = sbr.rel (%p238) target = $region36
      $region35: #{tpu_custom_call.1} parent=5 // pred_region
        // Predicated region
        $region37: #{tpu_custom_call.1} parent=35 // pred_check
          %p241 = pneg %p52
        $region38: #{tpu_custom_call.1} parent=35 // pred_check_branch
          %243 = sbr.rel (%p241) target = $region40
        $region39: #{tpu_custom_call.1} parent=35 // pred_region
          %s244 = sand.u32 %s42, 1
          %s245 = scalar_lea.sflag [#allocation6], %s244
          %s246 = sand.u32 %s42, 1
          %s247 = smul.addr %s246, 64
          %s248 = scalar_lea.vmem [#allocation5], %s247
          %s250 = ssub.s32 1024, 1024
          %251 = vsyncadd %s245, %s250
          %s252 = smul.addr %s27, 8
          %s253 = smul.addr %s252, 128
          %s254 = scalar_lea.hbm %s0, %s253
          %s255 = sshll.u32 %s248, 4
          %s256 = int_to_ptr.vmem [resolvable:$true] %s255
          %261 = dma.hbm_to_vmem [thread:$0]  %s254, 1024, %s256, %s245, 256, 256, 16
        $region40: #{tpu_custom_call.1} parent=35 // pred_fallthru
          _
      $region36: #{tpu_custom_call.1} parent=5 // pred_fallthru
        _
      %p262 = scmp.le.s32.totalorder 1, %s20
      %p263 = scmp.lt.s32.totalorder %s20, 5
      %p264 = pnand %p262, %p263
      %p265 = pneg %p264
      // Predicated region
      $region41: #{tpu_custom_call.1} parent=5 // pred_check
        _
      $region42: #{tpu_custom_call.1} parent=5 // pred_check_branch
        %267 = sbr.rel (%p264) target = $region44
      $region43: #{tpu_custom_call.1} parent=5 // pred_region
        %s268 = ssub.s32 %s20, 1
        %s269 = sand.u32 %s45, 1
        %s270 = scalar_lea.sflag [#allocation6], %s269
        %s271 = sand.u32 %s45, 1
        %s272 = smul.addr %s271, 64
        %s273 = scalar_lea.vmem [#allocation5], %s272
        // Predicated region
        $region45: #{tpu_custom_call.1} parent=43 // pred_check
          %p274 = pneg %p58
        $region46: #{tpu_custom_call.1} parent=43 // pred_check_branch
          %276 = sbr.rel (%p274) target = $region48
        $region47: #{tpu_custom_call.1} parent=43 // pred_region
          %277 = dma.done %s270, 1024
        $region48: #{tpu_custom_call.1} parent=43 // pred_fallthru
          _
        // Predicated region
        $region49: #{tpu_custom_call.1} parent=43 // pred_check
          %p278 = pneg %p142
        $region50: #{tpu_custom_call.1} parent=43 // pred_check_branch
          %280 = sbr.rel (%p278) target = $region52
        $region51: #{tpu_custom_call.1} parent=43 // pred_region
          %281 = dma.done [#allocation8], 16
        $region52: #{tpu_custom_call.1} parent=43 // pred_fallthru
          _
        // Predicated region
        $region53: #{tpu_custom_call.1} parent=43 // pred_check
          %p282 = pneg %p163
        $region54: #{tpu_custom_call.1} parent=43 // pred_check_branch
          %284 = sbr.rel (%p282) target = $region56
        $region55: #{tpu_custom_call.1} parent=43 // pred_region
          %285 = dma.done [#allocation11], 16
        $region56: #{tpu_custom_call.1} parent=43 // pred_fallthru
          _
        %286 = sfence
        %s287 = sand.u32 %s45, 1
        %s288 = scalar_lea.sflag [#allocation6], %s287
        %s289 = sand.u32 %s45, 1
        %s290 = smul.addr %s289, 64
        %s291 = scalar_lea.vmem [#allocation5], %s290
        %p292 = pneg %p58
        %p293 = pneg %p55
        %p294 = pneg %p79
        %p295 = pneg %p76
        %p296 = pneg %p100
        %p297 = pneg %p97
        %p298 = pneg %p121
        %p299 = pneg %p118
        %p300 = pneg %p142
        %p301 = pneg %p139
        %p302 = pneg %p163
        %p303 = pneg %p160
        %p304 = pneg %p191
        %p305 = pneg %p188
        %s306 = sand.u32 %s178, 1
        %s307 = scalar_lea.sflag [#allocation7], %s306
        %s308 = sand.u32 %s178, 1
        %s309 = smul.addr %s308, 32
        %s310 = scalar_lea.vmem [#allocation12], %s309
        %s311 = smul.u32 2, %s30
        %s312 = sld [smem:[#allocation10]]
        %s313 = sld [smem:[#allocation10 + $0x1]]
        %s314 = sld [smem:[#allocation10 + $0x2]]
        %s315 = sld [smem:[#allocation10 + $0x3]]
        %p316 = scmp.eq.s32.totalorder %s30, 0
        // Predicated region
        $region57: #{tpu_custom_call.1} parent=43 // pred_check
          %p317 = pneg %p316
        $region58: #{tpu_custom_call.1} parent=43 // pred_check_branch
          %319 = sbr.rel (%p317) target = $region60
        $region59: #{tpu_custom_call.1} parent=43 // pred_region
          %v320 = vld [vmem:[%s273] sm:$0xff]
          %v321 = vld [vmem:[%s273 + $0x8] sm:$0xff]
          %v322 = vld [vmem:[%s273 + $0x10] sm:$0xff]
          %v323 = vld [vmem:[%s273 + $0x18] sm:$0xff]
          %v324 = vld [vmem:[%s273 + $0x20] sm:$0xff]
          %v325 = vld [vmem:[%s273 + $0x28] sm:$0xff]
          %v326 = vld [vmem:[%s273 + $0x30] sm:$0xff]
          %v327 = vld [vmem:[%s273 + $0x38] sm:$0xff]
          %v328 = vadd.f32 %v320, %v321
          %329 = vadd.xlane.f32.xlu0 %v328
          %v330 = vpop.xlane.xlu0 %329
          %v331 = vadd.f32 %v322, %v323
          %332 = vadd.xlane.f32.xlu0 %v331
          %v333 = vpop.xlane.xlu0 %332
          %v334 = vadd.f32 %v324, %v325
          %335 = vadd.xlane.f32.xlu0 %v334
          %v336 = vpop.xlane.xlu0 %335
          %v337 = vadd.f32 %v326, %v327
          %338 = vadd.xlane.f32.xlu0 %v337
          %v339 = vpop.xlane.xlu0 %338
          %v340 = vmul.f32 %v330, 0.00390625
          %v341 = vmul.f32 %v333, 0.00390625
          %v342 = vmul.f32 %v336, 0.00390625
          %v343 = vmul.f32 %v339, 0.00390625
          %v344 = vmax.f32 %v320, %v321
          %345 = vmax.xlane.f32.xlu0 %v344
          %v346 = vpop.xlane.xlu0 %345
          %v347 = vmax.f32 %v322, %v323
          %348 = vmax.xlane.f32.xlu0 %v347
          %v349 = vpop.xlane.xlu0 %348
          %v350 = vmax.f32 %v324, %v325
          %351 = vmax.xlane.f32.xlu0 %v350
          %v352 = vpop.xlane.xlu0 %351
          %v353 = vmax.f32 %v326, %v327
          %354 = vmax.xlane.f32.xlu0 %v353
          %v355 = vpop.xlane.xlu0 %354
          %v356 = vlaneseq
          %v357 = vand.u32 %v356, 127
          %vm358 = vcmp.eq.s32.totalorder %v357, 0
          %v359 = vsel %vm358, %v340, %v346
          %v360 = vsel %vm358, %v341, %v349
          %v361 = vsel %vm358, %v342, %v352
          %v362 = vsel %vm358, %v343, %v355
          %v363 = vld [vmem:[%s1] sm:$0xff]
          %v364 = vld [vmem:[%s1 + $0x8] sm:$0xff]
          %v365 = vld [vmem:[%s1 + $0x10] sm:$0xff]
          %v366 = vld [vmem:[%s1 + $0x18] sm:$0xff]
          %v367 = vld [vmem:[%s2] sm:$0xff]
          %v368 = vld [vmem:[%s2 + $0x8] sm:$0xff]
          %v369 = vld [vmem:[%s2 + $0x10] sm:$0xff]
          %v370 = vld [vmem:[%s2 + $0x18] sm:$0xff]
          %372 = vset.pattern.permute.xlu0 0
          %373 = vperm.xlu0 %372, %v363
          %v374 = vpop.permute.xlu0 %373
          %377 = vset.pattern.permute.xlu0 0
          %378 = vperm.xlu0 %377, %v364
          %v379 = vpop.permute.xlu0 %378
          %382 = vset.pattern.permute.xlu0 0
          %383 = vperm.xlu0 %382, %v365
          %v384 = vpop.permute.xlu0 %383
          %387 = vset.pattern.permute.xlu0 0
          %388 = vperm.xlu0 %387, %v366
          %v389 = vpop.permute.xlu0 %388
          %v391 = vmul.f32 %v374, %v359
          %v392 = vmul.f32 %v379, %v360
          %v393 = vmul.f32 %v384, %v361
          %v394 = vmul.f32 %v389, %v362
          %vm395 = vcmask 15360
          %v396 = vsel %vm395, %v391, 0.0
          %v397 = vsel %vm395, %v392, 0.0
          %v398 = vadd.f32 %v396, %v397
          %v399 = vsel %vm395, %v393, 0.0
          %v400 = vadd.f32 %v398, %v399
          %v401 = vsel %vm395, %v394, 0.0
          %v402 = vadd.f32 %v400, %v401
          %v403 = vrot.slane %v402, 4
          %v404 = vadd.f32 %v402, %v403
          %v405 = vrot.slane %v404, 2
          %v406 = vadd.f32 %v404, %v405
          %v407 = vrot.slane %v406, 1
          %v408 = vadd.f32 %v406, %v407
          %vm409 = vcmp.ge.f32.partialorder %v408, 0.0
          %v410 = vstv %s312
          %v411 = vmul.f32 %v410, %v408
          %v412 = vsel %vm409, %v408, %v411
          %414 = vrot.lane.b32.xlu0 %v412, 127
          %v415 = vpop.permute.xlu0 %414
          %v417 = vadd.f32 %v412, %v415
          %v418 = vlaneseq
          %v419 = vshrl.u32 %v418, 7
          %v420 = vsub.s32 0, %v419
          %v421 = vrot.slane %v417, %v420
          %v422 = vmul.f32 %v367, %v421
          %v423 = vmul.f32 %v368, %v421
          %v424 = vmul.f32 %v369, %v421
          %v425 = vmul.f32 %v370, %v421
          %v426 = vadd.f32 %v422, 0.0
          %v427 = vadd.f32 %v423, 0.0
          %v428 = vadd.f32 %v424, 0.0
          %v429 = vadd.f32 %v425, 0.0
          %430 = vset.pattern.permute.xlu0 1
          %431 = vperm.xlu0 %430, %v363
          %v432 = vpop.permute.xlu0 %431
          %434 = vset.pattern.permute.xlu0 1
          %435 = vperm.xlu0 %434, %v364
          %v436 = vpop.permute.xlu0 %435
          %438 = vset.pattern.permute.xlu0 1
          %439 = vperm.xlu0 %438, %v365
          %v440 = vpop.permute.xlu0 %439
          %442 = vset.pattern.permute.xlu0 1
          %443 = vperm.xlu0 %442, %v366
          %v444 = vpop.permute.xlu0 %443
          %v446 = vmul.f32 %v432, %v359
          %v447 = vmul.f32 %v436, %v360
          %v448 = vmul.f32 %v440, %v361
          %v449 = vmul.f32 %v444, %v362
          %v450 = vsel %vm395, %v446, 0.0
          %v451 = vsel %vm395, %v447, 0.0
          %v452 = vadd.f32 %v450, %v451
          %v453 = vsel %vm395, %v448, 0.0
          %v454 = vadd.f32 %v452, %v453
          %v455 = vsel %vm395, %v449, 0.0
          %v456 = vadd.f32 %v454, %v455
          %v457 = vrot.slane %v456, 4
          %v458 = vadd.f32 %v456, %v457
          %v459 = vrot.slane %v458, 2
          %v460 = vadd.f32 %v458, %v459
          %v461 = vrot.slane %v460, 1
          %v462 = vadd.f32 %v460, %v461
          %vm463 = vcmp.ge.f32.partialorder %v462, 0.0
          %v464 = vmul.f32 %v410, %v462
          %v465 = vsel %vm463, %v462, %v464
          %467 = vrot.lane.b32.xlu0 %v465, 127
          %v468 = vpop.permute.xlu0 %467
          %v470 = vadd.f32 %v465, %v468
          %v471 = vlaneseq
          %v472 = vshrl.u32 %v471, 7
          %v473 = vsub.s32 0, %v472
          %v474 = vrot.slane %v470, %v473
          %476 = vrot.lane.b32.xlu0 %v474, 1
          %v477 = vpop.permute.xlu0 %476
          %v479 = vmul.f32 %v367, %v477
          %v480 = vmul.f32 %v368, %v477
          %v481 = vmul.f32 %v369, %v477
          %v482 = vmul.f32 %v370, %v477
          %487 = vrot.lane.b32.xlu0 %v479, 127
          %v488 = vpop.permute.xlu0 %487
          %489 = vrot.lane.b32.xlu0 %v480, 127
          %v490 = vpop.permute.xlu0 %489
          %491 = vrot.lane.b32.xlu0 %v481, 127
          %v492 = vpop.permute.xlu0 %491
          %493 = vrot.lane.b32.xlu0 %v482, 127
          %v494 = vpop.permute.xlu0 %493
          %v499 = vadd.f32 %v426, %v488
          %v500 = vadd.f32 %v427, %v490
          %v501 = vadd.f32 %v428, %v492
          %v502 = vadd.f32 %v429, %v494
          %v503 = vxor.u32 %v499, 2147483648
          %v504 = vxor.u32 %v500, 2147483648
          %v505 = vxor.u32 %v501, 2147483648
          %v506 = vxor.u32 %v502, 2147483648
          %v507 = vmul.f32 %v503, 1.442695
          %v508 = vpow.pop %v507
          %v509 = vmul.f32 %v504, 1.442695
          %v510 = vpow.pop %v509
          %v511 = vmul.f32 %v505, 1.442695
          %v512 = vpow.pop %v511
          %v513 = vmul.f32 %v506, 1.442695
          %v514 = vpow.pop %v513
          %v515 = vadd.f32 %v508, 1.0
          %v516 = vadd.f32 %v510, 1.0
          %v517 = vadd.f32 %v512, 1.0
          %v518 = vadd.f32 %v514, 1.0
          %v519 = vrcp.pop %v515
          %v520 = vmul.f32 1.0, %v519
          %v521 = vrcp.pop %v516
          %v522 = vmul.f32 1.0, %v521
          %v523 = vrcp.pop %v517
          %v524 = vmul.f32 1.0, %v523
          %v525 = vrcp.pop %v518
          %v526 = vmul.f32 1.0, %v525
          %vm527 = vcmask 7168
          %528 = vst.msk [vmem:[#allocation3] sm:$0xff] %vm527, %v520
          %529 = vst.msk [vmem:[#allocation3 + $0x8] sm:$0xff] %vm527, %v522
          %530 = vst.msk [vmem:[#allocation3 + $0x10] sm:$0xff] %vm527, %v524
          %531 = vst.msk [vmem:[#allocation3 + $0x18] sm:$0xff] %vm527, %v526
          %533 = vset.pattern.permute.xlu0 0
          %534 = vperm.xlu0 %533, %v520
          %v535 = vpop.permute.xlu0 %534
          %538 = vset.pattern.permute.xlu0 0
          %539 = vperm.xlu0 %538, %v522
          %v540 = vpop.permute.xlu0 %539
          %543 = vset.pattern.permute.xlu0 0
          %544 = vperm.xlu0 %543, %v524
          %v545 = vpop.permute.xlu0 %544
          %548 = vset.pattern.permute.xlu0 0
          %549 = vperm.xlu0 %548, %v526
          %v550 = vpop.permute.xlu0 %549
          %v552 = vmul.f32 %v320, %v535
          %v553 = vmul.f32 %v321, %v535
          %v554 = vmul.f32 %v322, %v540
          %v555 = vmul.f32 %v323, %v540
          %v556 = vmul.f32 %v324, %v545
          %v557 = vmul.f32 %v325, %v545
          %v558 = vmul.f32 %v326, %v550
          %v559 = vmul.f32 %v327, %v550
          %v560 = vadd.f32 %v552, %v554
          %v561 = vadd.f32 %v560, %v556
          %v562 = vadd.f32 %v561, %v558
          %v563 = vrot.slane %v562, 4
          %v564 = vadd.f32 %v562, %v563
          %v565 = vrot.slane %v564, 2
          %v566 = vadd.f32 %v564, %v565
          %v567 = vrot.slane %v566, 1
          %v568 = vadd.f32 %v566, %v567
          %v569 = vadd.f32 %v553, %v555
          %v570 = vadd.f32 %v569, %v557
          %v571 = vadd.f32 %v570, %v559
          %v572 = vrot.slane %v571, 4
          %v573 = vadd.f32 %v571, %v572
          %v574 = vrot.slane %v573, 2
          %v575 = vadd.f32 %v573, %v574
          %v576 = vrot.slane %v575, 1
          %v577 = vadd.f32 %v575, %v576
          %v578 = vmul.f32 %v568, 0.03125
          %v579 = vmul.f32 %v577, 0.03125
          %v580 = vmax.f32 %v552, %v556
          %v581 = vmax.f32 %v554, %v558
          %v582 = vmax.f32 %v580, %v581
          %v583 = vrot.slane %v582, 4
          %v584 = vmax.f32 %v582, %v583
          %v585 = vrot.slane %v584, 2
          %v586 = vmax.f32 %v584, %v585
          %v587 = vrot.slane %v586, 1
          %v588 = vmax.f32 %v586, %v587
          %v589 = vmax.f32 %v553, %v557
          %v590 = vmax.f32 %v555, %v559
          %v591 = vmax.f32 %v589, %v590
          %v592 = vrot.slane %v591, 4
          %v593 = vmax.f32 %v591, %v592
          %v594 = vrot.slane %v593, 2
          %v595 = vmax.f32 %v593, %v594
          %v596 = vrot.slane %v595, 1
          %v597 = vmax.f32 %v595, %v596
          %598 = vst [vmem:[#allocation2] sm:$0xff] 0.0
          %599 = vst [vmem:[#allocation2 + $0x20] sm:$0x1] 0.0
          %600 = vst [vmem:[#allocation2 + $0x18] sm:$0xff] 0.0
          %601 = vst [vmem:[#allocation2 + $0x38] sm:$0x1] 0.0
          %v602 = vlaneseq
          %v603 = vshrl.u32 %v602, 7
          %vm604 = vcmp.eq.s32.totalorder %v603, 0
          %v605 = vsel %vm604, %v578, %v588
          %v606 = vsel %vm604, %v579, %v597
          %607 = vst [vmem:[#allocation2 + $0x8] sm:$0x3] %v605
          %608 = vst [vmem:[#allocation2 + $0x10] sm:$0x3] %v606
          %v609 = vld [vmem:[#allocation2] sm:$0x3]
          %v610 = vld [vmem:[#allocation2 + $0x8] sm:$0x3]
          %v611 = vld [vmem:[#allocation2 + $0x10] sm:$0x3]
          %s612 = sld [smem:[#allocation9]]
          %s613 = sld [smem:[#allocation9 + $0x31]]
          %v614 = vstv %s612
          %v615 = vmul.f32 %v614, %v609
          %v616 = vmul.f32 %v614, %v610
          %v617 = vmul.f32 %v614, %v611
          %v618 = vadd.f32 %v615, 0.0
          %v619 = vadd.f32 %v616, 0.0
          %v620 = vadd.f32 %v617, 0.0
          %v621 = vstv %s613
          %v622 = vmul.f32 %v621, %v609
          %v623 = vmul.f32 %v621, %v610
          %v624 = vmul.f32 %v621, %v611
          %v628 = vrot.slane %v622, 1
          %v629 = vrot.slane %v623, 1
          %v630 = vrot.slane %v624, 1
          %v634 = vadd.f32 %v618, %v628
          %v635 = vadd.f32 %v619, %v629
          %v636 = vadd.f32 %v620, %v630
          %s637 = sld [smem:[#allocation9 + $0x1]]
          %s638 = sld [smem:[#allocation9 + $0x32]]
          %v639 = vstv %s637
          %v640 = vmul.f32 %v639, %v609
          %v641 = vmul.f32 %v639, %v610
          %v642 = vmul.f32 %v639, %v611
          %v643 = vadd.f32 %v640, 0.0
          %v644 = vadd.f32 %v641, 0.0
          %v645 = vadd.f32 %v642, 0.0
          %v646 = vstv %s638
          %v647 = vmul.f32 %v646, %v609
          %v648 = vmul.f32 %v646, %v610
          %v649 = vmul.f32 %v646, %v611
          %v653 = vrot.slane %v647, 1
          %v654 = vrot.slane %v648, 1
          %v655 = vrot.slane %v649, 1
          %v659 = vadd.f32 %v643, %v653
          %v660 = vadd.f32 %v644, %v654
          %v661 = vadd.f32 %v645, %v655
          %s662 = sld [smem:[#allocation9 + $0x2]]
          %s663 = sld [smem:[#allocation9 + $0x33]]
          %v664 = vstv %s662
          %v665 = vmul.f32 %v664, %v609
          %v666 = vmul.f32 %v664, %v610
          %v667 = vmul.f32 %v664, %v611
          %v668 = vadd.f32 %v665, 0.0
          %v669 = vadd.f32 %v666, 0.0
          %v670 = vadd.f32 %v667, 0.0
          %v671 = vstv %s663
          %v672 = vmul.f32 %v671, %v609
          %v673 = vmul.f32 %v671, %v610
          %v674 = vmul.f32 %v671, %v611
          %v678 = vrot.slane %v672, 1
          %v679 = vrot.slane %v673, 1
          %v680 = vrot.slane %v674, 1
          %v684 = vadd.f32 %v668, %v678
          %v685 = vadd.f32 %v669, %v679
          %v686 = vadd.f32 %v670, %v680
          %s687 = sld [smem:[#allocation9 + $0x3]]
          %s688 = sld [smem:[#allocation9 + $0x34]]
          %v689 = vstv %s687
          %v690 = vmul.f32 %v689, %v609
          %v691 = vmul.f32 %v689, %v610
          %v692 = vmul.f32 %v689, %v611
          %v693 = vadd.f32 %v690, 0.0
          %v694 = vadd.f32 %v691, 0.0
          %v695 = vadd.f32 %v692, 0.0
          %v696 = vstv %s688
          %v697 = vmul.f32 %v696, %v609
          %v698 = vmul.f32 %v696, %v610
          %v699 = vmul.f32 %v696, %v611
          %v703 = vrot.slane %v697, 1
          %v704 = vrot.slane %v698, 1
          %v705 = vrot.slane %v699, 1
          %v709 = vadd.f32 %v693, %v703
          %v710 = vadd.f32 %v694, %v704
          %v711 = vadd.f32 %v695, %v705
          %s712 = sld [smem:[#allocation9 + $0x4]]
          %s713 = sld [smem:[#allocation9 + $0x35]]
          %v714 = vstv %s712
          %v715 = vmul.f32 %v714, %v609
          %v716 = vmul.f32 %v714, %v610
          %v717 = vmul.f32 %v714, %v611
          %v718 = vadd.f32 %v715, 0.0
          %v719 = vadd.f32 %v716, 0.0
          %v720 = vadd.f32 %v717, 0.0
          %v721 = vstv %s713
          %v722 = vmul.f32 %v721, %v609
          %v723 = vmul.f32 %v721, %v610
          %v724 = vmul.f32 %v721, %v611
          %v728 = vrot.slane %v722, 1
          %v729 = vrot.slane %v723, 1
          %v730 = vrot.slane %v724, 1
          %v734 = vadd.f32 %v718, %v728
          %v735 = vadd.f32 %v719, %v729
          %v736 = vadd.f32 %v720, %v730
          %s737 = sld [smem:[#allocation9 + $0x5]]
          %s738 = sld [smem:[#allocation9 + $0x36]]
          %v739 = vstv %s737
          %v740 = vmul.f32 %v739, %v609
          %v741 = vmul.f32 %v739, %v610
          %v742 = vmul.f32 %v739, %v611
          %v743 = vadd.f32 %v740, 0.0
          %v744 = vadd.f32 %v741, 0.0
          %v745 = vadd.f32 %v742, 0.0
          %v746 = vstv %s738
          %v747 = vmul.f32 %v746, %v609
          %v748 = vmul.f32 %v746, %v610
          %v749 = vmul.f32 %v746, %v611
          %v753 = vrot.slane %v747, 1
          %v754 = vrot.slane %v748, 1
          %v755 = vrot.slane %v749, 1
          %v759 = vadd.f32 %v743, %v753
          %v760 = vadd.f32 %v744, %v754
          %v761 = vadd.f32 %v745, %v755
          %s762 = sld [smem:[#allocation9 + $0x6]]
          %s763 = sld [smem:[#allocation9 + $0x37]]
          %v764 = vstv %s762
          %v765 = vmul.f32 %v764, %v609
          %v766 = vmul.f32 %v764, %v610
          %v767 = vmul.f32 %v764, %v611
          %v768 = vadd.f32 %v765, 0.0
          %v769 = vadd.f32 %v766, 0.0
          %v770 = vadd.f32 %v767, 0.0
          %v771 = vstv %s763
          %v772 = vmul.f32 %v771, %v609
          %v773 = vmul.f32 %v771, %v610
          %v774 = vmul.f32 %v771, %v611
          %v778 = vrot.slane %v772, 1
          %v779 = vrot.slane %v773, 1
          %v780 = vrot.slane %v774, 1
          %v784 = vadd.f32 %v768, %v778
          %v785 = vadd.f32 %v769, %v779
          %v786 = vadd.f32 %v770, %v780
          %s787 = sld [smem:[#allocation9 + $0x7]]
          %s788 = sld [smem:[#allocation9 + $0x38]]
          %v789 = vstv %s787
          %v790 = vmul.f32 %v789, %v609
          %v791 = vmul.f32 %v789, %v610
          %v792 = vmul.f32 %v789, %v611
          %796 = vrot.lane.b32.xlu0 %v790, 112
          %v797 = vpop.permute.xlu0 %796
          %798 = vrot.lane.b32.xlu0 %v791, 112
          %v799 = vpop.permute.xlu0 %798
          %800 = vrot.lane.b32.xlu0 %v792, 112
          %v801 = vpop.permute.xlu0 %800
          %vm802 = vcmask 916480
          %v803 = vsel %vm802, %v797, %v799
          %v804 = vsel %vm802, %v799, %v801
          %v808 = vadd.f32 %v634, %v803
          %v809 = vadd.f32 %v635, %v804
          %v810 = vadd.f32 %v636, %v801
          %v811 = vstv %s788
          %v812 = vmul.f32 %v811, %v609
          %v813 = vmul.f32 %v811, %v610
          %v814 = vmul.f32 %v811, %v611
          %v818 = vrot.slane %v812, 1
          %v819 = vrot.slane %v813, 1
          %v820 = vrot.slane %v814, 1
          %821 = vrot.lane.b32.xlu0 %v818, 112
          %v822 = vpop.permute.xlu0 %821
          %823 = vrot.lane.b32.xlu0 %v819, 112
          %v824 = vpop.permute.xlu0 %823
          %825 = vrot.lane.b32.xlu0 %v820, 112
          %v826 = vpop.permute.xlu0 %825
          %v827 = vsel %vm802, %v822, %v824
          %v828 = vsel %vm802, %v824, %v826
          %v832 = vadd.f32 %v808, %v827
          %v833 = vadd.f32 %v809, %v828
          %v834 = vadd.f32 %v810, %v826
          %s835 = sld [smem:[#allocation9 + $0x8]]
          %s836 = sld [smem:[#allocation9 + $0x39]]
          %v837 = vstv %s835
          %v838 = vmul.f32 %v837, %v609
          %v839 = vmul.f32 %v837, %v610
          %v840 = vmul.f32 %v837, %v611
          %844 = vrot.lane.b32.xlu0 %v838, 112
          %v845 = vpop.permute.xlu0 %844
          %846 = vrot.lane.b32.xlu0 %v839, 112
          %v847 = vpop.permute.xlu0 %846
          %848 = vrot.lane.b32.xlu0 %v840, 112
          %v849 = vpop.permute.xlu0 %848
          %v850 = vsel %vm802, %v845, %v847
          %v851 = vsel %vm802, %v847, %v849
          %v855 = vadd.f32 %v659, %v850
          %v856 = vadd.f32 %v660, %v851
          %v857 = vadd.f32 %v661, %v849
          %v858 = vstv %s836
          %v859 = vmul.f32 %v858, %v609
          %v860 = vmul.f32 %v858, %v610
          %v861 = vmul.f32 %v858, %v611
          %v865 = vrot.slane %v859, 1
          %v866 = vrot.slane %v860, 1
          %v867 = vrot.slane %v861, 1
          %868 = vrot.lane.b32.xlu0 %v865, 112
          %v869 = vpop.permute.xlu0 %868
          %870 = vrot.lane.b32.xlu0 %v866, 112
          %v871 = vpop.permute.xlu0 %870
          %872 = vrot.lane.b32.xlu0 %v867, 112
          %v873 = vpop.permute.xlu0 %872
          %v874 = vsel %vm802, %v869, %v871
          %v875 = vsel %vm802, %v871, %v873
          %v879 = vadd.f32 %v855, %v874
          %v880 = vadd.f32 %v856, %v875
          %v881 = vadd.f32 %v857, %v873
          %s882 = sld [smem:[#allocation9 + $0x9]]
          %s883 = sld [smem:[#allocation9 + $0x3a]]
          %v884 = vstv %s882
          %v885 = vmul.f32 %v884, %v609
          %v886 = vmul.f32 %v884, %v610
          %v887 = vmul.f32 %v884, %v611
          %891 = vrot.lane.b32.xlu0 %v885, 112
          %v892 = vpop.permute.xlu0 %891
          %893 = vrot.lane.b32.xlu0 %v886, 112
          %v894 = vpop.permute.xlu0 %893
          %895 = vrot.lane.b32.xlu0 %v887, 112
          %v896 = vpop.permute.xlu0 %895
          %v897 = vsel %vm802, %v892, %v894
          %v898 = vsel %vm802, %v894, %v896
          %v902 = vadd.f32 %v684, %v897
          %v903 = vadd.f32 %v685, %v898
          %v904 = vadd.f32 %v686, %v896
          %v905 = vstv %s883
          %v906 = vmul.f32 %v905, %v609
          %v907 = vmul.f32 %v905, %v610
          %v908 = vmul.f32 %v905, %v611
          %v912 = vrot.slane %v906, 1
          %v913 = vrot.slane %v907, 1
          %v914 = vrot.slane %v908, 1
          %915 = vrot.lane.b32.xlu0 %v912, 112
          %v916 = vpop.permute.xlu0 %915
          %917 = vrot.lane.b32.xlu0 %v913, 112
          %v918 = vpop.permute.xlu0 %917
          %919 = vrot.lane.b32.xlu0 %v914, 112
          %v920 = vpop.permute.xlu0 %919
          %v921 = vsel %vm802, %v916, %v918
          %v922 = vsel %vm802, %v918, %v920
          %v926 = vadd.f32 %v902, %v921
          %v927 = vadd.f32 %v903, %v922
          %v928 = vadd.f32 %v904, %v920
          %s929 = sld [smem:[#allocation9 + $0xa]]
          %s930 = sld [smem:[#allocation9 + $0x3b]]
          %v931 = vstv %s929
          %v932 = vmul.f32 %v931, %v609
          %v933 = vmul.f32 %v931, %v610
          %v934 = vmul.f32 %v931, %v611
          %938 = vrot.lane.b32.xlu0 %v932, 112
          %v939 = vpop.permute.xlu0 %938
          %940 = vrot.lane.b32.xlu0 %v933, 112
          %v941 = vpop.permute.xlu0 %940
          %942 = vrot.lane.b32.xlu0 %v934, 112
          %v943 = vpop.permute.xlu0 %942
          %v944 = vsel %vm802, %v939, %v941
          %v945 = vsel %vm802, %v941, %v943
          %v949 = vadd.f32 %v709, %v944
          %v950 = vadd.f32 %v710, %v945
          %v951 = vadd.f32 %v711, %v943
          %v952 = vstv %s930
          %v953 = vmul.f32 %v952, %v609
          %v954 = vmul.f32 %v952, %v610
          %v955 = vmul.f32 %v952, %v611
          %v959 = vrot.slane %v953, 1
          %v960 = vrot.slane %v954, 1
          %v961 = vrot.slane %v955, 1
          %962 = vrot.lane.b32.xlu0 %v959, 112
          %v963 = vpop.permute.xlu0 %962
          %964 = vrot.lane.b32.xlu0 %v960, 112
          %v965 = vpop.permute.xlu0 %964
          %966 = vrot.lane.b32.xlu0 %v961, 112
          %v967 = vpop.permute.xlu0 %966
          %v968 = vsel %vm802, %v963, %v965
          %v969 = vsel %vm802, %v965, %v967
          %v973 = vadd.f32 %v949, %v968
          %v974 = vadd.f32 %v950, %v969
          %v975 = vadd.f32 %v951, %v967
          %s976 = sld [smem:[#allocation9 + $0xb]]
          %s977 = sld [smem:[#allocation9 + $0x3c]]
          %v978 = vstv %s976
          %v979 = vmul.f32 %v978, %v609
          %v980 = vmul.f32 %v978, %v610
          %v981 = vmul.f32 %v978, %v611
          %985 = vrot.lane.b32.xlu0 %v979, 112
          %v986 = vpop.permute.xlu0 %985
          %987 = vrot.lane.b32.xlu0 %v980, 112
          %v988 = vpop.permute.xlu0 %987
          %989 = vrot.lane.b32.xlu0 %v981, 112
          %v990 = vpop.permute.xlu0 %989
          %v991 = vsel %vm802, %v986, %v988
          %v992 = vsel %vm802, %v988, %v990
          %v996 = vadd.f32 %v734, %v991
          %v997 = vadd.f32 %v735, %v992
          %v998 = vadd.f32 %v736, %v990
          %v999 = vstv %s977
          %v1000 = vmul.f32 %v999, %v609
          %v1001 = vmul.f32 %v999, %v610
          %v1002 = vmul.f32 %v999, %v611
          %v1006 = vrot.slane %v1000, 1
          %v1007 = vrot.slane %v1001, 1
          %v1008 = vrot.slane %v1002, 1
          %1009 = vrot.lane.b32.xlu0 %v1006, 112
          %v1010 = vpop.permute.xlu0 %1009
          %1011 = vrot.lane.b32.xlu0 %v1007, 112
          %v1012 = vpop.permute.xlu0 %1011
          %1013 = vrot.lane.b32.xlu0 %v1008, 112
          %v1014 = vpop.permute.xlu0 %1013
          %v1015 = vsel %vm802, %v1010, %v1012
          %v1016 = vsel %vm802, %v1012, %v1014
          %v1020 = vadd.f32 %v996, %v1015
          %v1021 = vadd.f32 %v997, %v1016
          %v1022 = vadd.f32 %v998, %v1014
          %s1023 = sld [smem:[#allocation9 + $0xc]]
          %s1024 = sld [smem:[#allocation9 + $0x3d]]
          %v1025 = vstv %s1023
          %v1026 = vmul.f32 %v1025, %v609
          %v1027 = vmul.f32 %v1025, %v610
          %v1028 = vmul.f32 %v1025, %v611
          %1032 = vrot.lane.b32.xlu0 %v1026, 112
          %v1033 = vpop.permute.xlu0 %1032
          %1034 = vrot.lane.b32.xlu0 %v1027, 112
          %v1035 = vpop.permute.xlu0 %1034
          %1036 = vrot.lane.b32.xlu0 %v1028, 112
          %v1037 = vpop.permute.xlu0 %1036
          %v1038 = vsel %vm802, %v1033, %v1035
          %v1039 = vsel %vm802, %v1035, %v1037
          %v1043 = vadd.f32 %v759, %v1038
          %v1044 = vadd.f32 %v760, %v1039
          %v1045 = vadd.f32 %v761, %v1037
          %v1046 = vstv %s1024
          %v1047 = vmul.f32 %v1046, %v609
          %v1048 = vmul.f32 %v1046, %v610
          %v1049 = vmul.f32 %v1046, %v611
          %v1053 = vrot.slane %v1047, 1
          %v1054 = vrot.slane %v1048, 1
          %v1055 = vrot.slane %v1049, 1
          %1056 = vrot.lane.b32.xlu0 %v1053, 112
          %v1057 = vpop.permute.xlu0 %1056
          %1058 = vrot.lane.b32.xlu0 %v1054, 112
          %v1059 = vpop.permute.xlu0 %1058
          %1060 = vrot.lane.b32.xlu0 %v1055, 112
          %v1061 = vpop.permute.xlu0 %1060
          %v1062 = vsel %vm802, %v1057, %v1059
          %v1063 = vsel %vm802, %v1059, %v1061
          %v1067 = vadd.f32 %v1043, %v1062
          %v1068 = vadd.f32 %v1044, %v1063
          %v1069 = vadd.f32 %v1045, %v1061
          %s1070 = sld [smem:[#allocation9 + $0xd]]
          %s1071 = sld [smem:[#allocation9 + $0x3e]]
          %v1072 = vstv %s1070
          %v1073 = vmul.f32 %v1072, %v609
          %v1074 = vmul.f32 %v1072, %v610
          %v1075 = vmul.f32 %v1072, %v611
          %1079 = vrot.lane.b32.xlu0 %v1073, 112
          %v1080 = vpop.permute.xlu0 %1079
          %1081 = vrot.lane.b32.xlu0 %v1074, 112
          %v1082 = vpop.permute.xlu0 %1081
          %1083 = vrot.lane.b32.xlu0 %v1075, 112
          %v1084 = vpop.permute.xlu0 %1083
          %v1085 = vsel %vm802, %v1080, %v1082
          %v1086 = vsel %vm802, %v1082, %v1084
          %v1090 = vadd.f32 %v784, %v1085
          %v1091 = vadd.f32 %v785, %v1086
          %v1092 = vadd.f32 %v786, %v1084
          %v1093 = vstv %s1071
          %v1094 = vmul.f32 %v1093, %v609
          %v1095 = vmul.f32 %v1093, %v610
          %v1096 = vmul.f32 %v1093, %v611
          %v1100 = vrot.slane %v1094, 1
          %v1101 = vrot.slane %v1095, 1
          %v1102 = vrot.slane %v1096, 1
          %1103 = vrot.lane.b32.xlu0 %v1100, 112
          %v1104 = vpop.permute.xlu0 %1103
          %1105 = vrot.lane.b32.xlu0 %v1101, 112
          %v1106 = vpop.permute.xlu0 %1105
          %1107 = vrot.lane.b32.xlu0 %v1102, 112
          %v1108 = vpop.permute.xlu0 %1107
          %v1109 = vsel %vm802, %v1104, %v1106
          %v1110 = vsel %vm802, %v1106, %v1108
          %v1114 = vadd.f32 %v1090, %v1109
          %v1115 = vadd.f32 %v1091, %v1110
          %v1116 = vadd.f32 %v1092, %v1108
          %s1117 = sld [smem:[#allocation9 + $0xe]]
          %s1118 = sld [smem:[#allocation9 + $0x3f]]
          %v1119 = vstv %s1117
          %v1120 = vmul.f32 %v1119, %v609
          %v1121 = vmul.f32 %v1119, %v610
          %v1122 = vmul.f32 %v1119, %v611
          %1126 = vrot.lane.b32.xlu0 %v1120, 96
          %v1127 = vpop.permute.xlu0 %1126
          %1128 = vrot.lane.b32.xlu0 %v1121, 96
          %v1129 = vpop.permute.xlu0 %1128
          %1130 = vrot.lane.b32.xlu0 %v1122, 96
          %v1131 = vpop.permute.xlu0 %1130
          %vm1132 = vcmask 785408
          %v1133 = vsel %vm1132, %v1127, %v1129
          %v1134 = vsel %vm1132, %v1129, %v1131
          %v1138 = vadd.f32 %v832, %v1133
          %v1139 = vadd.f32 %v833, %v1134
          %v1140 = vadd.f32 %v834, %v1131
          %v1141 = vstv %s1118
          %v1142 = vmul.f32 %v1141, %v609
          %v1143 = vmul.f32 %v1141, %v610
          %v1144 = vmul.f32 %v1141, %v611
          %v1148 = vrot.slane %v1142, 1
          %v1149 = vrot.slane %v1143, 1
          %v1150 = vrot.slane %v1144, 1
          %1151 = vrot.lane.b32.xlu0 %v1148, 96
          %v1152 = vpop.permute.xlu0 %1151
          %1153 = vrot.lane.b32.xlu0 %v1149, 96
          %v1154 = vpop.permute.xlu0 %1153
          %1155 = vrot.lane.b32.xlu0 %v1150, 96
          %v1156 = vpop.permute.xlu0 %1155
          %v1157 = vsel %vm1132, %v1152, %v1154
          %v1158 = vsel %vm1132, %v1154, %v1156
          %v1162 = vadd.f32 %v1138, %v1157
          %v1163 = vadd.f32 %v1139, %v1158
          %v1164 = vadd.f32 %v1140, %v1156
          %s1165 = sld [smem:[#allocation9 + $0xf]]
          %s1166 = sld [smem:[#allocation9 + $0x40]]
          %v1167 = vstv %s1165
          %v1168 = vmul.f32 %v1167, %v609
          %v1169 = vmul.f32 %v1167, %v610
          %v1170 = vmul.f32 %v1167, %v611
          %1174 = vrot.lane.b32.xlu0 %v1168, 96
          %v1175 = vpop.permute.xlu0 %1174
          %1176 = vrot.lane.b32.xlu0 %v1169, 96
          %v1177 = vpop.permute.xlu0 %1176
          %1178 = vrot.lane.b32.xlu0 %v1170, 96
          %v1179 = vpop.permute.xlu0 %1178
          %v1180 = vsel %vm1132, %v1175, %v1177
          %v1181 = vsel %vm1132, %v1177, %v1179
          %v1185 = vadd.f32 %v879, %v1180
          %v1186 = vadd.f32 %v880, %v1181
          %v1187 = vadd.f32 %v881, %v1179
          %v1188 = vstv %s1166
          %v1189 = vmul.f32 %v1188, %v609
          %v1190 = vmul.f32 %v1188, %v610
          %v1191 = vmul.f32 %v1188, %v611
          %v1195 = vrot.slane %v1189, 1
          %v1196 = vrot.slane %v1190, 1
          %v1197 = vrot.slane %v1191, 1
          %1198 = vrot.lane.b32.xlu0 %v1195, 96
          %v1199 = vpop.permute.xlu0 %1198
          %1200 = vrot.lane.b32.xlu0 %v1196, 96
          %v1201 = vpop.permute.xlu0 %1200
          %1202 = vrot.lane.b32.xlu0 %v1197, 96
          %v1203 = vpop.permute.xlu0 %1202
          %v1204 = vsel %vm1132, %v1199, %v1201
          %v1205 = vsel %vm1132, %v1201, %v1203
          %v1209 = vadd.f32 %v1185, %v1204
          %v1210 = vadd.f32 %v1186, %v1205
          %v1211 = vadd.f32 %v1187, %v1203
          %s1212 = sld [smem:[#allocation9 + $0x10]]
          %s1213 = sld [smem:[#allocation9 + $0x41]]
          %v1214 = vstv %s1212
          %v1215 = vmul.f32 %v1214, %v609
          %v1216 = vmul.f32 %v1214, %v610
          %v1217 = vmul.f32 %v1214, %v611
          %1221 = vrot.lane.b32.xlu0 %v1215, 96
          %v1222 = vpop.permute.xlu0 %1221
          %1223 = vrot.lane.b32.xlu0 %v1216, 96
          %v1224 = vpop.permute.xlu0 %1223
          %1225 = vrot.lane.b32.xlu0 %v1217, 96
          %v1226 = vpop.permute.xlu0 %1225
          %v1227 = vsel %vm1132, %v1222, %v1224
          %v1228 = vsel %vm1132, %v1224, %v1226
          %v1232 = vadd.f32 %v926, %v1227
          %v1233 = vadd.f32 %v927, %v1228
          %v1234 = vadd.f32 %v928, %v1226
          %v1235 = vstv %s1213
          %v1236 = vmul.f32 %v1235, %v609
          %v1237 = vmul.f32 %v1235, %v610
          %v1238 = vmul.f32 %v1235, %v611
          %v1242 = vrot.slane %v1236, 1
          %v1243 = vrot.slane %v1237, 1
          %v1244 = vrot.slane %v1238, 1
          %1245 = vrot.lane.b32.xlu0 %v1242, 96
          %v1246 = vpop.permute.xlu0 %1245
          %1247 = vrot.lane.b32.xlu0 %v1243, 96
          %v1248 = vpop.permute.xlu0 %1247
          %1249 = vrot.lane.b32.xlu0 %v1244, 96
          %v1250 = vpop.permute.xlu0 %1249
          %v1251 = vsel %vm1132, %v1246, %v1248
          %v1252 = vsel %vm1132, %v1248, %v1250
          %v1256 = vadd.f32 %v1232, %v1251
          %v1257 = vadd.f32 %v1233, %v1252
          %v1258 = vadd.f32 %v1234, %v1250
          %s1259 = sld [smem:[#allocation9 + $0x11]]
          %s1260 = sld [smem:[#allocation9 + $0x42]]
          %v1261 = vstv %s1259
          %v1262 = vmul.f32 %v1261, %v609
          %v1263 = vmul.f32 %v1261, %v610
          %v1264 = vmul.f32 %v1261, %v611
          %1268 = vrot.lane.b32.xlu0 %v1262, 96
          %v1269 = vpop.permute.xlu0 %1268
          %1270 = vrot.lane.b32.xlu0 %v1263, 96
          %v1271 = vpop.permute.xlu0 %1270
          %1272 = vrot.lane.b32.xlu0 %v1264, 96
          %v1273 = vpop.permute.xlu0 %1272
          %v1274 = vsel %vm1132, %v1269, %v1271
          %v1275 = vsel %vm1132, %v1271, %v1273
          %v1279 = vadd.f32 %v973, %v1274
          %v1280 = vadd.f32 %v974, %v1275
          %v1281 = vadd.f32 %v975, %v1273
          %v1282 = vstv %s1260
          %v1283 = vmul.f32 %v1282, %v609
          %v1284 = vmul.f32 %v1282, %v610
          %v1285 = vmul.f32 %v1282, %v611
          %v1289 = vrot.slane %v1283, 1
          %v1290 = vrot.slane %v1284, 1
          %v1291 = vrot.slane %v1285, 1
          %1292 = vrot.lane.b32.xlu0 %v1289, 96
          %v1293 = vpop.permute.xlu0 %1292
          %1294 = vrot.lane.b32.xlu0 %v1290, 96
          %v1295 = vpop.permute.xlu0 %1294
          %1296 = vrot.lane.b32.xlu0 %v1291, 96
          %v1297 = vpop.permute.xlu0 %1296
          %v1298 = vsel %vm1132, %v1293, %v1295
          %v1299 = vsel %vm1132, %v1295, %v1297
          %v1303 = vadd.f32 %v1279, %v1298
          %v1304 = vadd.f32 %v1280, %v1299
          %v1305 = vadd.f32 %v1281, %v1297
          %s1306 = sld [smem:[#allocation9 + $0x12]]
          %s1307 = sld [smem:[#allocation9 + $0x43]]
          %v1308 = vstv %s1306
          %v1309 = vmul.f32 %v1308, %v609
          %v1310 = vmul.f32 %v1308, %v610
          %v1311 = vmul.f32 %v1308, %v611
          %1315 = vrot.lane.b32.xlu0 %v1309, 96
          %v1316 = vpop.permute.xlu0 %1315
          %1317 = vrot.lane.b32.xlu0 %v1310, 96
          %v1318 = vpop.permute.xlu0 %1317
          %1319 = vrot.lane.b32.xlu0 %v1311, 96
          %v1320 = vpop.permute.xlu0 %1319
          %v1321 = vsel %vm1132, %v1316, %v1318
          %v1322 = vsel %vm1132, %v1318, %v1320
          %v1326 = vadd.f32 %v1020, %v1321
          %v1327 = vadd.f32 %v1021, %v1322
          %v1328 = vadd.f32 %v1022, %v1320
          %v1329 = vstv %s1307
          %v1330 = vmul.f32 %v1329, %v609
          %v1331 = vmul.f32 %v1329, %v610
          %v1332 = vmul.f32 %v1329, %v611
          %v1336 = vrot.slane %v1330, 1
          %v1337 = vrot.slane %v1331, 1
          %v1338 = vrot.slane %v1332, 1
          %1339 = vrot.lane.b32.xlu0 %v1336, 96
          %v1340 = vpop.permute.xlu0 %1339
          %1341 = vrot.lane.b32.xlu0 %v1337, 96
          %v1342 = vpop.permute.xlu0 %1341
          %1343 = vrot.lane.b32.xlu0 %v1338, 96
          %v1344 = vpop.permute.xlu0 %1343
          %v1345 = vsel %vm1132, %v1340, %v1342
          %v1346 = vsel %vm1132, %v1342, %v1344
          %v1350 = vadd.f32 %v1326, %v1345
          %v1351 = vadd.f32 %v1327, %v1346
          %v1352 = vadd.f32 %v1328, %v1344
          %s1353 = sld [smem:[#allocation9 + $0x13]]
          %s1354 = sld [smem:[#allocation9 + $0x44]]
          %v1355 = vstv %s1353
          %v1356 = vmul.f32 %v1355, %v609
          %v1357 = vmul.f32 %v1355, %v610
          %v1358 = vmul.f32 %v1355, %v611
          %1362 = vrot.lane.b32.xlu0 %v1356, 96
          %v1363 = vpop.permute.xlu0 %1362
          %1364 = vrot.lane.b32.xlu0 %v1357, 96
          %v1365 = vpop.permute.xlu0 %1364
          %1366 = vrot.lane.b32.xlu0 %v1358, 96
          %v1367 = vpop.permute.xlu0 %1366
          %v1368 = vsel %vm1132, %v1363, %v1365
          %v1369 = vsel %vm1132, %v1365, %v1367
          %v1373 = vadd.f32 %v1067, %v1368
          %v1374 = vadd.f32 %v1068, %v1369
          %v1375 = vadd.f32 %v1069, %v1367
          %v1376 = vstv %s1354
          %v1377 = vmul.f32 %v1376, %v609
          %v1378 = vmul.f32 %v1376, %v610
          %v1379 = vmul.f32 %v1376, %v611
          %v1383 = vrot.slane %v1377, 1
          %v1384 = vrot.slane %v1378, 1
          %v1385 = vrot.slane %v1379, 1
          %1386 = vrot.lane.b32.xlu0 %v1383, 96
          %v1387 = vpop.permute.xlu0 %1386
          %1388 = vrot.lane.b32.xlu0 %v1384, 96
          %v1389 = vpop.permute.xlu0 %1388
          %1390 = vrot.lane.b32.xlu0 %v1385, 96
          %v1391 = vpop.permute.xlu0 %1390
          %v1392 = vsel %vm1132, %v1387, %v1389
          %v1393 = vsel %vm1132, %v1389, %v1391
          %v1397 = vadd.f32 %v1373, %v1392
          %v1398 = vadd.f32 %v1374, %v1393
          %v1399 = vadd.f32 %v1375, %v1391
          %s1400 = sld [smem:[#allocation9 + $0x14]]
          %s1401 = sld [smem:[#allocation9 + $0x45]]
          %v1402 = vstv %s1400
          %v1403 = vmul.f32 %v1402, %v609
          %v1404 = vmul.f32 %v1402, %v610
          %v1405 = vmul.f32 %v1402, %v611
          %1409 = vrot.lane.b32.xlu0 %v1403, 96
          %v1410 = vpop.permute.xlu0 %1409
          %1411 = vrot.lane.b32.xlu0 %v1404, 96
          %v1412 = vpop.permute.xlu0 %1411
          %1413 = vrot.lane.b32.xlu0 %v1405, 96
          %v1414 = vpop.permute.xlu0 %1413
          %v1415 = vsel %vm1132, %v1410, %v1412
          %v1416 = vsel %vm1132, %v1412, %v1414
          %v1420 = vadd.f32 %v1114, %v1415
          %v1421 = vadd.f32 %v1115, %v1416
          %v1422 = vadd.f32 %v1116, %v1414
          %v1423 = vstv %s1401
          %v1424 = vmul.f32 %v1423, %v609
          %v1425 = vmul.f32 %v1423, %v610
          %v1426 = vmul.f32 %v1423, %v611
          %v1430 = vrot.slane %v1424, 1
          %v1431 = vrot.slane %v1425, 1
          %v1432 = vrot.slane %v1426, 1
          %1433 = vrot.lane.b32.xlu0 %v1430, 96
          %v1434 = vpop.permute.xlu0 %1433
          %1435 = vrot.lane.b32.xlu0 %v1431, 96
          %v1436 = vpop.permute.xlu0 %1435
          %1437 = vrot.lane.b32.xlu0 %v1432, 96
          %v1438 = vpop.permute.xlu0 %1437
          %v1439 = vsel %vm1132, %v1434, %v1436
          %v1440 = vsel %vm1132, %v1436, %v1438
          %v1444 = vadd.f32 %v1420, %v1439
          %v1445 = vadd.f32 %v1421, %v1440
          %v1446 = vadd.f32 %v1422, %v1438
          %s1447 = sld [smem:[#allocation9 + $0x15]]
          %s1448 = sld [smem:[#allocation9 + $0x46]]
          %v1449 = vstv %s1447
          %v1450 = vmul.f32 %v1449, %v610
          %v1451 = vmul.f32 %v1449, %v611
          %1454 = vrot.lane.b32.xlu0 %v1450, 80
          %v1455 = vpop.permute.xlu0 %1454
          %1456 = vrot.lane.b32.xlu0 %v1451, 80
          %v1457 = vpop.permute.xlu0 %1456
          %vm1458 = vcmask 654336
          %v1459 = vsel %vm1458, %v1455, %v1457
          %v1463 = vadd.f32 %v1162, %v1455
          %v1464 = vadd.f32 %v1163, %v1459
          %v1465 = vadd.f32 %v1164, %v1457
          %v1466 = vstv %s1448
          %v1467 = vmul.f32 %v1466, %v610
          %v1468 = vmul.f32 %v1466, %v611
          %v1471 = vrot.slane %v1467, 1
          %v1472 = vrot.slane %v1468, 1
          %1473 = vrot.lane.b32.xlu0 %v1471, 80
          %v1474 = vpop.permute.xlu0 %1473
          %1475 = vrot.lane.b32.xlu0 %v1472, 80
          %v1476 = vpop.permute.xlu0 %1475
          %v1477 = vsel %vm1458, %v1474, %v1476
          %v1481 = vadd.f32 %v1463, %v1474
          %v1482 = vadd.f32 %v1464, %v1477
          %v1483 = vadd.f32 %v1465, %v1476
          %s1484 = sld [smem:[#allocation9 + $0x16]]
          %s1485 = sld [smem:[#allocation9 + $0x47]]
          %v1486 = vstv %s1484
          %v1487 = vmul.f32 %v1486, %v610
          %v1488 = vmul.f32 %v1486, %v611
          %1491 = vrot.lane.b32.xlu0 %v1487, 80
          %v1492 = vpop.permute.xlu0 %1491
          %1493 = vrot.lane.b32.xlu0 %v1488, 80
          %v1494 = vpop.permute.xlu0 %1493
          %v1495 = vsel %vm1458, %v1492, %v1494
          %v1499 = vadd.f32 %v1209, %v1492
          %v1500 = vadd.f32 %v1210, %v1495
          %v1501 = vadd.f32 %v1211, %v1494
          %v1502 = vstv %s1485
          %v1503 = vmul.f32 %v1502, %v610
          %v1504 = vmul.f32 %v1502, %v611
          %v1507 = vrot.slane %v1503, 1
          %v1508 = vrot.slane %v1504, 1
          %1509 = vrot.lane.b32.xlu0 %v1507, 80
          %v1510 = vpop.permute.xlu0 %1509
          %1511 = vrot.lane.b32.xlu0 %v1508, 80
          %v1512 = vpop.permute.xlu0 %1511
          %v1513 = vsel %vm1458, %v1510, %v1512
          %v1517 = vadd.f32 %v1499, %v1510
          %v1518 = vadd.f32 %v1500, %v1513
          %v1519 = vadd.f32 %v1501, %v1512
          %s1520 = sld [smem:[#allocation9 + $0x17]]
          %s1521 = sld [smem:[#allocation9 + $0x48]]
          %v1522 = vstv %s1520
          %v1523 = vmul.f32 %v1522, %v610
          %v1524 = vmul.f32 %v1522, %v611
          %1527 = vrot.lane.b32.xlu0 %v1523, 80
          %v1528 = vpop.permute.xlu0 %1527
          %1529 = vrot.lane.b32.xlu0 %v1524, 80
          %v1530 = vpop.permute.xlu0 %1529
          %v1531 = vsel %vm1458, %v1528, %v1530
          %v1535 = vadd.f32 %v1256, %v1528
          %v1536 = vadd.f32 %v1257, %v1531
          %v1537 = vadd.f32 %v1258, %v1530
          %v1538 = vstv %s1521
          %v1539 = vmul.f32 %v1538, %v610
          %v1540 = vmul.f32 %v1538, %v611
          %v1543 = vrot.slane %v1539, 1
          %v1544 = vrot.slane %v1540, 1
          %1545 = vrot.lane.b32.xlu0 %v1543, 80
          %v1546 = vpop.permute.xlu0 %1545
          %1547 = vrot.lane.b32.xlu0 %v1544, 80
          %v1548 = vpop.permute.xlu0 %1547
          %v1549 = vsel %vm1458, %v1546, %v1548
          %v1553 = vadd.f32 %v1535, %v1546
          %v1554 = vadd.f32 %v1536, %v1549
          %v1555 = vadd.f32 %v1537, %v1548
          %s1556 = sld [smem:[#allocation9 + $0x18]]
          %s1557 = sld [smem:[#allocation9 + $0x49]]
          %v1558 = vstv %s1556
          %v1559 = vmul.f32 %v1558, %v610
          %v1560 = vmul.f32 %v1558, %v611
          %1563 = vrot.lane.b32.xlu0 %v1559, 80
          %v1564 = vpop.permute.xlu0 %1563
          %1565 = vrot.lane.b32.xlu0 %v1560, 80
          %v1566 = vpop.permute.xlu0 %1565
          %v1567 = vsel %vm1458, %v1564, %v1566
          %v1571 = vadd.f32 %v1303, %v1564
          %v1572 = vadd.f32 %v1304, %v1567
          %v1573 = vadd.f32 %v1305, %v1566
          %v1574 = vstv %s1557
          %v1575 = vmul.f32 %v1574, %v610
          %v1576 = vmul.f32 %v1574, %v611
          %v1579 = vrot.slane %v1575, 1
          %v1580 = vrot.slane %v1576, 1
          %1581 = vrot.lane.b32.xlu0 %v1579, 80
          %v1582 = vpop.permute.xlu0 %1581
          %1583 = vrot.lane.b32.xlu0 %v1580, 80
          %v1584 = vpop.permute.xlu0 %1583
          %v1585 = vsel %vm1458, %v1582, %v1584
          %v1589 = vadd.f32 %v1571, %v1582
          %v1590 = vadd.f32 %v1572, %v1585
          %v1591 = vadd.f32 %v1573, %v1584
          %s1592 = sld [smem:[#allocation9 + $0x19]]
          %s1593 = sld [smem:[#allocation9 + $0x4a]]
          %v1594 = vstv %s1592
          %v1595 = vmul.f32 %v1594, %v610
          %v1596 = vmul.f32 %v1594, %v611
          %1599 = vrot.lane.b32.xlu0 %v1595, 80
          %v1600 = vpop.permute.xlu0 %1599
          %1601 = vrot.lane.b32.xlu0 %v1596, 80
          %v1602 = vpop.permute.xlu0 %1601
          %v1603 = vsel %vm1458, %v1600, %v1602
          %v1607 = vadd.f32 %v1350, %v1600
          %v1608 = vadd.f32 %v1351, %v1603
          %v1609 = vadd.f32 %v1352, %v1602
          %v1610 = vstv %s1593
          %v1611 = vmul.f32 %v1610, %v610
          %v1612 = vmul.f32 %v1610, %v611
          %v1615 = vrot.slane %v1611, 1
          %v1616 = vrot.slane %v1612, 1
          %1617 = vrot.lane.b32.xlu0 %v1615, 80
          %v1618 = vpop.permute.xlu0 %1617
          %1619 = vrot.lane.b32.xlu0 %v1616, 80
          %v1620 = vpop.permute.xlu0 %1619
          %v1621 = vsel %vm1458, %v1618, %v1620
          %v1625 = vadd.f32 %v1607, %v1618
          %v1626 = vadd.f32 %v1608, %v1621
          %v1627 = vadd.f32 %v1609, %v1620
          %s1628 = sld [smem:[#allocation9 + $0x1a]]
          %s1629 = sld [smem:[#allocation9 + $0x4b]]
          %v1630 = vstv %s1628
          %v1631 = vmul.f32 %v1630, %v610
          %v1632 = vmul.f32 %v1630, %v611
          %1635 = vrot.lane.b32.xlu0 %v1631, 80
          %v1636 = vpop.permute.xlu0 %1635
          %1637 = vrot.lane.b32.xlu0 %v1632, 80
          %v1638 = vpop.permute.xlu0 %1637
          %v1639 = vsel %vm1458, %v1636, %v1638
          %v1643 = vadd.f32 %v1397, %v1636
          %v1644 = vadd.f32 %v1398, %v1639
          %v1645 = vadd.f32 %v1399, %v1638
          %v1646 = vstv %s1629
          %v1647 = vmul.f32 %v1646, %v610
          %v1648 = vmul.f32 %v1646, %v611
          %v1651 = vrot.slane %v1647, 1
          %v1652 = vrot.slane %v1648, 1
          %1653 = vrot.lane.b32.xlu0 %v1651, 80
          %v1654 = vpop.permute.xlu0 %1653
          %1655 = vrot.lane.b32.xlu0 %v1652, 80
          %v1656 = vpop.permute.xlu0 %1655
          %v1657 = vsel %vm1458, %v1654, %v1656
          %v1661 = vadd.f32 %v1643, %v1654
          %v1662 = vadd.f32 %v1644, %v1657
          %v1663 = vadd.f32 %v1645, %v1656
          %s1664 = sld [smem:[#allocation9 + $0x1b]]
          %s1665 = sld [smem:[#allocation9 + $0x4c]]
          %v1666 = vstv %s1664
          %v1667 = vmul.f32 %v1666, %v610
          %v1668 = vmul.f32 %v1666, %v611
          %1671 = vrot.lane.b32.xlu0 %v1667, 80
          %v1672 = vpop.permute.xlu0 %1671
          %1673 = vrot.lane.b32.xlu0 %v1668, 80
          %v1674 = vpop.permute.xlu0 %1673
          %v1675 = vsel %vm1458, %v1672, %v1674
          %v1679 = vadd.f32 %v1444, %v1672
          %v1680 = vadd.f32 %v1445, %v1675
          %v1681 = vadd.f32 %v1446, %v1674
          %v1682 = vstv %s1665
          %v1683 = vmul.f32 %v1682, %v610
          %v1684 = vmul.f32 %v1682, %v611
          %v1687 = vrot.slane %v1683, 1
          %v1688 = vrot.slane %v1684, 1
          %1689 = vrot.lane.b32.xlu0 %v1687, 80
          %v1690 = vpop.permute.xlu0 %1689
          %1691 = vrot.lane.b32.xlu0 %v1688, 80
          %v1692 = vpop.permute.xlu0 %1691
          %v1693 = vsel %vm1458, %v1690, %v1692
          %v1697 = vadd.f32 %v1679, %v1690
          %v1698 = vadd.f32 %v1680, %v1693
          %v1699 = vadd.f32 %v1681, %v1692
          %v1700 = vld [vmem:[#allocation2 + $0x8] sm:$0x3]
          %v1701 = vld [vmem:[#allocation2 + $0x10] sm:$0x3]
          %v1702 = vld [vmem:[#allocation2 + $0x18] sm:$0x3]
          %s1703 = sld [smem:[#allocation9 + $0x1c]]
          %s1704 = sld [smem:[#allocation9 + $0x4d]]
          %v1705 = vstv %s1703
          %v1706 = vmul.f32 %v1705, %v1700
          %v1707 = vmul.f32 %v1705, %v1701
          %v1708 = vmul.f32 %v1705, %v1702
          %1712 = vrot.lane.b32.xlu0 %v1706, 64
          %v1713 = vpop.permute.xlu0 %1712
          %1714 = vrot.lane.b32.xlu0 %v1707, 64
          %v1715 = vpop.permute.xlu0 %1714
          %1716 = vrot.lane.b32.xlu0 %v1708, 64
          %v1717 = vpop.permute.xlu0 %1716
          %vm1718 = vcmask 523264
          %v1719 = vsel %vm1718, %v1713, %v1715
          %v1720 = vsel %vm1718, %v1715, %v1717
          %v1724 = vadd.f32 %v1481, %v1713
          %v1725 = vadd.f32 %v1482, %v1719
          %v1726 = vadd.f32 %v1483, %v1720
          %v1727 = vstv %s1704
          %v1728 = vmul.f32 %v1727, %v1700
          %v1729 = vmul.f32 %v1727, %v1701
          %v1730 = vmul.f32 %v1727, %v1702
          %v1734 = vrot.slane %v1728, 1
          %v1735 = vrot.slane %v1729, 1
          %v1736 = vrot.slane %v1730, 1
          %1737 = vrot.lane.b32.xlu0 %v1734, 64
          %v1738 = vpop.permute.xlu0 %1737
          %1739 = vrot.lane.b32.xlu0 %v1735, 64
          %v1740 = vpop.permute.xlu0 %1739
          %1741 = vrot.lane.b32.xlu0 %v1736, 64
          %v1742 = vpop.permute.xlu0 %1741
          %v1743 = vsel %vm1718, %v1738, %v1740
          %v1744 = vsel %vm1718, %v1740, %v1742
          %v1748 = vadd.f32 %v1724, %v1738
          %v1749 = vadd.f32 %v1725, %v1743
          %v1750 = vadd.f32 %v1726, %v1744
          %s1751 = sld [smem:[#allocation9 + $0x1d]]
          %s1752 = sld [smem:[#allocation9 + $0x4e]]
          %v1753 = vstv %s1751
          %v1754 = vmul.f32 %v1753, %v1700
          %v1755 = vmul.f32 %v1753, %v1701
          %v1756 = vmul.f32 %v1753, %v1702
          %1760 = vrot.lane.b32.xlu0 %v1754, 64
          %v1761 = vpop.permute.xlu0 %1760
          %1762 = vrot.lane.b32.xlu0 %v1755, 64
          %v1763 = vpop.permute.xlu0 %1762
          %1764 = vrot.lane.b32.xlu0 %v1756, 64
          %v1765 = vpop.permute.xlu0 %1764
          %v1766 = vsel %vm1718, %v1761, %v1763
          %v1767 = vsel %vm1718, %v1763, %v1765
          %v1771 = vadd.f32 %v1517, %v1761
          %v1772 = vadd.f32 %v1518, %v1766
          %v1773 = vadd.f32 %v1519, %v1767
          %v1774 = vstv %s1752
          %v1775 = vmul.f32 %v1774, %v1700
          %v1776 = vmul.f32 %v1774, %v1701
          %v1777 = vmul.f32 %v1774, %v1702
          %v1781 = vrot.slane %v1775, 1
          %v1782 = vrot.slane %v1776, 1
          %v1783 = vrot.slane %v1777, 1
          %1784 = vrot.lane.b32.xlu0 %v1781, 64
          %v1785 = vpop.permute.xlu0 %1784
          %1786 = vrot.lane.b32.xlu0 %v1782, 64
          %v1787 = vpop.permute.xlu0 %1786
          %1788 = vrot.lane.b32.xlu0 %v1783, 64
          %v1789 = vpop.permute.xlu0 %1788
          %v1790 = vsel %vm1718, %v1785, %v1787
          %v1791 = vsel %vm1718, %v1787, %v1789
          %v1795 = vadd.f32 %v1771, %v1785
          %v1796 = vadd.f32 %v1772, %v1790
          %v1797 = vadd.f32 %v1773, %v1791
          %s1798 = sld [smem:[#allocation9 + $0x1e]]
          %s1799 = sld [smem:[#allocation9 + $0x4f]]
          %v1800 = vstv %s1798
          %v1801 = vmul.f32 %v1800, %v1700
          %v1802 = vmul.f32 %v1800, %v1701
          %v1803 = vmul.f32 %v1800, %v1702
          %1807 = vrot.lane.b32.xlu0 %v1801, 64
          %v1808 = vpop.permute.xlu0 %1807
          %1809 = vrot.lane.b32.xlu0 %v1802, 64
          %v1810 = vpop.permute.xlu0 %1809
          %1811 = vrot.lane.b32.xlu0 %v1803, 64
          %v1812 = vpop.permute.xlu0 %1811
          %v1813 = vsel %vm1718, %v1808, %v1810
          %v1814 = vsel %vm1718, %v1810, %v1812
          %v1818 = vadd.f32 %v1553, %v1808
          %v1819 = vadd.f32 %v1554, %v1813
          %v1820 = vadd.f32 %v1555, %v1814
          %v1821 = vstv %s1799
          %v1822 = vmul.f32 %v1821, %v1700
          %v1823 = vmul.f32 %v1821, %v1701
          %v1824 = vmul.f32 %v1821, %v1702
          %v1828 = vrot.slane %v1822, 1
          %v1829 = vrot.slane %v1823, 1
          %v1830 = vrot.slane %v1824, 1
          %1831 = vrot.lane.b32.xlu0 %v1828, 64
          %v1832 = vpop.permute.xlu0 %1831
          %1833 = vrot.lane.b32.xlu0 %v1829, 64
          %v1834 = vpop.permute.xlu0 %1833
          %1835 = vrot.lane.b32.xlu0 %v1830, 64
          %v1836 = vpop.permute.xlu0 %1835
          %v1837 = vsel %vm1718, %v1832, %v1834
          %v1838 = vsel %vm1718, %v1834, %v1836
          %v1842 = vadd.f32 %v1818, %v1832
          %v1843 = vadd.f32 %v1819, %v1837
          %v1844 = vadd.f32 %v1820, %v1838
          %s1845 = sld [smem:[#allocation9 + $0x1f]]
          %s1846 = sld [smem:[#allocation9 + $0x50]]
          %v1847 = vstv %s1845
          %v1848 = vmul.f32 %v1847, %v1700
          %v1849 = vmul.f32 %v1847, %v1701
          %v1850 = vmul.f32 %v1847, %v1702
          %1854 = vrot.lane.b32.xlu0 %v1848, 64
          %v1855 = vpop.permute.xlu0 %1854
          %1856 = vrot.lane.b32.xlu0 %v1849, 64
          %v1857 = vpop.permute.xlu0 %1856
          %1858 = vrot.lane.b32.xlu0 %v1850, 64
          %v1859 = vpop.permute.xlu0 %1858
          %v1860 = vsel %vm1718, %v1855, %v1857
          %v1861 = vsel %vm1718, %v1857, %v1859
          %v1865 = vadd.f32 %v1589, %v1855
          %v1866 = vadd.f32 %v1590, %v1860
          %v1867 = vadd.f32 %v1591, %v1861
          %v1868 = vstv %s1846
          %v1869 = vmul.f32 %v1868, %v1700
          %v1870 = vmul.f32 %v1868, %v1701
          %v1871 = vmul.f32 %v1868, %v1702
          %v1875 = vrot.slane %v1869, 1
          %v1876 = vrot.slane %v1870, 1
          %v1877 = vrot.slane %v1871, 1
          %1878 = vrot.lane.b32.xlu0 %v1875, 64
          %v1879 = vpop.permute.xlu0 %1878
          %1880 = vrot.lane.b32.xlu0 %v1876, 64
          %v1881 = vpop.permute.xlu0 %1880
          %1882 = vrot.lane.b32.xlu0 %v1877, 64
          %v1883 = vpop.permute.xlu0 %1882
          %v1884 = vsel %vm1718, %v1879, %v1881
          %v1885 = vsel %vm1718, %v1881, %v1883
          %v1889 = vadd.f32 %v1865, %v1879
          %v1890 = vadd.f32 %v1866, %v1884
          %v1891 = vadd.f32 %v1867, %v1885
          %s1892 = sld [smem:[#allocation9 + $0x20]]
          %s1893 = sld [smem:[#allocation9 + $0x51]]
          %v1894 = vstv %s1892
          %v1895 = vmul.f32 %v1894, %v1700
          %v1896 = vmul.f32 %v1894, %v1701
          %v1897 = vmul.f32 %v1894, %v1702
          %1901 = vrot.lane.b32.xlu0 %v1895, 64
          %v1902 = vpop.permute.xlu0 %1901
          %1903 = vrot.lane.b32.xlu0 %v1896, 64
          %v1904 = vpop.permute.xlu0 %1903
          %1905 = vrot.lane.b32.xlu0 %v1897, 64
          %v1906 = vpop.permute.xlu0 %1905
          %v1907 = vsel %vm1718, %v1902, %v1904
          %v1908 = vsel %vm1718, %v1904, %v1906
          %v1912 = vadd.f32 %v1625, %v1902
          %v1913 = vadd.f32 %v1626, %v1907
          %v1914 = vadd.f32 %v1627, %v1908
          %v1915 = vstv %s1893
          %v1916 = vmul.f32 %v1915, %v1700
          %v1917 = vmul.f32 %v1915, %v1701
          %v1918 = vmul.f32 %v1915, %v1702
          %v1922 = vrot.slane %v1916, 1
          %v1923 = vrot.slane %v1917, 1
          %v1924 = vrot.slane %v1918, 1
          %1925 = vrot.lane.b32.xlu0 %v1922, 64
          %v1926 = vpop.permute.xlu0 %1925
          %1927 = vrot.lane.b32.xlu0 %v1923, 64
          %v1928 = vpop.permute.xlu0 %1927
          %1929 = vrot.lane.b32.xlu0 %v1924, 64
          %v1930 = vpop.permute.xlu0 %1929
          %v1931 = vsel %vm1718, %v1926, %v1928
          %v1932 = vsel %vm1718, %v1928, %v1930
          %v1936 = vadd.f32 %v1912, %v1926
          %v1937 = vadd.f32 %v1913, %v1931
          %v1938 = vadd.f32 %v1914, %v1932
          %s1939 = sld [smem:[#allocation9 + $0x21]]
          %s1940 = sld [smem:[#allocation9 + $0x52]]
          %v1941 = vstv %s1939
          %v1942 = vmul.f32 %v1941, %v1700
          %v1943 = vmul.f32 %v1941, %v1701
          %v1944 = vmul.f32 %v1941, %v1702
          %1948 = vrot.lane.b32.xlu0 %v1942, 64
          %v1949 = vpop.permute.xlu0 %1948
          %1950 = vrot.lane.b32.xlu0 %v1943, 64
          %v1951 = vpop.permute.xlu0 %1950
          %1952 = vrot.lane.b32.xlu0 %v1944, 64
          %v1953 = vpop.permute.xlu0 %1952
          %v1954 = vsel %vm1718, %v1949, %v1951
          %v1955 = vsel %vm1718, %v1951, %v1953
          %v1959 = vadd.f32 %v1661, %v1949
          %v1960 = vadd.f32 %v1662, %v1954
          %v1961 = vadd.f32 %v1663, %v1955
          %v1962 = vstv %s1940
          %v1963 = vmul.f32 %v1962, %v1700
          %v1964 = vmul.f32 %v1962, %v1701
          %v1965 = vmul.f32 %v1962, %v1702
          %v1969 = vrot.slane %v1963, 1
          %v1970 = vrot.slane %v1964, 1
          %v1971 = vrot.slane %v1965, 1
          %1972 = vrot.lane.b32.xlu0 %v1969, 64
          %v1973 = vpop.permute.xlu0 %1972
          %1974 = vrot.lane.b32.xlu0 %v1970, 64
          %v1975 = vpop.permute.xlu0 %1974
          %1976 = vrot.lane.b32.xlu0 %v1971, 64
          %v1977 = vpop.permute.xlu0 %1976
          %v1978 = vsel %vm1718, %v1973, %v1975
          %v1979 = vsel %vm1718, %v1975, %v1977
          %v1983 = vadd.f32 %v1959, %v1973
          %v1984 = vadd.f32 %v1960, %v1978
          %v1985 = vadd.f32 %v1961, %v1979
          %s1986 = sld [smem:[#allocation9 + $0x22]]
          %s1987 = sld [smem:[#allocation9 + $0x53]]
          %v1988 = vstv %s1986
          %v1989 = vmul.f32 %v1988, %v1700
          %v1990 = vmul.f32 %v1988, %v1701
          %v1991 = vmul.f32 %v1988, %v1702
          %1995 = vrot.lane.b32.xlu0 %v1989, 64
          %v1996 = vpop.permute.xlu0 %1995
          %1997 = vrot.lane.b32.xlu0 %v1990, 64
          %v1998 = vpop.permute.xlu0 %1997
          %1999 = vrot.lane.b32.xlu0 %v1991, 64
          %v2000 = vpop.permute.xlu0 %1999
          %v2001 = vsel %vm1718, %v1996, %v1998
          %v2002 = vsel %vm1718, %v1998, %v2000
          %v2006 = vadd.f32 %v1697, %v1996
          %v2007 = vadd.f32 %v1698, %v2001
          %v2008 = vadd.f32 %v1699, %v2002
          %v2009 = vstv %s1987
          %v2010 = vmul.f32 %v2009, %v1700
          %v2011 = vmul.f32 %v2009, %v1701
          %v2012 = vmul.f32 %v2009, %v1702
          %v2016 = vrot.slane %v2010, 1
          %v2017 = vrot.slane %v2011, 1
          %v2018 = vrot.slane %v2012, 1
          %2019 = vrot.lane.b32.xlu0 %v2016, 64
          %v2020 = vpop.permute.xlu0 %2019
          %2021 = vrot.lane.b32.xlu0 %v2017, 64
          %v2022 = vpop.permute.xlu0 %2021
          %2023 = vrot.lane.b32.xlu0 %v2018, 64
          %v2024 = vpop.permute.xlu0 %2023
          %v2025 = vsel %vm1718, %v2020, %v2022
          %v2026 = vsel %vm1718, %v2022, %v2024
          %v2030 = vadd.f32 %v2006, %v2020
          %v2031 = vadd.f32 %v2007, %v2025
          %v2032 = vadd.f32 %v2008, %v2026
          %s2033 = sld [smem:[#allocation9 + $0x23]]
          %s2034 = sld [smem:[#allocation9 + $0x54]]
          %v2035 = vstv %s2033
          %v2036 = vmul.f32 %v2035, %v1700
          %v2037 = vmul.f32 %v2035, %v1701
          %v2038 = vmul.f32 %v2035, %v1702
          %2042 = vrot.lane.b32.xlu0 %v2036, 48
          %v2043 = vpop.permute.xlu0 %2042
          %2044 = vrot.lane.b32.xlu0 %v2037, 48
          %v2045 = vpop.permute.xlu0 %2044
          %2046 = vrot.lane.b32.xlu0 %v2038, 48
          %v2047 = vpop.permute.xlu0 %2046
          %vm2048 = vcmask 392192
          %v2049 = vsel %vm2048, %v2043, %v2045
          %v2050 = vsel %vm2048, %v2045, %v2047
          %v2054 = vadd.f32 %v1748, %v2043
          %v2055 = vadd.f32 %v1749, %v2049
          %v2056 = vadd.f32 %v1750, %v2050
          %v2057 = vstv %s2034
          %v2058 = vmul.f32 %v2057, %v1700
          %v2059 = vmul.f32 %v2057, %v1701
          %v2060 = vmul.f32 %v2057, %v1702
          %v2064 = vrot.slane %v2058, 1
          %v2065 = vrot.slane %v2059, 1
          %v2066 = vrot.slane %v2060, 1
          %2067 = vrot.lane.b32.xlu0 %v2064, 48
          %v2068 = vpop.permute.xlu0 %2067
          %2069 = vrot.lane.b32.xlu0 %v2065, 48
          %v2070 = vpop.permute.xlu0 %2069
          %2071 = vrot.lane.b32.xlu0 %v2066, 48
          %v2072 = vpop.permute.xlu0 %2071
          %v2073 = vsel %vm2048, %v2068, %v2070
          %v2074 = vsel %vm2048, %v2070, %v2072
          %v2078 = vadd.f32 %v2054, %v2068
          %v2079 = vadd.f32 %v2055, %v2073
          %v2080 = vadd.f32 %v2056, %v2074
          %s2081 = sld [smem:[#allocation9 + $0x24]]
          %s2082 = sld [smem:[#allocation9 + $0x55]]
          %v2083 = vstv %s2081
          %v2084 = vmul.f32 %v2083, %v1700
          %v2085 = vmul.f32 %v2083, %v1701
          %v2086 = vmul.f32 %v2083, %v1702
          %2090 = vrot.lane.b32.xlu0 %v2084, 48
          %v2091 = vpop.permute.xlu0 %2090
          %2092 = vrot.lane.b32.xlu0 %v2085, 48
          %v2093 = vpop.permute.xlu0 %2092
          %2094 = vrot.lane.b32.xlu0 %v2086, 48
          %v2095 = vpop.permute.xlu0 %2094
          %v2096 = vsel %vm2048, %v2091, %v2093
          %v2097 = vsel %vm2048, %v2093, %v2095
          %v2101 = vadd.f32 %v1795, %v2091
          %v2102 = vadd.f32 %v1796, %v2096
          %v2103 = vadd.f32 %v1797, %v2097
          %v2104 = vstv %s2082
          %v2105 = vmul.f32 %v2104, %v1700
          %v2106 = vmul.f32 %v2104, %v1701
          %v2107 = vmul.f32 %v2104, %v1702
          %v2111 = vrot.slane %v2105, 1
          %v2112 = vrot.slane %v2106, 1
          %v2113 = vrot.slane %v2107, 1
          %2114 = vrot.lane.b32.xlu0 %v2111, 48
          %v2115 = vpop.permute.xlu0 %2114
          %2116 = vrot.lane.b32.xlu0 %v2112, 48
          %v2117 = vpop.permute.xlu0 %2116
          %2118 = vrot.lane.b32.xlu0 %v2113, 48
          %v2119 = vpop.permute.xlu0 %2118
          %v2120 = vsel %vm2048, %v2115, %v2117
          %v2121 = vsel %vm2048, %v2117, %v2119
          %v2125 = vadd.f32 %v2101, %v2115
          %v2126 = vadd.f32 %v2102, %v2120
          %v2127 = vadd.f32 %v2103, %v2121
          %s2128 = sld [smem:[#allocation9 + $0x25]]
          %s2129 = sld [smem:[#allocation9 + $0x56]]
          %v2130 = vstv %s2128
          %v2131 = vmul.f32 %v2130, %v1700
          %v2132 = vmul.f32 %v2130, %v1701
          %v2133 = vmul.f32 %v2130, %v1702
          %2137 = vrot.lane.b32.xlu0 %v2131, 48
          %v2138 = vpop.permute.xlu0 %2137
          %2139 = vrot.lane.b32.xlu0 %v2132, 48
          %v2140 = vpop.permute.xlu0 %2139
          %2141 = vrot.lane.b32.xlu0 %v2133, 48
          %v2142 = vpop.permute.xlu0 %2141
          %v2143 = vsel %vm2048, %v2138, %v2140
          %v2144 = vsel %vm2048, %v2140, %v2142
          %v2148 = vadd.f32 %v1842, %v2138
          %v2149 = vadd.f32 %v1843, %v2143
          %v2150 = vadd.f32 %v1844, %v2144
          %v2151 = vstv %s2129
          %v2152 = vmul.f32 %v2151, %v1700
          %v2153 = vmul.f32 %v2151, %v1701
          %v2154 = vmul.f32 %v2151, %v1702
          %v2158 = vrot.slane %v2152, 1
          %v2159 = vrot.slane %v2153, 1
          %v2160 = vrot.slane %v2154, 1
          %2161 = vrot.lane.b32.xlu0 %v2158, 48
          %v2162 = vpop.permute.xlu0 %2161
          %2163 = vrot.lane.b32.xlu0 %v2159, 48
          %v2164 = vpop.permute.xlu0 %2163
          %2165 = vrot.lane.b32.xlu0 %v2160, 48
          %v2166 = vpop.permute.xlu0 %2165
          %v2167 = vsel %vm2048, %v2162, %v2164
          %v2168 = vsel %vm2048, %v2164, %v2166
          %v2172 = vadd.f32 %v2148, %v2162
          %v2173 = vadd.f32 %v2149, %v2167
          %v2174 = vadd.f32 %v2150, %v2168
          %s2175 = sld [smem:[#allocation9 + $0x26]]
          %s2176 = sld [smem:[#allocation9 + $0x57]]
          %v2177 = vstv %s2175
          %v2178 = vmul.f32 %v2177, %v1700
          %v2179 = vmul.f32 %v2177, %v1701
          %v2180 = vmul.f32 %v2177, %v1702
          %2184 = vrot.lane.b32.xlu0 %v2178, 48
          %v2185 = vpop.permute.xlu0 %2184
          %2186 = vrot.lane.b32.xlu0 %v2179, 48
          %v2187 = vpop.permute.xlu0 %2186
          %2188 = vrot.lane.b32.xlu0 %v2180, 48
          %v2189 = vpop.permute.xlu0 %2188
          %v2190 = vsel %vm2048, %v2185, %v2187
          %v2191 = vsel %vm2048, %v2187, %v2189
          %v2195 = vadd.f32 %v1889, %v2185
          %v2196 = vadd.f32 %v1890, %v2190
          %v2197 = vadd.f32 %v1891, %v2191
          %v2198 = vstv %s2176
          %v2199 = vmul.f32 %v2198, %v1700
          %v2200 = vmul.f32 %v2198, %v1701
          %v2201 = vmul.f32 %v2198, %v1702
          %v2205 = vrot.slane %v2199, 1
          %v2206 = vrot.slane %v2200, 1
          %v2207 = vrot.slane %v2201, 1
          %2208 = vrot.lane.b32.xlu0 %v2205, 48
          %v2209 = vpop.permute.xlu0 %2208
          %2210 = vrot.lane.b32.xlu0 %v2206, 48
          %v2211 = vpop.permute.xlu0 %2210
          %2212 = vrot.lane.b32.xlu0 %v2207, 48
          %v2213 = vpop.permute.xlu0 %2212
          %v2214 = vsel %vm2048, %v2209, %v2211
          %v2215 = vsel %vm2048, %v2211, %v2213
          %v2219 = vadd.f32 %v2195, %v2209
          %v2220 = vadd.f32 %v2196, %v2214
          %v2221 = vadd.f32 %v2197, %v2215
          %s2222 = sld [smem:[#allocation9 + $0x27]]
          %s2223 = sld [smem:[#allocation9 + $0x58]]
          %v2224 = vstv %s2222
          %v2225 = vmul.f32 %v2224, %v1700
          %v2226 = vmul.f32 %v2224, %v1701
          %v2227 = vmul.f32 %v2224, %v1702
          %2231 = vrot.lane.b32.xlu0 %v2225, 48
          %v2232 = vpop.permute.xlu0 %2231
          %2233 = vrot.lane.b32.xlu0 %v2226, 48
          %v2234 = vpop.permute.xlu0 %2233
          %2235 = vrot.lane.b32.xlu0 %v2227, 48
          %v2236 = vpop.permute.xlu0 %2235
          %v2237 = vsel %vm2048, %v2232, %v2234
          %v2238 = vsel %vm2048, %v2234, %v2236
          %v2242 = vadd.f32 %v1936, %v2232
          %v2243 = vadd.f32 %v1937, %v2237
          %v2244 = vadd.f32 %v1938, %v2238
          %v2245 = vstv %s2223
          %v2246 = vmul.f32 %v2245, %v1700
          %v2247 = vmul.f32 %v2245, %v1701
          %v2248 = vmul.f32 %v2245, %v1702
          %v2252 = vrot.slane %v2246, 1
          %v2253 = vrot.slane %v2247, 1
          %v2254 = vrot.slane %v2248, 1
          %2255 = vrot.lane.b32.xlu0 %v2252, 48
          %v2256 = vpop.permute.xlu0 %2255
          %2257 = vrot.lane.b32.xlu0 %v2253, 48
          %v2258 = vpop.permute.xlu0 %2257
          %2259 = vrot.lane.b32.xlu0 %v2254, 48
          %v2260 = vpop.permute.xlu0 %2259
          %v2261 = vsel %vm2048, %v2256, %v2258
          %v2262 = vsel %vm2048, %v2258, %v2260
          %v2266 = vadd.f32 %v2242, %v2256
          %v2267 = vadd.f32 %v2243, %v2261
          %v2268 = vadd.f32 %v2244, %v2262
          %s2269 = sld [smem:[#allocation9 + $0x28]]
          %s2270 = sld [smem:[#allocation9 + $0x59]]
          %v2271 = vstv %s2269
          %v2272 = vmul.f32 %v2271, %v1700
          %v2273 = vmul.f32 %v2271, %v1701
          %v2274 = vmul.f32 %v2271, %v1702
          %2278 = vrot.lane.b32.xlu0 %v2272, 48
          %v2279 = vpop.permute.xlu0 %2278
          %2280 = vrot.lane.b32.xlu0 %v2273, 48
          %v2281 = vpop.permute.xlu0 %2280
          %2282 = vrot.lane.b32.xlu0 %v2274, 48
          %v2283 = vpop.permute.xlu0 %2282
          %v2284 = vsel %vm2048, %v2279, %v2281
          %v2285 = vsel %vm2048, %v2281, %v2283
          %v2289 = vadd.f32 %v1983, %v2279
          %v2290 = vadd.f32 %v1984, %v2284
          %v2291 = vadd.f32 %v1985, %v2285
          %v2292 = vstv %s2270
          %v2293 = vmul.f32 %v2292, %v1700
          %v2294 = vmul.f32 %v2292, %v1701
          %v2295 = vmul.f32 %v2292, %v1702
          %v2299 = vrot.slane %v2293, 1
          %v2300 = vrot.slane %v2294, 1
          %v2301 = vrot.slane %v2295, 1
          %2302 = vrot.lane.b32.xlu0 %v2299, 48
          %v2303 = vpop.permute.xlu0 %2302
          %2304 = vrot.lane.b32.xlu0 %v2300, 48
          %v2305 = vpop.permute.xlu0 %2304
          %2306 = vrot.lane.b32.xlu0 %v2301, 48
          %v2307 = vpop.permute.xlu0 %2306
          %v2308 = vsel %vm2048, %v2303, %v2305
          %v2309 = vsel %vm2048, %v2305, %v2307
          %v2313 = vadd.f32 %v2289, %v2303
          %v2314 = vadd.f32 %v2290, %v2308
          %v2315 = vadd.f32 %v2291, %v2309
          %s2316 = sld [smem:[#allocation9 + $0x29]]
          %s2317 = sld [smem:[#allocation9 + $0x5a]]
          %v2318 = vstv %s2316
          %v2319 = vmul.f32 %v2318, %v1700
          %v2320 = vmul.f32 %v2318, %v1701
          %v2321 = vmul.f32 %v2318, %v1702
          %2325 = vrot.lane.b32.xlu0 %v2319, 48
          %v2326 = vpop.permute.xlu0 %2325
          %2327 = vrot.lane.b32.xlu0 %v2320, 48
          %v2328 = vpop.permute.xlu0 %2327
          %2329 = vrot.lane.b32.xlu0 %v2321, 48
          %v2330 = vpop.permute.xlu0 %2329
          %v2331 = vsel %vm2048, %v2326, %v2328
          %v2332 = vsel %vm2048, %v2328, %v2330
          %v2336 = vadd.f32 %v2030, %v2326
          %v2337 = vadd.f32 %v2031, %v2331
          %v2338 = vadd.f32 %v2032, %v2332
          %v2339 = vstv %s2317
          %v2340 = vmul.f32 %v2339, %v1700
          %v2341 = vmul.f32 %v2339, %v1701
          %v2342 = vmul.f32 %v2339, %v1702
          %v2346 = vrot.slane %v2340, 1
          %v2347 = vrot.slane %v2341, 1
          %v2348 = vrot.slane %v2342, 1
          %2349 = vrot.lane.b32.xlu0 %v2346, 48
          %v2350 = vpop.permute.xlu0 %2349
          %2351 = vrot.lane.b32.xlu0 %v2347, 48
          %v2352 = vpop.permute.xlu0 %2351
          %2353 = vrot.lane.b32.xlu0 %v2348, 48
          %v2354 = vpop.permute.xlu0 %2353
          %v2355 = vsel %vm2048, %v2350, %v2352
          %v2356 = vsel %vm2048, %v2352, %v2354
          %v2360 = vadd.f32 %v2336, %v2350
          %v2361 = vadd.f32 %v2337, %v2355
          %v2362 = vadd.f32 %v2338, %v2356
          %s2363 = sld [smem:[#allocation9 + $0x2a]]
          %s2364 = sld [smem:[#allocation9 + $0x5b]]
          %v2365 = vstv %s2363
          %v2366 = vmul.f32 %v2365, %v1700
          %v2367 = vmul.f32 %v2365, %v1701
          %v2368 = vmul.f32 %v2365, %v1702
          %2372 = vrot.lane.b32.xlu0 %v2366, 32
          %v2373 = vpop.permute.xlu0 %2372
          %2374 = vrot.lane.b32.xlu0 %v2367, 32
          %v2375 = vpop.permute.xlu0 %2374
          %2376 = vrot.lane.b32.xlu0 %v2368, 32
          %v2377 = vpop.permute.xlu0 %2376
          %vm2378 = vcmask 261120
          %v2379 = vsel %vm2378, %v2373, %v2375
          %v2380 = vsel %vm2378, %v2375, %v2377
          %v2384 = vadd.f32 %v2078, %v2373
          %v2385 = vadd.f32 %v2079, %v2379
          %v2386 = vadd.f32 %v2080, %v2380
          %v2387 = vstv %s2364
          %v2388 = vmul.f32 %v2387, %v1700
          %v2389 = vmul.f32 %v2387, %v1701
          %v2390 = vmul.f32 %v2387, %v1702
          %v2394 = vrot.slane %v2388, 1
          %v2395 = vrot.slane %v2389, 1
          %v2396 = vrot.slane %v2390, 1
          %2397 = vrot.lane.b32.xlu0 %v2394, 32
          %v2398 = vpop.permute.xlu0 %2397
          %2399 = vrot.lane.b32.xlu0 %v2395, 32
          %v2400 = vpop.permute.xlu0 %2399
          %2401 = vrot.lane.b32.xlu0 %v2396, 32
          %v2402 = vpop.permute.xlu0 %2401
          %v2403 = vsel %vm2378, %v2398, %v2400
          %v2404 = vsel %vm2378, %v2400, %v2402
          %v2408 = vadd.f32 %v2384, %v2398
          %v2409 = vadd.f32 %v2385, %v2403
          %v2410 = vadd.f32 %v2386, %v2404
          %s2411 = sld [smem:[#allocation9 + $0x2b]]
          %s2412 = sld [smem:[#allocation9 + $0x5c]]
          %v2413 = vstv %s2411
          %v2414 = vmul.f32 %v2413, %v1700
          %v2415 = vmul.f32 %v2413, %v1701
          %v2416 = vmul.f32 %v2413, %v1702
          %2420 = vrot.lane.b32.xlu0 %v2414, 32
          %v2421 = vpop.permute.xlu0 %2420
          %2422 = vrot.lane.b32.xlu0 %v2415, 32
          %v2423 = vpop.permute.xlu0 %2422
          %2424 = vrot.lane.b32.xlu0 %v2416, 32
          %v2425 = vpop.permute.xlu0 %2424
          %v2426 = vsel %vm2378, %v2421, %v2423
          %v2427 = vsel %vm2378, %v2423, %v2425
          %v2431 = vadd.f32 %v2125, %v2421
          %v2432 = vadd.f32 %v2126, %v2426
          %v2433 = vadd.f32 %v2127, %v2427
          %v2434 = vstv %s2412
          %v2435 = vmul.f32 %v2434, %v1700
          %v2436 = vmul.f32 %v2434, %v1701
          %v2437 = vmul.f32 %v2434, %v1702
          %v2441 = vrot.slane %v2435, 1
          %v2442 = vrot.slane %v2436, 1
          %v2443 = vrot.slane %v2437, 1
          %2444 = vrot.lane.b32.xlu0 %v2441, 32
          %v2445 = vpop.permute.xlu0 %2444
          %2446 = vrot.lane.b32.xlu0 %v2442, 32
          %v2447 = vpop.permute.xlu0 %2446
          %2448 = vrot.lane.b32.xlu0 %v2443, 32
          %v2449 = vpop.permute.xlu0 %2448
          %v2450 = vsel %vm2378, %v2445, %v2447
          %v2451 = vsel %vm2378, %v2447, %v2449
          %v2455 = vadd.f32 %v2431, %v2445
          %v2456 = vadd.f32 %v2432, %v2450
          %v2457 = vadd.f32 %v2433, %v2451
          %s2458 = sld [smem:[#allocation9 + $0x2c]]
          %s2459 = sld [smem:[#allocation9 + $0x5d]]
          %v2460 = vstv %s2458
          %v2461 = vmul.f32 %v2460, %v1700
          %v2462 = vmul.f32 %v2460, %v1701
          %v2463 = vmul.f32 %v2460, %v1702
          %2467 = vrot.lane.b32.xlu0 %v2461, 32
          %v2468 = vpop.permute.xlu0 %2467
          %2469 = vrot.lane.b32.xlu0 %v2462, 32
          %v2470 = vpop.permute.xlu0 %2469
          %2471 = vrot.lane.b32.xlu0 %v2463, 32
          %v2472 = vpop.permute.xlu0 %2471
          %v2473 = vsel %vm2378, %v2468, %v2470
          %v2474 = vsel %vm2378, %v2470, %v2472
          %v2478 = vadd.f32 %v2172, %v2468
          %v2479 = vadd.f32 %v2173, %v2473
          %v2480 = vadd.f32 %v2174, %v2474
          %v2481 = vstv %s2459
          %v2482 = vmul.f32 %v2481, %v1700
          %v2483 = vmul.f32 %v2481, %v1701
          %v2484 = vmul.f32 %v2481, %v1702
          %v2488 = vrot.slane %v2482, 1
          %v2489 = vrot.slane %v2483, 1
          %v2490 = vrot.slane %v2484, 1
          %2491 = vrot.lane.b32.xlu0 %v2488, 32
          %v2492 = vpop.permute.xlu0 %2491
          %2493 = vrot.lane.b32.xlu0 %v2489, 32
          %v2494 = vpop.permute.xlu0 %2493
          %2495 = vrot.lane.b32.xlu0 %v2490, 32
          %v2496 = vpop.permute.xlu0 %2495
          %v2497 = vsel %vm2378, %v2492, %v2494
          %v2498 = vsel %vm2378, %v2494, %v2496
          %v2502 = vadd.f32 %v2478, %v2492
          %v2503 = vadd.f32 %v2479, %v2497
          %v2504 = vadd.f32 %v2480, %v2498
          %s2505 = sld [smem:[#allocation9 + $0x2d]]
          %s2506 = sld [smem:[#allocation9 + $0x5e]]
          %v2507 = vstv %s2505
          %v2508 = vmul.f32 %v2507, %v1700
          %v2509 = vmul.f32 %v2507, %v1701
          %v2510 = vmul.f32 %v2507, %v1702
          %2514 = vrot.lane.b32.xlu0 %v2508, 32
          %v2515 = vpop.permute.xlu0 %2514
          %2516 = vrot.lane.b32.xlu0 %v2509, 32
          %v2517 = vpop.permute.xlu0 %2516
          %2518 = vrot.lane.b32.xlu0 %v2510, 32
          %v2519 = vpop.permute.xlu0 %2518
          %v2520 = vsel %vm2378, %v2515, %v2517
          %v2521 = vsel %vm2378, %v2517, %v2519
          %v2525 = vadd.f32 %v2219, %v2515
          %v2526 = vadd.f32 %v2220, %v2520
          %v2527 = vadd.f32 %v2221, %v2521
          %v2528 = vstv %s2506
          %v2529 = vmul.f32 %v2528, %v1700
          %v2530 = vmul.f32 %v2528, %v1701
          %v2531 = vmul.f32 %v2528, %v1702
          %v2535 = vrot.slane %v2529, 1
          %v2536 = vrot.slane %v2530, 1
          %v2537 = vrot.slane %v2531, 1
          %2538 = vrot.lane.b32.xlu0 %v2535, 32
          %v2539 = vpop.permute.xlu0 %2538
          %2540 = vrot.lane.b32.xlu0 %v2536, 32
          %v2541 = vpop.permute.xlu0 %2540
          %2542 = vrot.lane.b32.xlu0 %v2537, 32
          %v2543 = vpop.permute.xlu0 %2542
          %v2544 = vsel %vm2378, %v2539, %v2541
          %v2545 = vsel %vm2378, %v2541, %v2543
          %v2549 = vadd.f32 %v2525, %v2539
          %v2550 = vadd.f32 %v2526, %v2544
          %v2551 = vadd.f32 %v2527, %v2545
          %s2552 = sld [smem:[#allocation9 + $0x2e]]
          %s2553 = sld [smem:[#allocation9 + $0x5f]]
          %v2554 = vstv %s2552
          %v2555 = vmul.f32 %v2554, %v1700
          %v2556 = vmul.f32 %v2554, %v1701
          %v2557 = vmul.f32 %v2554, %v1702
          %2561 = vrot.lane.b32.xlu0 %v2555, 32
          %v2562 = vpop.permute.xlu0 %2561
          %2563 = vrot.lane.b32.xlu0 %v2556, 32
          %v2564 = vpop.permute.xlu0 %2563
          %2565 = vrot.lane.b32.xlu0 %v2557, 32
          %v2566 = vpop.permute.xlu0 %2565
          %v2567 = vsel %vm2378, %v2562, %v2564
          %v2568 = vsel %vm2378, %v2564, %v2566
          %v2572 = vadd.f32 %v2266, %v2562
          %v2573 = vadd.f32 %v2267, %v2567
          %v2574 = vadd.f32 %v2268, %v2568
          %v2575 = vstv %s2553
          %v2576 = vmul.f32 %v2575, %v1700
          %v2577 = vmul.f32 %v2575, %v1701
          %v2578 = vmul.f32 %v2575, %v1702
          %v2582 = vrot.slane %v2576, 1
          %v2583 = vrot.slane %v2577, 1
          %v2584 = vrot.slane %v2578, 1
          %2585 = vrot.lane.b32.xlu0 %v2582, 32
          %v2586 = vpop.permute.xlu0 %2585
          %2587 = vrot.lane.b32.xlu0 %v2583, 32
          %v2588 = vpop.permute.xlu0 %2587
          %2589 = vrot.lane.b32.xlu0 %v2584, 32
          %v2590 = vpop.permute.xlu0 %2589
          %v2591 = vsel %vm2378, %v2586, %v2588
          %v2592 = vsel %vm2378, %v2588, %v2590
          %v2596 = vadd.f32 %v2572, %v2586
          %v2597 = vadd.f32 %v2573, %v2591
          %v2598 = vadd.f32 %v2574, %v2592
          %s2599 = sld [smem:[#allocation9 + $0x2f]]
          %s2600 = sld [smem:[#allocation9 + $0x60]]
          %v2601 = vstv %s2599
          %v2602 = vmul.f32 %v2601, %v1700
          %v2603 = vmul.f32 %v2601, %v1701
          %v2604 = vmul.f32 %v2601, %v1702
          %2608 = vrot.lane.b32.xlu0 %v2602, 32
          %v2609 = vpop.permute.xlu0 %2608
          %2610 = vrot.lane.b32.xlu0 %v2603, 32
          %v2611 = vpop.permute.xlu0 %2610
          %2612 = vrot.lane.b32.xlu0 %v2604, 32
          %v2613 = vpop.permute.xlu0 %2612
          %v2614 = vsel %vm2378, %v2609, %v2611
          %v2615 = vsel %vm2378, %v2611, %v2613
          %v2619 = vadd.f32 %v2313, %v2609
          %v2620 = vadd.f32 %v2314, %v2614
          %v2621 = vadd.f32 %v2315, %v2615
          %v2622 = vstv %s2600
          %v2623 = vmul.f32 %v2622, %v1700
          %v2624 = vmul.f32 %v2622, %v1701
          %v2625 = vmul.f32 %v2622, %v1702
          %v2629 = vrot.slane %v2623, 1
          %v2630 = vrot.slane %v2624, 1
          %v2631 = vrot.slane %v2625, 1
          %2632 = vrot.lane.b32.xlu0 %v2629, 32
          %v2633 = vpop.permute.xlu0 %2632
          %2634 = vrot.lane.b32.xlu0 %v2630, 32
          %v2635 = vpop.permute.xlu0 %2634
          %2636 = vrot.lane.b32.xlu0 %v2631, 32
          %v2637 = vpop.permute.xlu0 %2636
          %v2638 = vsel %vm2378, %v2633, %v2635
          %v2639 = vsel %vm2378, %v2635, %v2637
          %v2643 = vadd.f32 %v2619, %v2633
          %v2644 = vadd.f32 %v2620, %v2638
          %v2645 = vadd.f32 %v2621, %v2639
          %s2646 = sld [smem:[#allocation9 + $0x30]]
          %s2647 = sld [smem:[#allocation9 + $0x61]]
          %v2648 = vstv %s2646
          %v2649 = vmul.f32 %v2648, %v1700
          %v2650 = vmul.f32 %v2648, %v1701
          %v2651 = vmul.f32 %v2648, %v1702
          %2655 = vrot.lane.b32.xlu0 %v2649, 32
          %v2656 = vpop.permute.xlu0 %2655
          %2657 = vrot.lane.b32.xlu0 %v2650, 32
          %v2658 = vpop.permute.xlu0 %2657
          %2659 = vrot.lane.b32.xlu0 %v2651, 32
          %v2660 = vpop.permute.xlu0 %2659
          %v2661 = vsel %vm2378, %v2656, %v2658
          %v2662 = vsel %vm2378, %v2658, %v2660
          %v2666 = vadd.f32 %v2360, %v2656
          %v2667 = vadd.f32 %v2361, %v2661
          %v2668 = vadd.f32 %v2362, %v2662
          %v2669 = vstv %s2647
          %v2670 = vmul.f32 %v2669, %v1700
          %v2671 = vmul.f32 %v2669, %v1701
          %v2672 = vmul.f32 %v2669, %v1702
          %v2676 = vrot.slane %v2670, 1
          %v2677 = vrot.slane %v2671, 1
          %v2678 = vrot.slane %v2672, 1
          %2679 = vrot.lane.b32.xlu0 %v2676, 32
          %v2680 = vpop.permute.xlu0 %2679
          %2681 = vrot.lane.b32.xlu0 %v2677, 32
          %v2682 = vpop.permute.xlu0 %2681
          %2683 = vrot.lane.b32.xlu0 %v2678, 32
          %v2684 = vpop.permute.xlu0 %2683
          %v2685 = vsel %vm2378, %v2680, %v2682
          %v2686 = vsel %vm2378, %v2682, %v2684
          %v2690 = vadd.f32 %v2666, %v2680
          %v2691 = vadd.f32 %v2667, %v2685
          %v2692 = vadd.f32 %v2668, %v2686
          %v2696 = vcombine.low %v2408, %v2409
          %v2698 = vunpack.c.l.s4 1966171168
          %v2699 = vunpack.c.0.s8 %v2698
          %v2700 = vlaneseq
          %v2701 = vshrl.u32 %v2700, 7
          %v2702 = vsub.s32 %v2699, %v2701
          %v2703 = vrot.slane %v2696, %v2702
          %v2705 = vunpack.c.l.s4 1966171168
          %v2706 = vunpack.c.0.s8 %v2705
          %v2707 = vlaneseq
          %v2708 = vshrl.u32 %v2707, 7
          %v2709 = vsub.s32 %v2706, %v2708
          %v2710 = vrot.slane %v2410, %v2709
          %v2711 = vcombine.low %v2703, %v2710
          %v2713 = vunpack.c.l.s4 1966171168
          %v2714 = vunpack.c.0.s8 %v2713
          %v2715 = vlaneseq
          %v2716 = vshrl.u32 %v2715, 7
          %v2717 = vsub.s32 %v2714, %v2716
          %v2718 = vrot.slane %v2711, %v2717
          %2719 = vrot.lane.b32.xlu0 %v2718, 48
          %v2720 = vpop.permute.xlu0 %2719
          %v2721 = vrot.slane %v2720, 1
          %v2722 = vsel %vm2048, %v2720, %v2721
          %v2724 = vlaneseq
          %vm2725 = vcmp.ge.s32.totalorder %v2724, 0
          %vm2726 = vcmp.lt.s32.totalorder %v2724, 256
          %vm2727 = vmand %vm2725, %vm2726
          %s2728 = scalar_lea.vmem [#allocation2], 10
          %2729 = vst.msk [vmem:[%s2728] ss:$8 sm:$0x3] %vm2727, %v2722
          %2730 = vst.msk [vmem:[%s2728] ss:$8 sm:$0x0] %vm2727, %v2722
          %v2734 = vcombine.low %v2455, %v2456
          %v2736 = vunpack.c.l.s4 1966171168
          %v2737 = vunpack.c.0.s8 %v2736
          %v2738 = vlaneseq
          %v2739 = vshrl.u32 %v2738, 7
          %v2740 = vsub.s32 %v2737, %v2739
          %v2741 = vrot.slane %v2734, %v2740
          %v2743 = vunpack.c.l.s4 1966171168
          %v2744 = vunpack.c.0.s8 %v2743
          %v2745 = vlaneseq
          %v2746 = vshrl.u32 %v2745, 7
          %v2747 = vsub.s32 %v2744, %v2746
          %v2748 = vrot.slane %v2457, %v2747
          %v2749 = vcombine.low %v2741, %v2748
          %v2751 = vunpack.c.l.s4 1966171168
          %v2752 = vunpack.c.0.s8 %v2751
          %v2753 = vlaneseq
          %v2754 = vshrl.u32 %v2753, 7
          %v2755 = vsub.s32 %v2752, %v2754
          %v2756 = vrot.slane %v2749, %v2755
          %2757 = vrot.lane.b32.xlu0 %v2756, 48
          %v2758 = vpop.permute.xlu0 %2757
          %v2759 = vrot.slane %v2758, 1
          %v2760 = vsel %vm2048, %v2758, %v2759
          %s2762 = scalar_lea.vmem [#allocation2], 11
          %2763 = vst.msk [vmem:[%s2762] ss:$8 sm:$0x3] %vm2727, %v2760
          %2764 = vst.msk [vmem:[%s2762] ss:$8 sm:$0x0] %vm2727, %v2760
          %v2768 = vcombine.low %v2502, %v2503
          %v2770 = vunpack.c.l.s4 1966171168
          %v2771 = vunpack.c.0.s8 %v2770
          %v2772 = vlaneseq
          %v2773 = vshrl.u32 %v2772, 7
          %v2774 = vsub.s32 %v2771, %v2773
          %v2775 = vrot.slane %v2768, %v2774
          %v2777 = vunpack.c.l.s4 1966171168
          %v2778 = vunpack.c.0.s8 %v2777
          %v2779 = vlaneseq
          %v2780 = vshrl.u32 %v2779, 7
          %v2781 = vsub.s32 %v2778, %v2780
          %v2782 = vrot.slane %v2504, %v2781
          %v2783 = vcombine.low %v2775, %v2782
          %v2785 = vunpack.c.l.s4 1966171168
          %v2786 = vunpack.c.0.s8 %v2785
          %v2787 = vlaneseq
          %v2788 = vshrl.u32 %v2787, 7
          %v2789 = vsub.s32 %v2786, %v2788
          %v2790 = vrot.slane %v2783, %v2789
          %2791 = vrot.lane.b32.xlu0 %v2790, 48
          %v2792 = vpop.permute.xlu0 %2791
          %v2793 = vrot.slane %v2792, 1
          %v2794 = vsel %vm2048, %v2792, %v2793
          %s2796 = scalar_lea.vmem [#allocation2], 12
          %2797 = vst.msk [vmem:[%s2796] ss:$8 sm:$0x3] %vm2727, %v2794
          %2798 = vst.msk [vmem:[%s2796] ss:$8 sm:$0x0] %vm2727, %v2794
          %v2802 = vcombine.low %v2596, %v2597
          %v2804 = vunpack.c.l.s4 1966171168
          %v2805 = vunpack.c.0.s8 %v2804
          %v2806 = vlaneseq
          %v2807 = vshrl.u32 %v2806, 7
          %v2808 = vsub.s32 %v2805, %v2807
          %v2809 = vrot.slane %v2802, %v2808
          %v2811 = vunpack.c.l.s4 1966171168
          %v2812 = vunpack.c.0.s8 %v2811
          %v2813 = vlaneseq
          %v2814 = vshrl.u32 %v2813, 7
          %v2815 = vsub.s32 %v2812, %v2814
          %v2816 = vrot.slane %v2598, %v2815
          %v2817 = vcombine.low %v2809, %v2816
          %v2819 = vunpack.c.l.s4 1966171168
          %v2820 = vunpack.c.0.s8 %v2819
          %v2821 = vlaneseq
          %v2822 = vshrl.u32 %v2821, 7
          %v2823 = vsub.s32 %v2820, %v2822
          %v2824 = vrot.slane %v2817, %v2823
          %2825 = vrot.lane.b32.xlu0 %v2824, 48
          %v2826 = vpop.permute.xlu0 %2825
          %v2827 = vrot.slane %v2826, 1
          %v2828 = vsel %vm2048, %v2826, %v2827
          %s2830 = scalar_lea.vmem [#allocation2], 14
          %2831 = vst.msk [vmem:[%s2830] ss:$8 sm:$0x3] %vm2727, %v2828
          %2832 = vst.msk [vmem:[%s2830] ss:$8 sm:$0x0] %vm2727, %v2828
          %v2836 = vcombine.low %v2643, %v2644
          %v2838 = vunpack.c.l.s4 1966171168
          %v2839 = vunpack.c.0.s8 %v2838
          %v2840 = vlaneseq
          %v2841 = vshrl.u32 %v2840, 7
          %v2842 = vsub.s32 %v2839, %v2841
          %v2843 = vrot.slane %v2836, %v2842
          %v2845 = vunpack.c.l.s4 1966171168
          %v2846 = vunpack.c.0.s8 %v2845
          %v2847 = vlaneseq
          %v2848 = vshrl.u32 %v2847, 7
          %v2849 = vsub.s32 %v2846, %v2848
          %v2850 = vrot.slane %v2645, %v2849
          %v2851 = vcombine.low %v2843, %v2850
          %v2853 = vunpack.c.l.s4 1966171168
          %v2854 = vunpack.c.0.s8 %v2853
          %v2855 = vlaneseq
          %v2856 = vshrl.u32 %v2855, 7
          %v2857 = vsub.s32 %v2854, %v2856
          %v2858 = vrot.slane %v2851, %v2857
          %2859 = vrot.lane.b32.xlu0 %v2858, 48
          %v2860 = vpop.permute.xlu0 %2859
          %v2861 = vrot.slane %v2860, 1
          %v2862 = vsel %vm2048, %v2860, %v2861
          %s2864 = scalar_lea.vmem [#allocation2], 15
          %2865 = vst.msk [vmem:[%s2864] ss:$8 sm:$0x3] %vm2727, %v2862
          %2866 = vst.msk [vmem:[%s2864] ss:$8 sm:$0x0] %vm2727, %v2862
          %v2870 = vcombine.low %v2690, %v2691
          %v2872 = vunpack.c.l.s4 1966171168
          %v2873 = vunpack.c.0.s8 %v2872
          %v2874 = vlaneseq
          %v2875 = vshrl.u32 %v2874, 7
          %v2876 = vsub.s32 %v2873, %v2875
          %v2877 = vrot.slane %v2870, %v2876
          %v2879 = vunpack.c.l.s4 1966171168
          %v2880 = vunpack.c.0.s8 %v2879
          %v2881 = vlaneseq
          %v2882 = vshrl.u32 %v2881, 7
          %v2883 = vsub.s32 %v2880, %v2882
          %v2884 = vrot.slane %v2692, %v2883
          %v2885 = vcombine.low %v2877, %v2884
          %v2887 = vunpack.c.l.s4 1966171168
          %v2888 = vunpack.c.0.s8 %v2887
          %v2889 = vlaneseq
          %v2890 = vshrl.u32 %v2889, 7
          %v2891 = vsub.s32 %v2888, %v2890
          %v2892 = vrot.slane %v2885, %v2891
          %2893 = vrot.lane.b32.xlu0 %v2892, 48
          %v2894 = vpop.permute.xlu0 %2893
          %v2895 = vrot.slane %v2894, 1
          %v2896 = vsel %vm2048, %v2894, %v2895
          %s2898 = scalar_lea.vmem [#allocation2], 40
          %2899 = vst.msk [vmem:[%s2898] ss:$8 sm:$0x3] %vm2727, %v2896
          %2900 = vst.msk [vmem:[%s2898] ss:$8 sm:$0x0] %vm2727, %v2896
          %s2901 = scalar_lea.vmem [#allocation2], 2
          %v2902 = vld [vmem:[%s2901] ss:$8 sm:$0x7]
          %v2903 = vld [vmem:[%s3] ss:$8 sm:$0x3]
          %2905 = vrot.lane.b32.xlu0 %v2902, 3
          %v2906 = vpop.permute.xlu0 %2905
          %v2907 = vrot.slane %v2906, 1
          %vm2908 = vcmask 23552
          %v2909 = vsel %vm2908, %v2906, %v2907
          %v2911 = vmul.f32 %v2903, %v2909
          %v2913 = vlaneseq
          %v2914 = vshrl.u32 %v2913, 7
          %v2915 = vsub.s32 0, %v2914
          %v2916 = vrot.slane %v2911, %v2915
          %v2917 = vlaneseq
          %v2918 = vshrl.u32 %v2917, 7
          %v2919 = vsub.s32 1, %v2918
          %v2920 = vrot.slane %v2911, %v2919
          %2921 = vrot.lane.b32.xlu0 %v2916, 80
          %v2922 = vpop.permute.xlu0 %2921
          %2923 = vrot.lane.b32.xlu0 %v2920, 80
          %v2924 = vpop.permute.xlu0 %2923
          %v2925 = vsel %vm1458, %v2922, %v2924
          %v2929 = vadd.f32 %v2549, %v2922
          %v2930 = vadd.f32 %v2550, %v2925
          %v2931 = vadd.f32 %v2551, %v2924
          %s2932 = scalar_lea.vmem [#allocation2], 3
          %v2933 = vld [vmem:[%s2932] ss:$8 sm:$0x7]
          %s2934 = scalar_lea.vmem %s3, 1
          %v2935 = vld [vmem:[%s2934] ss:$8 sm:$0x3]
          %2937 = vrot.lane.b32.xlu0 %v2933, 2
          %v2938 = vpop.permute.xlu0 %2937
          %v2939 = vrot.slane %v2938, 1
          %v2940 = vsel %vm395, %v2938, %v2939
          %v2942 = vmul.f32 %v2935, %v2940
          %v2944 = vlaneseq
          %v2945 = vshrl.u32 %v2944, 7
          %v2946 = vsub.s32 0, %v2945
          %v2947 = vrot.slane %v2942, %v2946
          %v2948 = vlaneseq
          %v2949 = vshrl.u32 %v2948, 7
          %v2950 = vsub.s32 1, %v2949
          %v2951 = vrot.slane %v2942, %v2950
          %2952 = vrot.lane.b32.xlu0 %v2947, 80
          %v2953 = vpop.permute.xlu0 %2952
          %2954 = vrot.lane.b32.xlu0 %v2951, 80
          %v2955 = vpop.permute.xlu0 %2954
          %v2956 = vsel %vm1458, %v2953, %v2955
          %v2960 = vadd.f32 %v2929, %v2953
          %v2961 = vadd.f32 %v2930, %v2956
          %v2962 = vadd.f32 %v2931, %v2955
          %s2963 = scalar_lea.vmem [#allocation2], 4
          %v2964 = vld [vmem:[%s2963] ss:$8 sm:$0x7]
          %s2965 = scalar_lea.vmem %s3, 2
          %v2966 = vld [vmem:[%s2965] ss:$8 sm:$0x3]
          %2968 = vrot.lane.b32.xlu0 %v2964, 1
          %v2969 = vpop.permute.xlu0 %2968
          %v2970 = vrot.slane %v2969, 1
          %v2971 = vsel %vm527, %v2969, %v2970
          %v2973 = vmul.f32 %v2966, %v2971
          %v2975 = vlaneseq
          %v2976 = vshrl.u32 %v2975, 7
          %v2977 = vsub.s32 0, %v2976
          %v2978 = vrot.slane %v2973, %v2977
          %v2979 = vlaneseq
          %v2980 = vshrl.u32 %v2979, 7
          %v2981 = vsub.s32 1, %v2980
          %v2982 = vrot.slane %v2973, %v2981
          %2983 = vrot.lane.b32.xlu0 %v2978, 80
          %v2984 = vpop.permute.xlu0 %2983
          %2985 = vrot.lane.b32.xlu0 %v2982, 80
          %v2986 = vpop.permute.xlu0 %2985
          %v2987 = vsel %vm1458, %v2984, %v2986
          %v2991 = vadd.f32 %v2960, %v2984
          %v2992 = vadd.f32 %v2961, %v2987
          %v2993 = vadd.f32 %v2962, %v2986
          %v2994 = vld [vmem:[%s2830] ss:$8 sm:$0x7]
          %s2995 = scalar_lea.vmem %s3, 4
          %v2996 = vld [vmem:[%s2995] ss:$8 sm:$0x3]
          %2998 = vrot.lane.b32.xlu0 %v2994, 127
          %v2999 = vpop.permute.xlu0 %2998
          %v3000 = vrot.slane %v2999, 1
          %vm3001 = vcmask 1039360
          %v3002 = vsel %vm3001, %v2999, %v3000
          %v3004 = vmul.f32 %v2996, %v3002
          %v3006 = vlaneseq
          %v3007 = vshrl.u32 %v3006, 7
          %v3008 = vsub.s32 0, %v3007
          %v3009 = vrot.slane %v3004, %v3008
          %v3010 = vlaneseq
          %v3011 = vshrl.u32 %v3010, 7
          %v3012 = vsub.s32 1, %v3011
          %v3013 = vrot.slane %v3004, %v3012
          %3014 = vrot.lane.b32.xlu0 %v3009, 80
          %v3015 = vpop.permute.xlu0 %3014
          %3016 = vrot.lane.b32.xlu0 %v3013, 80
          %v3017 = vpop.permute.xlu0 %3016
          %v3018 = vsel %vm1458, %v3015, %v3017
          %v3022 = vadd.f32 %v2991, %v3015
          %v3023 = vadd.f32 %v2992, %v3018
          %v3024 = vadd.f32 %v2993, %v3017
          %v3025 = vld [vmem:[%s2864] ss:$8 sm:$0x7]
          %s3026 = scalar_lea.vmem %s3, 5
          %v3027 = vld [vmem:[%s3026] ss:$8 sm:$0x3]
          %3029 = vrot.lane.b32.xlu0 %v3025, 126
          %v3030 = vpop.permute.xlu0 %3029
          %v3031 = vrot.slane %v3030, 1
          %vm3032 = vcmask 1031168
          %v3033 = vsel %vm3032, %v3030, %v3031
          %v3035 = vmul.f32 %v3027, %v3033
          %v3037 = vlaneseq
          %v3038 = vshrl.u32 %v3037, 7
          %v3039 = vsub.s32 0, %v3038
          %v3040 = vrot.slane %v3035, %v3039
          %v3041 = vlaneseq
          %v3042 = vshrl.u32 %v3041, 7
          %v3043 = vsub.s32 1, %v3042
          %v3044 = vrot.slane %v3035, %v3043
          %3045 = vrot.lane.b32.xlu0 %v3040, 80
          %v3046 = vpop.permute.xlu0 %3045
          %3047 = vrot.lane.b32.xlu0 %v3044, 80
          %v3048 = vpop.permute.xlu0 %3047
          %v3049 = vsel %vm1458, %v3046, %v3048
          %v3053 = vadd.f32 %v3022, %v3046
          %v3054 = vadd.f32 %v3023, %v3049
          %v3055 = vadd.f32 %v3024, %v3048
          %v3056 = vld [vmem:[%s2898] ss:$8 sm:$0x7]
          %s3057 = scalar_lea.vmem %s3, 6
          %v3058 = vld [vmem:[%s3057] ss:$8 sm:$0x3]
          %3060 = vrot.lane.b32.xlu0 %v3056, 125
          %v3061 = vpop.permute.xlu0 %3060
          %v3062 = vrot.slane %v3061, 1
          %vm3063 = vcmask 1022976
          %v3064 = vsel %vm3063, %v3061, %v3062
          %v3066 = vmul.f32 %v3058, %v3064
          %v3068 = vlaneseq
          %v3069 = vshrl.u32 %v3068, 7
          %v3070 = vsub.s32 0, %v3069
          %v3071 = vrot.slane %v3066, %v3070
          %v3072 = vlaneseq
          %v3073 = vshrl.u32 %v3072, 7
          %v3074 = vsub.s32 1, %v3073
          %v3075 = vrot.slane %v3066, %v3074
          %3076 = vrot.lane.b32.xlu0 %v3071, 80
          %v3077 = vpop.permute.xlu0 %3076
          %3078 = vrot.lane.b32.xlu0 %v3075, 80
          %v3079 = vpop.permute.xlu0 %3078
          %v3080 = vsel %vm1458, %v3077, %v3079
          %v3084 = vadd.f32 %v3053, %v3077
          %v3085 = vadd.f32 %v3054, %v3080
          %v3086 = vadd.f32 %v3055, %v3079
          %v3087 = vstv %s314
          %v3088 = vmul.f32 %v3084, %v3087
          %v3089 = vmul.f32 %v3085, %v3087
          %v3090 = vmul.f32 %v3086, %v3087
          %v3091 = vstv %s315
          %v3092 = vadd.f32 %v3088, %v3091
          %v3093 = vadd.f32 %v3089, %v3091
          %v3094 = vadd.f32 %v3090, %v3091
          %vm3095 = vcmp.ge.f32.partialorder %v3092, 0.0
          %vm3096 = vcmp.ge.f32.partialorder %v3093, 0.0
          %vm3097 = vcmp.ge.f32.partialorder %v3094, 0.0
          %v3098 = vstv %s313
          %v3099 = vmul.f32 %v3098, %v3092
          %v3100 = vmul.f32 %v3098, %v3093
          %v3101 = vmul.f32 %v3098, %v3094
          %v3102 = vsel %vm3095, %v3092, %v3099
          %v3103 = vsel %vm3096, %v3093, %v3100
          %v3104 = vsel %vm3097, %v3094, %v3101
          %v3105 = vxor.u32 %v3102, 2147483648
          %v3106 = vxor.u32 %v3103, 2147483648
          %v3107 = vxor.u32 %v3104, 2147483648
          %v3108 = vmul.f32 %v3105, 1.442695
          %v3109 = vpow.pop %v3108
          %v3110 = vmul.f32 %v3106, 1.442695
          %v3111 = vpow.pop %v3110
          %v3112 = vmul.f32 %v3107, 1.442695
          %v3113 = vpow.pop %v3112
          %v3114 = vadd.f32 %v3109, 1.0
          %v3115 = vadd.f32 %v3111, 1.0
          %v3116 = vadd.f32 %v3113, 1.0
          %v3117 = vrcp.pop %v3114
          %v3118 = vmul.f32 1.0, %v3117
          %v3119 = vrcp.pop %v3115
          %v3120 = vmul.f32 1.0, %v3119
          %v3121 = vrcp.pop %v3116
          %v3122 = vmul.f32 1.0, %v3121
          %v3126 = vcombine.low %v3118, %v3120
          %v3128 = vunpack.c.l.s4 1966171168
          %v3129 = vunpack.c.0.s8 %v3128
          %v3130 = vlaneseq
          %v3131 = vshrl.u32 %v3130, 7
          %v3132 = vsub.s32 %v3129, %v3131
          %v3133 = vrot.slane %v3126, %v3132
          %v3135 = vunpack.c.l.s4 1966171168
          %v3136 = vunpack.c.0.s8 %v3135
          %v3137 = vlaneseq
          %v3138 = vshrl.u32 %v3137, 7
          %v3139 = vsub.s32 %v3136, %v3138
          %v3140 = vrot.slane %v3122, %v3139
          %v3141 = vcombine.low %v3133, %v3140
          %v3143 = vunpack.c.l.s4 1966171168
          %v3144 = vunpack.c.0.s8 %v3143
          %v3145 = vlaneseq
          %v3146 = vshrl.u32 %v3145, 7
          %v3147 = vsub.s32 %v3144, %v3146
          %v3148 = vrot.slane %v3141, %v3147
          %3149 = vrot.lane.b32.xlu0 %v3148, 48
          %v3150 = vpop.permute.xlu0 %3149
          %v3151 = vrot.slane %v3150, 1
          %v3152 = vsel %vm2048, %v3150, %v3151
          %3154 = vst.msk [vmem:[#allocation4] sm:$0x3] %vm2727, %v3152
        $region60: #{tpu_custom_call.1} parent=43 // pred_fallthru
          _
        %s3155 = smul.u32 %s30, 16
        %s3156 = sshra.s32 %s3155, 3
        %s3157 = sand.u32 %s3155, 7
        %s3158 = smul.u32 %s3156, 2
        %s3159 = smul.addr %s3158, 8
        %s3160 = scalar_lea.vmem %s273, %s3159 [#allocation5]
        %v3161 = vld [vmem:[%s3160] sm:$0xff]
        %v3162 = vld [vmem:[%s3160 + $0x8] sm:$0xff]
        %v3163 = vld [vmem:[%s3160 + $0x10] sm:$0xff]
        %v3164 = vld [vmem:[%s3160 + $0x18] sm:$0xff]
        %s3165 = scalar_lea.vmem [#allocation3], %s3155
        %v3166 = vld [vmem:[%s3165] sm:$0xff]
        %v3167 = vld [vmem:[%s3165 + $0x8] sm:$0xff]
        %3169 = vset.pattern.permute.xlu0 0
        %3170 = vperm.xlu0 %3169, %v3166
        %v3171 = vpop.permute.xlu0 %3170
        %3174 = vset.pattern.permute.xlu0 0
        %3175 = vperm.xlu0 %3174, %v3167
        %v3176 = vpop.permute.xlu0 %3175
        %v3178 = vmul.f32 %v3161, %v3171
        %v3179 = vmul.f32 %v3162, %v3171
        %v3180 = vmul.f32 %v3163, %v3176
        %v3181 = vmul.f32 %v3164, %v3176
        %v3182 = vld [vmem:[#allocation4] sm:$0x3]
        %v3184 = vlaneseq
        %v3185 = vshrl.u32 %v3184, 7
        %v3186 = vsub.s32 0, %v3185
        %v3187 = vrot.slane %v3182, %v3186
        %v3188 = vlaneseq
        %v3189 = vshrl.u32 %v3188, 7
        %v3190 = vsub.s32 1, %v3189
        %v3191 = vrot.slane %v3182, %v3190
        %v3194 = vmul.f32 %v3178, %v3187
        %v3195 = vmul.f32 %v3179, %v3191
        %v3196 = vmul.f32 %v3180, %v3187
        %v3197 = vmul.f32 %v3181, %v3191
        %3198 = vst [vmem:[%s310] sm:$0xff] %v3194
        %3199 = vst [vmem:[%s310 + $0x8] sm:$0xff] %v3195
        %3200 = vst [vmem:[%s310 + $0x10] sm:$0xff] %v3196
        %3201 = vst [vmem:[%s310 + $0x18] sm:$0xff] %v3197
        %s3202 = sand.u32 %s178, 1
        %s3203 = scalar_lea.sflag [#allocation7], %s3202
        %s3204 = sand.u32 %s178, 1
        %s3205 = smul.addr %s3204, 32
        %s3206 = scalar_lea.vmem [#allocation12], %s3205
        // Predicated region
        $region61: #{tpu_custom_call.1} parent=43 // pred_check
          %p3207 = pneg %p188
        $region62: #{tpu_custom_call.1} parent=43 // pred_check_branch
          %3209 = sbr.rel (%p3207) target = $region64
        $region63: #{tpu_custom_call.1} parent=43 // pred_region
          %s3210 = smul.u32 2, %s30
          %s3212 = ssub.s32 512, 512
          %3213 = vsyncadd %s3203, %s3212
          %s3214 = smul.addr %s3210, 2
          %s3215 = smul.addr %s29, 8
          %s3216 = sadd.s32 %s3214, %s3215
          %s3217 = smul.addr %s3216, 128
          %s3218 = scalar_lea.hbm %s6, %s3217
          %s3219 = sshll.u32 %s3206, 4
          %s3220 = int_to_ptr.vmem [resolvable:$true] %s3219
          %3225 = dma.vmem_to_hbm [thread:$0]  %s3220, 512, %s3218, %s3203, 256, 256, 16
        $region64: #{tpu_custom_call.1} parent=43 // pred_fallthru
          _
      $region44: #{tpu_custom_call.1} parent=5 // pred_fallthru
        _
      %p3226 = scmp.le.s32.totalorder 2, %s20
      // Predicated region
      $region65: #{tpu_custom_call.1} parent=5 // pred_check
        %p3227 = pneg %p3226
      $region66: #{tpu_custom_call.1} parent=5 // pred_check_branch
        %3229 = sbr.rel (%p3227) target = $region68
      $region67: #{tpu_custom_call.1} parent=5 // pred_region
        %s3230 = ssub.s32 %s20, 2
        // Predicated region
        $region69: #{tpu_custom_call.1} parent=67 // pred_check
          %p3231 = pneg %p194
        $region70: #{tpu_custom_call.1} parent=67 // pred_check_branch
          %3233 = sbr.rel (%p3231) target = $region72
        $region71: #{tpu_custom_call.1} parent=67 // pred_region
          %s3234 = sand.u32 %s179, 1
          %s3235 = scalar_lea.sflag [#allocation7], %s3234
          %s3236 = sand.u32 %s179, 1
          %s3237 = smul.addr %s3236, 32
          %s3238 = scalar_lea.vmem [#allocation12], %s3237
          %3239 = dma.done %s3235, 512
        $region72: #{tpu_custom_call.1} parent=67 // pred_fallthru
          _
      $region68: #{tpu_custom_call.1} parent=5 // pred_fallthru
        _
    $region6: #{tpu_custom_call.1} parent=1 // loop_footer
      %s24 = sadd.s32 1, %s20
    $region7: #{tpu_custom_call.1} parent=1 // loop_footer_branch
      %19 = sbr.rel target = $region3
    $region8: #{tpu_custom_call.1} parent=1 // loop_exit
      _
    %3240 = vsyncpa [#allocation6], 1
    %s3241 = scalar_lea.sflag [#allocation6], 1
    %3242 = vsyncpa %s3241, 1
    %3243 = vsyncpa [#allocation7], 1
    %s3244 = scalar_lea.sflag [#allocation7], 1
    %3245 = vsyncpa %s3244, 1
    %3246 = vsyncpa [#allocation8], 1
    %s3247 = scalar_lea.sflag [#allocation8], 1
    %3248 = vsyncpa %s3247, 1
    %3249 = vsyncpa [#allocation11], 1

</llo_original>
